<compile_context>
chip_gen: v6e
topology: v6e:2x2x1
jax: 0.10.0
libtpu: 0.0.40
codegen_flags: <defaults>
</compile_context>

<pallas_src>
import math

import jax
import jax.numpy as jnp
from jax import lax
from jax.experimental import pallas as pl
from jax.experimental.pallas import tpu as pltpu


# ------------------------------------------------------------------ helpers

def _pick_chunk(S, max_chunk=16):
    """Largest divisor of S not exceeding max_chunk (encoder time-chunk size)."""
    for c in range(min(S, max_chunk), 0, -1):
        if S % c == 0:
            return c
    return 1


def _select_trg_row(trg_ref, t, B):
    """Build a (B,1) int32 token column from SMEM scalar reads (sreg->vreg splats)."""
    # TODO(synk): for large B keep trg in VMEM and slice a row instead of B scalar reads.
    row_iota = lax.broadcasted_iota(jnp.int32, (B, 1), 0)
    col = jnp.zeros((B, 1), jnp.int32)
    for b in range(B):
        col = jnp.where(row_iota == b, trg_ref[t, b], col)
    return col


# ------------------------------------------------------------------ encoder kernel

def _encoder_kernel(gx_ref, whh_ref, out_ref, hfin_ref, cfin_ref, h_s, c_s):
    # gx_ref : (1, Tc, B, 4H)  precomputed x@W_ih + b for this direction/chunk
    # whh_ref: (1, H, 4H)      recurrent weights for this direction (VMEM-resident)
    # out_ref: (1, Tc, B, H)   per-timestep hidden states
    # hfin/cfin: (1, B, H)     final state (written only at the last chunk)
    # h_s/c_s : (B, H)         recurrent state, persists across chunks
    H = h_s.shape[-1]
    Tc = gx_ref.shape[1]
    d = pl.program_id(0)                 # direction: 0 = forward, 1 = backward
    t = pl.program_id(1)                 # chunk index
    nc = pl.num_programs(1)

    @pl.when(t == 0)
    def _init():
        h_s[...] = jnp.zeros_like(h_s)
        c_s[...] = jnp.zeros_like(c_s)

    whh = whh_ref[0]                     # (H, 4H)

    def step(i, carry):
        h, c = carry
        # forward direction walks the chunk 0..Tc-1, backward walks Tc-1..0
        j = i + d * (Tc - 1 - 2 * i)
        gates = gx_ref[0, j] + jnp.dot(h, whh, preferred_element_type=jnp.float32)
        i_g = jax.nn.sigmoid(gates[:, 0:H])
        f_g = jax.nn.sigmoid(gates[:, H:2 * H])
        g_g = jnp.tanh(gates[:, 2 * H:3 * H])
        o_g = jax.nn.sigmoid(gates[:, 3 * H:4 * H])
        c_n = f_g * c + i_g * g_g
        h_n = o_g * jnp.tanh(c_n)
        out_ref[0, j] = h_n
        return h_n, c_n

    h_fin, c_fin = lax.fori_loop(0, Tc, step, (h_s[...], c_s[...]), unroll=True)
    h_s[...] = h_fin
    c_s[...] = c_fin

    @pl.when(t == nc - 1)
    def _finalize():
        hfin_ref[0] = h_fin
        cfin_ref[0] = c_fin


def encoder_forward(src, embed_table, enc_params):
    """Bidirectional single-layer LSTM; outputs summed over directions (like the torch ref)."""
    S, B = src.shape
    E = embed_table.shape[1]
    H = enc_params["w_hh_f"].shape[0]

    embedded = embed_table[src]                                   # (S, B, E) one-time gather
    # Hoisted input projection: one big MXU-friendly matmul per direction (bias folded in).
    x2 = embedded.reshape(S * B, E)
    gx_f = (x2 @ enc_params["w_ih_f"] + enc_params["b_f"]).reshape(S, B, 4 * H)
    gx_b = (x2 @ enc_params["w_ih_b"] + enc_params["b_b"]).reshape(S, B, 4 * H)
    gx = jnp.stack([gx_f, gx_b], axis=0)                          # (2, S, B, 4H)
    whh = jnp.stack([enc_params["w_hh_f"], enc_params["w_hh_b"]], axis=0)  # (2, H, 4H)

    Tc = _pick_chunk(S)
    nc = S // Tc

    # chunk selector: forward visits chunk t, backward visits chunk nc-1-t
    def chunk_sel(d, t):
        return t + d * (nc - 1 - 2 * t)

    out, h_fin, c_fin = pl.pallas_call(
        _encoder_kernel,
        grid=(2, nc),
        in_specs=[
            pl.BlockSpec((1, Tc, B, 4 * H), lambda d, t: (d, chunk_sel(d, t), 0, 0)),
            pl.BlockSpec((1, H, 4 * H), lambda d, t: (d, 0, 0)),
        ],
        out_specs=(
            pl.BlockSpec((1, Tc, B, H), lambda d, t: (d, chunk_sel(d, t), 0, 0)),
            pl.BlockSpec((1, B, H), lambda d, t: (d, 0, 0)),
            pl.BlockSpec((1, B, H), lambda d, t: (d, 0, 0)),
        ),
        out_shape=(
            jax.ShapeDtypeStruct((2, S, B, H), jnp.float32),
            jax.ShapeDtypeStruct((2, B, H), jnp.float32),
            jax.ShapeDtypeStruct((2, B, H), jnp.float32),
        ),
        scratch_shapes=[pltpu.VMEM((B, H), jnp.float32),
                        pltpu.VMEM((B, H), jnp.float32)],
        compiler_params=pltpu.CompilerParams(
            dimension_semantics=("parallel", "arbitrary"),
            vmem_limit_bytes=32 * 1024 * 1024),
    )(gx, whh)

    enc_out = out[0] + out[1]            # == torch outputs[:,:,:H] + outputs[:,:,H:]
    return enc_out, (h_fin, c_fin)       # hidden handoff: [fwd_final, bwd_final]


# ------------------------------------------------------------------ fused decoder kernel

def _decoder_kernel(trg_ref, tf_ref,                       # SMEM scalar-prefetch refs
                    embed_ref, enc_ref, eproj_ref,
                    wh_ref, v_ref, h_init_ref, c_init_ref,
                    w0e_ref, w0c_ref, w0h_ref, b0_ref,
                    w1a_ref, w1h_ref, b1_ref,
                    wouth_ref, woutc_ref, bout_ref,
                    logp_ref,
                    h0_s, c0_s, h1_s, c1_s, tok_s):
    B, S, H = enc_ref.shape
    V, E = embed_ref.shape
    g = pl.program_id(0)                 # decoding step t = g + 1

    @pl.when(g == 0)
    def _init():
        h0_s[...] = h_init_ref[0]
        c0_s[...] = c_init_ref[0]
        h1_s[...] = h_init_ref[1]
        c1_s[...] = c_init_ref[1]
        tok_s[...] = _select_trg_row(trg_ref, 0, B)        # tok = trg[0]

    # ---- embedding lookup (int32 one-hot -> MXU matmul; exact at this V) -------
    # TODO(synk): at production vocab sizes switch to an SMEM-token row gather with
    # the embedding table HBM-resident (memory_space=pl.ANY) instead of a one-hot dot.
    tok = tok_s[...]                                                     # (B, 1) int32
    iota_v = lax.broadcasted_iota(jnp.int32, (B, V), 1)
    onehot = (iota_v == tok).astype(jnp.float32)                         # (B, V)
    embedded = jnp.dot(onehot, embed_ref[...],
                       preferred_element_type=jnp.float32)               # (B, E)
    # TODO(synk): nn.Dropout / LSTM inter-layer dropout treated as eval-mode identity.

    # ---- Bahdanau attention (encoder-side projection eproj hoisted in glue) ----
    h1 = h1_s[...]                                                       # top-layer hidden
    hproj = jnp.dot(h1, wh_ref[...], preferred_element_type=jnp.float32)     # (B, H)
    energy = jnp.tanh(hproj[:, None, :] + eproj_ref[...])                    # (B, S, H)
    v_b = jnp.broadcast_to(v_ref[...][None], (B, 1, H))                      # (B, 1, H)
    scores = jnp.einsum('bqh,bsh->bqs', v_b, energy,
                        preferred_element_type=jnp.float32)                  # (B, 1, S) MXU
    smax = jnp.max(scores, axis=-1, keepdims=True)
    sexp = jnp.exp(scores - smax)
    attn_w = sexp * pl.reciprocal(jnp.sum(sexp, axis=-1, keepdims=True), approx=True)
    context = jnp.einsum('bqs,bsh->bqh', attn_w, enc_ref[...],
                         preferred_element_type=jnp.float32)[:, 0, :]        # (B, H)

    # ---- decoder LSTM layer 0: input = [embedded, context] (split weights) -----
    h0 = h0_s[...]
    c0 = c0_s[...]
    g0 = (jnp.dot(embedded, w0e_ref[...], preferred_element_type=jnp.float32)
          + jnp.dot(context, w0c_ref[...], preferred_element_type=jnp.float32)
          + jnp.dot(h0, w0h_ref[...], preferred_element_type=jnp.float32)
          + b0_ref[...])
    i0 = jax.nn.sigmoid(g0[:, 0:H])
    f0 = jax.nn.sigmoid(g0[:, H:2 * H])
    n0 = jnp.tanh(g0[:, 2 * H:3 * H])
    o0 = jax.nn.sigmoid(g0[:, 3 * H:4 * H])
    c0n = f0 * c0 + i0 * n0
    h0n = o0 * jnp.tanh(c0n)

    # ---- decoder LSTM layer 1 (split weights, no concat) ------------------------
    c1 = c1_s[...]
    g1 = (jnp.dot(h0n, w1a_ref[...], preferred_element_type=jnp.float32)
          + jnp.dot(h1, w1h_ref[...], preferred_element_type=jnp.float32)
          + b1_ref[...])
    i1 = jax.nn.sigmoid(g1[:, 0:H])
    f1 = jax.nn.sigmoid(g1[:, H:2 * H])
    n1 = jnp.tanh(g1[:, 2 * H:3 * H])
    o1 = jax.nn.sigmoid(g1[:, 3 * H:4 * H])
    c1n = f1 * c1 + i1 * n1
    h1n = o1 * jnp.tanh(c1n)

    # ---- output projection ([h1n, context] via accumulated dots) + log_softmax --
    # TODO(synk): for production V, tile w_out over V with a streaming logsumexp/argmax.
    logits = (jnp.dot(h1n, wouth_ref[...], preferred_element_type=jnp.float32)
              + jnp.dot(context, woutc_ref[...], preferred_element_type=jnp.float32)
              + bout_ref[...])
    lmax = jnp.max(logits, axis=-1, keepdims=True)
    lse = jnp.log(jnp.sum(jnp.exp(logits - lmax), axis=-1, keepdims=True)) + lmax
    logp_ref[0] = logits - lse

    # ---- recurrent state update --------------------------------------------------
    h0_s[...] = h0n
    c0_s[...] = c0n
    h1_s[...] = h1n
    c1_s[...] = c1n

    # ---- next token: teacher forcing (scalar SMEM flag) vs predicated argmax -----
    t_next = g + 1
    flag = tf_ref[t_next]                                               # scalar int32

    @pl.when(flag != 0)
    def _teacher():
        tok_s[...] = _select_trg_row(trg_ref, t_next, B)

    @pl.when(flag == 0)
    def _greedy():
        top1 = jnp.min(jnp.where(logits >= lmax, iota_v, V),
                       axis=-1, keepdims=True)                          # (B, 1) int32 argmax
        tok_s[...] = top1


def decoder_forward(trg, tf_flags, embed_table, enc_bsh, eproj, hidden, dec_params):
    T, B = trg.shape
    _, S, H = enc_bsh.shape
    V, E = embed_table.shape
    h_init, c_init = hidden

    def r2(shp):
        return pl.BlockSpec(shp, lambda g, trg, tf: (0, 0))

    def r3(shp):
        return pl.BlockSpec(shp, lambda g, trg, tf: (0, 0, 0))

    grid_spec = pltpu.PrefetchScalarGridSpec(
        num_scalar_prefetch=2,                       # trg (T,B) + tf flags (T,) in SMEM
        grid=(T - 1,),
        in_specs=[
            r2((V, E)),                 # embedding table, VMEM-resident
            r3((B, S, H)),              # encoder outputs, VMEM-resident
            r3((B, S, H)),              # hoisted enc @ We + b_att, VMEM-resident
            r2((H, H)),                 # attention Wh
            r2((1, H)),                 # attention v
            r3((2, B, H)),              # encoder final h -> decoder init
            r3((2, B, H)),              # encoder final c -> decoder init
            r2((E, 4 * H)),             # layer-0 W for embedded
            r2((H, 4 * H)),             # layer-0 W for context
            r2((H, 4 * H)),             # layer-0 W for hidden
            r2((1, 4 * H)),
            r2((H, 4 * H)),             # layer-1 W for layer-0 output
            r2((H, 4 * H)),             # layer-1 W for hidden
            r2((1, 4 * H)),
            r2((H, V)),                 # output W for hidden
            r2((H, V)),                 # output W for context
            r2((1, V)),
        ],
        out_specs=pl.BlockSpec((1, B, V), lambda g, trg, tf: (g, 0, 0)),
        scratch_shapes=[
            pltpu.VMEM((B, H), jnp.float32),   # h0
            pltpu.VMEM((B, H), jnp.float32),   # c0
            pltpu.VMEM((B, H), jnp.float32),   # h1
            pltpu.VMEM((B, H), jnp.float32),   # c1
            pltpu.VMEM((B, 1), jnp.int32),     # current token
        ],
    )

    logp_seq = pl.pallas_call(
        _decoder_kernel,
        grid_spec=grid_spec,
        out_shape=jax.ShapeDtypeStruct((T - 1, B, V), jnp.float32),
        compiler_params=pltpu.CompilerParams(
            dimension_semantics=("arbitrary",),
            vmem_limit_bytes=32 * 1024 * 1024),
    )(trg, tf_flags,
      embed_table, enc_bsh, eproj,
      dec_params["att"]["wh"], dec_params["att"]["v"],
      h_init, c_init,
      dec_params["w0_e"], dec_params["w0_c"], dec_params["w0_h"], dec_params["b0"],
      dec_params["w1_a"], dec_params["w1_h"], dec_params["b1"],
      dec_params["wout_h"], dec_params["wout_c"], dec_params["b_out"])
    return logp_seq


# ------------------------------------------------------------------ model glue

def seq2seq_forward(src, trg, embed_table, enc_params, dec_params,
                    teacher_forcing_ratio=0.5, tf_key=None):
    S, B = src.shape
    T = trg.shape[0]
    V = dec_params["wout_h"].shape[1]

    enc_out, hidden = encoder_forward(src, embed_table, enc_params)
    enc_bsh = jnp.transpose(enc_out, (1, 0, 2))                        # (B, S, H)
    # Hoisted step-invariant encoder-side attention projection (bias folded in).
    eproj = jnp.einsum('bsh,hk->bsk', enc_bsh, dec_params["att"]["we"]) + dec_params["att"]["b"]

    # TODO(synk): python random.random() teacher forcing replaced by deterministic
    # per-step jax.random flags (same semantics, reproducible).
    if tf_key is None:
        tf_key = jax.random.PRNGKey(1)
    tf_flags = (jax.random.uniform(tf_key, (T,)) < teacher_forcing_ratio).astype(jnp.int32)

    logp_seq = decoder_forward(trg, tf_flags, embed_table, enc_bsh, eproj, hidden, dec_params)
    outputs = jnp.concatenate(
        [jnp.zeros((1, B, V), jnp.float32), logp_seq], axis=0)         # row 0 stays zero
    return outputs                                                     # (T, B, V)


# ------------------------------------------------------------------ param init

def init_params(key, V, E, H):
    keys = iter(jax.random.split(key, 24))

    def u(shape, scale):
        return jax.random.uniform(next(keys), shape, jnp.float32, -scale, scale)

    s_h = 1.0 / math.sqrt(H)
    s_2h = 1.0 / math.sqrt(2 * H)

    embed_table = u((V, E), 0.1)

    # TODO(synk): a single bias per LSTM cell == PyTorch's (b_ih + b_hh) pre-summed.
    # TODO(synk): bf16 weights (f32 accumulation) for production shapes; kept f32 here.
    enc_params = {
        "w_ih_f": u((E, 4 * H), s_h), "w_hh_f": u((H, 4 * H), s_h), "b_f": u((1, 4 * H), s_h),
        "w_ih_b": u((E, 4 * H), s_h), "w_hh_b": u((H, 4 * H), s_h), "b_b": u((1, 4 * H), s_h),
    }

    dec_params = {
        "att": {
            "wh": u((H, H), s_2h),     # hidden-state half of attn.weight^T
            "we": u((H, H), s_2h),     # encoder-output half of attn.weight^T
            "b": u((1, H), s_2h),
            "v": u((1, H), s_h),
        },
        # layer-0 split weights: embedded(E) / context(H) / hidden(H)
        "w0_e": u((E, 4 * H), s_h), "w0_c": u((H, 4 * H), s_h),
        "w0_h": u((H, 4 * H), s_h), "b0": u((1, 4 * H), s_h),
        # layer-1 split weights: layer-0 output(H) / hidden(H)
        "w1_a": u((H, 4 * H), s_h), "w1_h": u((H, 4 * H), s_h), "b1": u((1, 4 * H), s_h),
        # output projection split: hidden(H) / context(H)
        "wout_h": u((H, V), s_2h), "wout_c": u((H, V), s_2h), "b_out": u((1, V), s_2h),
    }
    return embed_table, enc_params, dec_params


# ------------------------------------------------------------------ main

if __name__ == "__main__":
    V, E, H = 32, 16, 32      # vocab, embed_size, hidden_size
    S, B, T = 8, 2, 5         # src len, batch, trg len

    key = jax.random.PRNGKey(0)
    k_par, k_src, k_trg, k_tf = jax.random.split(key, 4)

    embed_table, enc_params, dec_params = init_params(k_par, V, E, H)
    src = jax.random.randint(k_src, (S, B), 0, V, dtype=jnp.int32)
    trg = jax.random.randint(k_trg, (T, B), 0, V, dtype=jnp.int32)

    fwd = jax.jit(lambda s, t, emb, ep, dp, k:
                  seq2seq_forward(s, t, emb, ep, dp, 0.5, k))
    out = fwd(src, trg, embed_table, enc_params, dec_params, k_tf)
    out = jax.block_until_ready(out)

    assert out.shape == (T, B, V), out.shape
    assert bool(jnp.all(jnp.isfinite(out)))
    # rows 1..T-1 are log-softmax distributions: logsumexp == 0
    lse = jax.scipy.special.logsumexp(out[1:], axis=-1)
    assert bool(jnp.allclose(lse, 0.0, atol=1e-4))
    print("KERNEL_OK")
</pallas_src>

<mosaic_0001>
module attributes {stable_mosaic.version = 11 : i64} {
  func.func @_encoder_kernel(%arg0: i32, %arg1: i32, %arg2: memref<1x8x2x128xf32, #tpu.memory_space<vmem>>, %arg3: memref<1x32x128xf32, #tpu.memory_space<vmem>>, %arg4: memref<1x8x2x32xf32, #tpu.memory_space<vmem>>, %arg5: memref<1x2x32xf32, #tpu.memory_space<vmem>>, %arg6: memref<1x2x32xf32, #tpu.memory_space<vmem>>, %arg7: memref<2x32xf32, #tpu.memory_space<vmem>>, %arg8: memref<2x32xf32, #tpu.memory_space<vmem>>) attributes {dimension_semantics = [#tpu.dimension_semantics<parallel>, #tpu.dimension_semantics<arbitrary>], iteration_bounds = array<i64: 2, 1>, scalar_prefetch = 0 : i64, scratch_operands = 2 : i64, tpu.core_type = #tpu.core_type<tc>, window_params = [{transform_indices = @transform_0, window_bounds = array<i64: 1, 8, 2, 128>}, {transform_indices = @transform_1, window_bounds = array<i64: 1, 32, 128>}, {transform_indices = @transform_2, window_bounds = array<i64: 1, 8, 2, 32>}, {transform_indices = @transform_3, window_bounds = array<i64: 1, 2, 32>}, {transform_indices = @transform_4, window_bounds = array<i64: 1, 2, 32>}]} {
    %c0_i32 = arith.constant 0 : i32
    %0 = arith.cmpi eq, %arg1, %c0_i32 : i32
    %1 = arith.extui %0 : i1 to i32
    %c0_i32_0 = arith.constant 0 : i32
    %2 = arith.cmpi ne, %1, %c0_i32_0 : i32
    scf.if %2 {
      %cst_109 = arith.constant 0.000000e+00 : f32
      %316 = vector.broadcast %cst_109 : f32 to vector<2x32xf32>
      %c0_110 = arith.constant 0 : index
      %c0_111 = arith.constant 0 : index
      %317 = vector.load %arg7[%c0_110, %c0_111] : memref<2x32xf32, #tpu.memory_space<vmem>>, vector<2x32xf32>
      tpu.vector_store %arg7[%c0_110, %c0_111], %316 {strides = array<i32>} : memref<2x32xf32, #tpu.memory_space<vmem>>, vector<2x32xf32>,
      %cst_112 = arith.constant 0.000000e+00 : f32
      %318 = vector.broadcast %cst_112 : f32 to vector<2x32xf32>
      %c0_113 = arith.constant 0 : index
      %c0_114 = arith.constant 0 : index
      %319 = vector.load %arg8[%c0_113, %c0_114] : memref<2x32xf32, #tpu.memory_space<vmem>>, vector<2x32xf32>
      tpu.vector_store %arg8[%c0_113, %c0_114], %318 {strides = array<i32>} : memref<2x32xf32, #tpu.memory_space<vmem>>, vector<2x32xf32>,
    } else {
    }
    %c0 = arith.constant 0 : index
    %c0_1 = arith.constant 0 : index
    %c0_2 = arith.constant 0 : index
    %3 = vector.load %arg3[%c0, %c0_1, %c0_2] : memref<1x32x128xf32, #tpu.memory_space<vmem>>, vector<1x32x128xf32>
    %4 = vector.shape_cast %3 : vector<1x32x128xf32> to vector<32x128xf32>
    %c0_3 = arith.constant 0 : index
    %c0_4 = arith.constant 0 : index
    %5 = vector.load %arg7[%c0_3, %c0_4] : memref<2x32xf32, #tpu.memory_space<vmem>>, vector<2x32xf32>
    %c0_5 = arith.constant 0 : index
    %c0_6 = arith.constant 0 : index
    %6 = vector.load %arg8[%c0_5, %c0_6] : memref<2x32xf32, #tpu.memory_space<vmem>>, vector<2x32xf32>
    %c0_i32_7 = arith.constant 0 : i32
    %c2_i32 = arith.constant 2 : i32
    %7 = arith.muli %c2_i32, %c0_i32_7 : i32
    %c7_i32 = arith.constant 7 : i32
    %8 = arith.subi %c7_i32, %7 : i32
    %9 = arith.muli %arg0, %8 : i32
    %10 = arith.addi %c0_i32_7, %9 : i32
    %c0_8 = arith.constant 0 : index
    %11 = arith.index_cast %10 : i32 to index
    %c0_9 = arith.constant 0 : index
    %c0_10 = arith.constant 0 : index
    %12 = vector.load %arg2[%c0_8, %11, %c0_9, %c0_10] : memref<1x8x2x128xf32, #tpu.memory_space<vmem>>, vector<1x1x2x128xf32>
    %13 = vector.shape_cast %12 : vector<1x1x2x128xf32> to vector<2x128xf32>
    %cst = arith.constant dense<0.000000e+00> : vector<2x128xf32>
    %14 = tpu.matmul %5, %4, %cst {dimension_numbers = #tpu.dot_dimension_numbers<[1], [0], [0], [1], [0, 0, 1, 1], [], []>} : vector<2x32xf32>, vector<32x128xf32>, vector<2x128xf32> -> vector<2x128xf32>
    %15 = arith.addf %13, %14 : vector<2x128xf32>
    %16 = vector.extract_strided_slice %15 {offsets = [0, 0], sizes = [2, 32], strides = [1, 1]} : vector<2x128xf32> to vector<2x32xf32>
    %17 = arith.negf %16 : vector<2x32xf32>
    %18 = math.exp %17 : vector<2x32xf32>
    %cst_11 = arith.constant 1.000000e+00 : f32
    %19 = vector.broadcast %cst_11 : f32 to vector<2x32xf32>
    %20 = arith.addf %19, %18 : vector<2x32xf32>
    %21 = arith.divf %19, %20 : vector<2x32xf32>
    %22 = vector.extract_strided_slice %15 {offsets = [0, 32], sizes = [2, 32], strides = [1, 1]} : vector<2x128xf32> to vector<2x32xf32>
    %23 = arith.negf %22 : vector<2x32xf32>
    %24 = math.exp %23 : vector<2x32xf32>
    %cst_12 = arith.constant 1.000000e+00 : f32
    %25 = vector.broadcast %cst_12 : f32 to vector<2x32xf32>
    %26 = arith.addf %25, %24 : vector<2x32xf32>
    %27 = arith.divf %25, %26 : vector<2x32xf32>
    %28 = vector.extract_strided_slice %15 {offsets = [0, 64], sizes = [2, 32], strides = [1, 1]} : vector<2x128xf32> to vector<2x32xf32>
    %29 = math.tanh %28 : vector<2x32xf32>
    %30 = vector.extract_strided_slice %15 {offsets = [0, 96], sizes = [2, 32], strides = [1, 1]} : vector<2x128xf32> to vector<2x32xf32>
    %31 = arith.negf %30 : vector<2x32xf32>
    %32 = math.exp %31 : vector<2x32xf32>
    %cst_13 = arith.constant 1.000000e+00 : f32
    %33 = vector.broadcast %cst_13 : f32 to vector<2x32xf32>
    %34 = arith.addf %33, %32 : vector<2x32xf32>
    %35 = arith.divf %33, %34 : vector<2x32xf32>
    %36 = arith.mulf %27, %6 : vector<2x32xf32>
    %37 = arith.mulf %21, %29 : vector<2x32xf32>
    %38 = arith.addf %36, %37 : vector<2x32xf32>
    %39 = math.tanh %38 : vector<2x32xf32>
    %40 = arith.mulf %35, %39 : vector<2x32xf32>
    %c0_14 = arith.constant 0 : index
    %41 = arith.index_cast %10 : i32 to index
    %c0_15 = arith.constant 0 : index
    %c0_16 = arith.constant 0 : index
    %42 = vector.load %arg4[%c0_14, %41, %c0_15, %c0_16] : memref<1x8x2x32xf32, #tpu.memory_space<vmem>>, vector<1x1x2x32xf32>
    %43 = vector.shape_cast %42 : vector<1x1x2x32xf32> to vector<2x32xf32>
    %44 = vector.shape_cast %40 : vector<2x32xf32> to vector<1x1x2x32xf32>
    tpu.vector_store %arg4[%c0_14, %41, %c0_15, %c0_16], %44 {strides = array<i32>} : memref<1x8x2x32xf32, #tpu.memory_space<vmem>>, vector<1x1x2x32xf32>,
    %c1_i32 = arith.constant 1 : i32
    %c2_i32_17 = arith.constant 2 : i32
    %45 = arith.muli %c2_i32_17, %c1_i32 : i32
    %c7_i32_18 = arith.constant 7 : i32
    %46 = arith.subi %c7_i32_18, %45 : i32
    %47 = arith.muli %arg0, %46 : i32
    %48 = arith.addi %c1_i32, %47 : i32
    %c0_19 = arith.constant 0 : index
    %49 = arith.index_cast %48 : i32 to index
    %c0_20 = arith.constant 0 : index
    %c0_21 = arith.constant 0 : index
    %50 = vector.load %arg2[%c0_19, %49, %c0_20, %c0_21] : memref<1x8x2x128xf32, #tpu.memory_space<vmem>>, vector<1x1x2x128xf32>
    %51 = vector.shape_cast %50 : vector<1x1x2x128xf32> to vector<2x128xf32>
    %cst_22 = arith.constant dense<0.000000e+00> : vector<2x128xf32>
    %52 = tpu.matmul %40, %4, %cst_22 {dimension_numbers = #tpu.dot_dimension_numbers<[1], [0], [0], [1], [0, 0, 1, 1], [], []>} : vector<2x32xf32>, vector<32x128xf32>, vector<2x128xf32> -> vector<2x128xf32>
    %53 = arith.addf %51, %52 : vector<2x128xf32>
    %54 = vector.extract_strided_slice %53 {offsets = [0, 0], sizes = [2, 32], strides = [1, 1]} : vector<2x128xf32> to vector<2x32xf32>
    %55 = arith.negf %54 : vector<2x32xf32>
    %56 = math.exp %55 : vector<2x32xf32>
    %cst_23 = arith.constant 1.000000e+00 : f32
    %57 = vector.broadcast %cst_23 : f32 to vector<2x32xf32>
    %58 = arith.addf %57, %56 : vector<2x32xf32>
    %59 = arith.divf %57, %58 : vector<2x32xf32>
    %60 = vector.extract_strided_slice %53 {offsets = [0, 32], sizes = [2, 32], strides = [1, 1]} : vector<2x128xf32> to vector<2x32xf32>
    %61 = arith.negf %60 : vector<2x32xf32>
    %62 = math.exp %61 : vector<2x32xf32>
    %cst_24 = arith.constant 1.000000e+00 : f32
    %63 = vector.broadcast %cst_24 : f32 to vector<2x32xf32>
    %64 = arith.addf %63, %62 : vector<2x32xf32>
    %65 = arith.divf %63, %64 : vector<2x32xf32>
    %66 = vector.extract_strided_slice %53 {offsets = [0, 64], sizes = [2, 32], strides = [1, 1]} : vector<2x128xf32> to vector<2x32xf32>
    %67 = math.tanh %66 : vector<2x32xf32>
    %68 = vector.extract_strided_slice %53 {offsets = [0, 96], sizes = [2, 32], strides = [1, 1]} : vector<2x128xf32> to vector<2x32xf32>
    %69 = arith.negf %68 : vector<2x32xf32>
    %70 = math.exp %69 : vector<2x32xf32>
    %cst_25 = arith.constant 1.000000e+00 : f32
    %71 = vector.broadcast %cst_25 : f32 to vector<2x32xf32>
    %72 = arith.addf %71, %70 : vector<2x32xf32>
    %73 = arith.divf %71, %72 : vector<2x32xf32>
    %74 = arith.mulf %65, %38 : vector<2x32xf32>
    %75 = arith.mulf %59, %67 : vector<2x32xf32>
    %76 = arith.addf %74, %75 : vector<2x32xf32>
    %77 = math.tanh %76 : vector<2x32xf32>
    %78 = arith.mulf %73, %77 : vector<2x32xf32>
    %c0_26 = arith.constant 0 : index
    %79 = arith.index_cast %48 : i32 to index
    %c0_27 = arith.constant 0 : index
    %c0_28 = arith.constant 0 : index
    %80 = vector.load %arg4[%c0_26, %79, %c0_27, %c0_28] : memref<1x8x2x32xf32, #tpu.memory_space<vmem>>, vector<1x1x2x32xf32>
    %81 = vector.shape_cast %80 : vector<1x1x2x32xf32> to vector<2x32xf32>
    %82 = vector.shape_cast %78 : vector<2x32xf32> to vector<1x1x2x32xf32>
    tpu.vector_store %arg4[%c0_26, %79, %c0_27, %c0_28], %82 {strides = array<i32>} : memref<1x8x2x32xf32, #tpu.memory_space<vmem>>, vector<1x1x2x32xf32>,
    %c2_i32_29 = arith.constant 2 : i32
    %c2_i32_30 = arith.constant 2 : i32
    %83 = arith.muli %c2_i32_30, %c2_i32_29 : i32
    %c7_i32_31 = arith.constant 7 : i32
    %84 = arith.subi %c7_i32_31, %83 : i32
    %85 = arith.muli %arg0, %84 : i32
    %86 = arith.addi %c2_i32_29, %85 : i32
    %c0_32 = arith.constant 0 : index
    %87 = arith.index_cast %86 : i32 to index
    %c0_33 = arith.constant 0 : index
    %c0_34 = arith.constant 0 : index
    %88 = vector.load %arg2[%c0_32, %87, %c0_33, %c0_34] : memref<1x8x2x128xf32, #tpu.memory_space<vmem>>, vector<1x1x2x128xf32>
    %89 = vector.shape_cast %88 : vector<1x1x2x128xf32> to vector<2x128xf32>
    %cst_35 = arith.constant dense<0.000000e+00> : vector<2x128xf32>
    %90 = tpu.matmul %78, %4, %cst_35 {dimension_numbers = #tpu.dot_dimension_numbers<[1], [0], [0], [1], [0, 0, 1, 1], [], []>} : vector<2x32xf32>, vector<32x128xf32>, vector<2x128xf32> -> vector<2x128xf32>
    %91 = arith.addf %89, %90 : vector<2x128xf32>
    %92 = vector.extract_strided_slice %91 {offsets = [0, 0], sizes = [2, 32], strides = [1, 1]} : vector<2x128xf32> to vector<2x32xf32>
    %93 = arith.negf %92 : vector<2x32xf32>
    %94 = math.exp %93 : vector<2x32xf32>
    %cst_36 = arith.constant 1.000000e+00 : f32
    %95 = vector.broadcast %cst_36 : f32 to vector<2x32xf32>
    %96 = arith.addf %95, %94 : vector<2x32xf32>
    %97 = arith.divf %95, %96 : vector<2x32xf32>
    %98 = vector.extract_strided_slice %91 {offsets = [0, 32], sizes = [2, 32], strides = [1, 1]} : vector<2x128xf32> to vector<2x32xf32>
    %99 = arith.negf %98 : vector<2x32xf32>
    %100 = math.exp %99 : vector<2x32xf32>
    %cst_37 = arith.constant 1.000000e+00 : f32
    %101 = vector.broadcast %cst_37 : f32 to vector<2x32xf32>
    %102 = arith.addf %101, %100 : vector<2x32xf32>
    %103 = arith.divf %101, %102 : vector<2x32xf32>
    %104 = vector.extract_strided_slice %91 {offsets = [0, 64], sizes = [2, 32], strides = [1, 1]} : vector<2x128xf32> to vector<2x32xf32>
    %105 = math.tanh %104 : vector<2x32xf32>
    %106 = vector.extract_strided_slice %91 {offsets = [0, 96], sizes = [2, 32], strides = [1, 1]} : vector<2x128xf32> to vector<2x32xf32>
    %107 = arith.negf %106 : vector<2x32xf32>
    %108 = math.exp %107 : vector<2x32xf32>
    %cst_38 = arith.constant 1.000000e+00 : f32
    %109 = vector.broadcast %cst_38 : f32 to vector<2x32xf32>
    %110 = arith.addf %109, %108 : vector<2x32xf32>
    %111 = arith.divf %109, %110 : vector<2x32xf32>
    %112 = arith.mulf %103, %76 : vector<2x32xf32>
    %113 = arith.mulf %97, %105 : vector<2x32xf32>
    %114 = arith.addf %112, %113 : vector<2x32xf32>
    %115 = math.tanh %114 : vector<2x32xf32>
    %116 = arith.mulf %111, %115 : vector<2x32xf32>
    %c0_39 = arith.constant 0 : index
    %117 = arith.index_cast %86 : i32 to index
    %c0_40 = arith.constant 0 : index
    %c0_41 = arith.constant 0 : index
    %118 = vector.load %arg4[%c0_39, %117, %c0_40, %c0_41] : memref<1x8x2x32xf32, #tpu.memory_space<vmem>>, vector<1x1x2x32xf32>
    %119 = vector.shape_cast %118 : vector<1x1x2x32xf32> to vector<2x32xf32>
    %120 = vector.shape_cast %116 : vector<2x32xf32> to vector<1x1x2x32xf32>
    tpu.vector_store %arg4[%c0_39, %117, %c0_40, %c0_41], %120 {strides = array<i32>} : memref<1x8x2x32xf32, #tpu.memory_space<vmem>>, vector<1x1x2x32xf32>,
    %c3_i32 = arith.constant 3 : i32
    %c2_i32_42 = arith.constant 2 : i32
    %121 = arith.muli %c2_i32_42, %c3_i32 : i32
    %c7_i32_43 = arith.constant 7 : i32
    %122 = arith.subi %c7_i32_43, %121 : i32
    %123 = arith.muli %arg0, %122 : i32
    %124 = arith.addi %c3_i32, %123 : i32
    %c0_44 = arith.constant 0 : index
    %125 = arith.index_cast %124 : i32 to index
    %c0_45 = arith.constant 0 : index
    %c0_46 = arith.constant 0 : index
    %126 = vector.load %arg2[%c0_44, %125, %c0_45, %c0_46] : memref<1x8x2x128xf32, #tpu.memory_space<vmem>>, vector<1x1x2x128xf32>
    %127 = vector.shape_cast %126 : vector<1x1x2x128xf32> to vector<2x128xf32>
    %cst_47 = arith.constant dense<0.000000e+00> : vector<2x128xf32>
    %128 = tpu.matmul %116, %4, %cst_47 {dimension_numbers = #tpu.dot_dimension_numbers<[1], [0], [0], [1], [0, 0, 1, 1], [], []>} : vector<2x32xf32>, vector<32x128xf32>, vector<2x128xf32> -> vector<2x128xf32>
    %129 = arith.addf %127, %128 : vector<2x128xf32>
    %130 = vector.extract_strided_slice %129 {offsets = [0, 0], sizes = [2, 32], strides = [1, 1]} : vector<2x128xf32> to vector<2x32xf32>
    %131 = arith.negf %130 : vector<2x32xf32>
    %132 = math.exp %131 : vector<2x32xf32>
    %cst_48 = arith.constant 1.000000e+00 : f32
    %133 = vector.broadcast %cst_48 : f32 to vector<2x32xf32>
    %134 = arith.addf %133, %132 : vector<2x32xf32>
    %135 = arith.divf %133, %134 : vector<2x32xf32>
    %136 = vector.extract_strided_slice %129 {offsets = [0, 32], sizes = [2, 32], strides = [1, 1]} : vector<2x128xf32> to vector<2x32xf32>
    %137 = arith.negf %136 : vector<2x32xf32>
    %138 = math.exp %137 : vector<2x32xf32>
    %cst_49 = arith.constant 1.000000e+00 : f32
    %139 = vector.broadcast %cst_49 : f32 to vector<2x32xf32>
    %140 = arith.addf %139, %138 : vector<2x32xf32>
    %141 = arith.divf %139, %140 : vector<2x32xf32>
    %142 = vector.extract_strided_slice %129 {offsets = [0, 64], sizes = [2, 32], strides = [1, 1]} : vector<2x128xf32> to vector<2x32xf32>
    %143 = math.tanh %142 : vector<2x32xf32>
    %144 = vector.extract_strided_slice %129 {offsets = [0, 96], sizes = [2, 32], strides = [1, 1]} : vector<2x128xf32> to vector<2x32xf32>
    %145 = arith.negf %144 : vector<2x32xf32>
    %146 = math.exp %145 : vector<2x32xf32>
    %cst_50 = arith.constant 1.000000e+00 : f32
    %147 = vector.broadcast %cst_50 : f32 to vector<2x32xf32>
    %148 = arith.addf %147, %146 : vector<2x32xf32>
    %149 = arith.divf %147, %148 : vector<2x32xf32>
    %150 = arith.mulf %141, %114 : vector<2x32xf32>
    %151 = arith.mulf %135, %143 : vector<2x32xf32>
    %152 = arith.addf %150, %151 : vector<2x32xf32>
    %153 = math.tanh %152 : vector<2x32xf32>
    %154 = arith.mulf %149, %153 : vector<2x32xf32>
    %c0_51 = arith.constant 0 : index
    %155 = arith.index_cast %124 : i32 to index
    %c0_52 = arith.constant 0 : index
    %c0_53 = arith.constant 0 : index
    %156 = vector.load %arg4[%c0_51, %155, %c0_52, %c0_53] : memref<1x8x2x32xf32, #tpu.memory_space<vmem>>, vector<1x1x2x32xf32>
    %157 = vector.shape_cast %156 : vector<1x1x2x32xf32> to vector<2x32xf32>
    %158 = vector.shape_cast %154 : vector<2x32xf32> to vector<1x1x2x32xf32>
    tpu.vector_store %arg4[%c0_51, %155, %c0_52, %c0_53], %158 {strides = array<i32>} : memref<1x8x2x32xf32, #tpu.memory_space<vmem>>, vector<1x1x2x32xf32>,
    %c4_i32 = arith.constant 4 : i32
    %c2_i32_54 = arith.constant 2 : i32
    %159 = arith.muli %c2_i32_54, %c4_i32 : i32
    %c7_i32_55 = arith.constant 7 : i32
    %160 = arith.subi %c7_i32_55, %159 : i32
    %161 = arith.muli %arg0, %160 : i32
    %162 = arith.addi %c4_i32, %161 : i32
    %c0_56 = arith.constant 0 : index
    %163 = arith.index_cast %162 : i32 to index
    %c0_57 = arith.constant 0 : index
    %c0_58 = arith.constant 0 : index
    %164 = vector.load %arg2[%c0_56, %163, %c0_57, %c0_58] : memref<1x8x2x128xf32, #tpu.memory_space<vmem>>, vector<1x1x2x128xf32>
    %165 = vector.shape_cast %164 : vector<1x1x2x128xf32> to vector<2x128xf32>
    %cst_59 = arith.constant dense<0.000000e+00> : vector<2x128xf32>
    %166 = tpu.matmul %154, %4, %cst_59 {dimension_numbers = #tpu.dot_dimension_numbers<[1], [0], [0], [1], [0, 0, 1, 1], [], []>} : vector<2x32xf32>, vector<32x128xf32>, vector<2x128xf32> -> vector<2x128xf32>
    %167 = arith.addf %165, %166 : vector<2x128xf32>
    %168 = vector.extract_strided_slice %167 {offsets = [0, 0], sizes = [2, 32], strides = [1, 1]} : vector<2x128xf32> to vector<2x32xf32>
    %169 = arith.negf %168 : vector<2x32xf32>
    %170 = math.exp %169 : vector<2x32xf32>
    %cst_60 = arith.constant 1.000000e+00 : f32
    %171 = vector.broadcast %cst_60 : f32 to vector<2x32xf32>
    %172 = arith.addf %171, %170 : vector<2x32xf32>
    %173 = arith.divf %171, %172 : vector<2x32xf32>
    %174 = vector.extract_strided_slice %167 {offsets = [0, 32], sizes = [2, 32], strides = [1, 1]} : vector<2x128xf32> to vector<2x32xf32>
    %175 = arith.negf %174 : vector<2x32xf32>
    %176 = math.exp %175 : vector<2x32xf32>
    %cst_61 = arith.constant 1.000000e+00 : f32
    %177 = vector.broadcast %cst_61 : f32 to vector<2x32xf32>
    %178 = arith.addf %177, %176 : vector<2x32xf32>
    %179 = arith.divf %177, %178 : vector<2x32xf32>
    %180 = vector.extract_strided_slice %167 {offsets = [0, 64], sizes = [2, 32], strides = [1, 1]} : vector<2x128xf32> to vector<2x32xf32>
    %181 = math.tanh %180 : vector<2x32xf32>
    %182 = vector.extract_strided_slice %167 {offsets = [0, 96], sizes = [2, 32], strides = [1, 1]} : vector<2x128xf32> to vector<2x32xf32>
    %183 = arith.negf %182 : vector<2x32xf32>
    %184 = math.exp %183 : vector<2x32xf32>
    %cst_62 = arith.constant 1.000000e+00 : f32
    %185 = vector.broadcast %cst_62 : f32 to vector<2x32xf32>
    %186 = arith.addf %185, %184 : vector<2x32xf32>
    %187 = arith.divf %185, %186 : vector<2x32xf32>
    %188 = arith.mulf %179, %152 : vector<2x32xf32>
    %189 = arith.mulf %173, %181 : vector<2x32xf32>
    %190 = arith.addf %188, %189 : vector<2x32xf32>
    %191 = math.tanh %190 : vector<2x32xf32>
    %192 = arith.mulf %187, %191 : vector<2x32xf32>
    %c0_63 = arith.constant 0 : index
    %193 = arith.index_cast %162 : i32 to index
    %c0_64 = arith.constant 0 : index
    %c0_65 = arith.constant 0 : index
    %194 = vector.load %arg4[%c0_63, %193, %c0_64, %c0_65] : memref<1x8x2x32xf32, #tpu.memory_space<vmem>>, vector<1x1x2x32xf32>
    %195 = vector.shape_cast %194 : vector<1x1x2x32xf32> to vector<2x32xf32>
    %196 = vector.shape_cast %192 : vector<2x32xf32> to vector<1x1x2x32xf32>
    tpu.vector_store %arg4[%c0_63, %193, %c0_64, %c0_65], %196 {strides = array<i32>} : memref<1x8x2x32xf32, #tpu.memory_space<vmem>>, vector<1x1x2x32xf32>,
    %c5_i32 = arith.constant 5 : i32
    %c2_i32_66 = arith.constant 2 : i32
    %197 = arith.muli %c2_i32_66, %c5_i32 : i32
    %c7_i32_67 = arith.constant 7 : i32
    %198 = arith.subi %c7_i32_67, %197 : i32
    %199 = arith.muli %arg0, %198 : i32
    %200 = arith.addi %c5_i32, %199 : i32
    %c0_68 = arith.constant 0 : index
    %201 = arith.index_cast %200 : i32 to index
    %c0_69 = arith.constant 0 : index
    %c0_70 = arith.constant 0 : index
    %202 = vector.load %arg2[%c0_68, %201, %c0_69, %c0_70] : memref<1x8x2x128xf32, #tpu.memory_space<vmem>>, vector<1x1x2x128xf32>
    %203 = vector.shape_cast %202 : vector<1x1x2x128xf32> to vector<2x128xf32>
    %cst_71 = arith.constant dense<0.000000e+00> : vector<2x128xf32>
    %204 = tpu.matmul %192, %4, %cst_71 {dimension_numbers = #tpu.dot_dimension_numbers<[1], [0], [0], [1], [0, 0, 1, 1], [], []>} : vector<2x32xf32>, vector<32x128xf32>, vector<2x128xf32> -> vector<2x128xf32>
    %205 = arith.addf %203, %204 : vector<2x128xf32>
    %206 = vector.extract_strided_slice %205 {offsets = [0, 0], sizes = [2, 32], strides = [1, 1]} : vector<2x128xf32> to vector<2x32xf32>
    %207 = arith.negf %206 : vector<2x32xf32>
    %208 = math.exp %207 : vector<2x32xf32>
    %cst_72 = arith.constant 1.000000e+00 : f32
    %209 = vector.broadcast %cst_72 : f32 to vector<2x32xf32>
    %210 = arith.addf %209, %208 : vector<2x32xf32>
    %211 = arith.divf %209, %210 : vector<2x32xf32>
    %212 = vector.extract_strided_slice %205 {offsets = [0, 32], sizes = [2, 32], strides = [1, 1]} : vector<2x128xf32> to vector<2x32xf32>
    %213 = arith.negf %212 : vector<2x32xf32>
    %214 = math.exp %213 : vector<2x32xf32>
    %cst_73 = arith.constant 1.000000e+00 : f32
    %215 = vector.broadcast %cst_73 : f32 to vector<2x32xf32>
    %216 = arith.addf %215, %214 : vector<2x32xf32>
    %217 = arith.divf %215, %216 : vector<2x32xf32>
    %218 = vector.extract_strided_slice %205 {offsets = [0, 64], sizes = [2, 32], strides = [1, 1]} : vector<2x128xf32> to vector<2x32xf32>
    %219 = math.tanh %218 : vector<2x32xf32>
    %220 = vector.extract_strided_slice %205 {offsets = [0, 96], sizes = [2, 32], strides = [1, 1]} : vector<2x128xf32> to vector<2x32xf32>
    %221 = arith.negf %220 : vector<2x32xf32>
    %222 = math.exp %221 : vector<2x32xf32>
    %cst_74 = arith.constant 1.000000e+00 : f32
    %223 = vector.broadcast %cst_74 : f32 to vector<2x32xf32>
    %224 = arith.addf %223, %222 : vector<2x32xf32>
    %225 = arith.divf %223, %224 : vector<2x32xf32>
    %226 = arith.mulf %217, %190 : vector<2x32xf32>
    %227 = arith.mulf %211, %219 : vector<2x32xf32>
    %228 = arith.addf %226, %227 : vector<2x32xf32>
    %229 = math.tanh %228 : vector<2x32xf32>
    %230 = arith.mulf %225, %229 : vector<2x32xf32>
    %c0_75 = arith.constant 0 : index
    %231 = arith.index_cast %200 : i32 to index
    %c0_76 = arith.constant 0 : index
    %c0_77 = arith.constant 0 : index
    %232 = vector.load %arg4[%c0_75, %231, %c0_76, %c0_77] : memref<1x8x2x32xf32, #tpu.memory_space<vmem>>, vector<1x1x2x32xf32>
    %233 = vector.shape_cast %232 : vector<1x1x2x32xf32> to vector<2x32xf32>
    %234 = vector.shape_cast %230 : vector<2x32xf32> to vector<1x1x2x32xf32>
    tpu.vector_store %arg4[%c0_75, %231, %c0_76, %c0_77], %234 {strides = array<i32>} : memref<1x8x2x32xf32, #tpu.memory_space<vmem>>, vector<1x1x2x32xf32>,
    %c6_i32 = arith.constant 6 : i32
    %c2_i32_78 = arith.constant 2 : i32
    %235 = arith.muli %c2_i32_78, %c6_i32 : i32
    %c7_i32_79 = arith.constant 7 : i32
    %236 = arith.subi %c7_i32_79, %235 : i32
    %237 = arith.muli %arg0, %236 : i32
    %238 = arith.addi %c6_i32, %237 : i32
    %c0_80 = arith.constant 0 : index
    %239 = arith.index_cast %238 : i32 to index
    %c0_81 = arith.constant 0 : index
    %c0_82 = arith.constant 0 : index
    %240 = vector.load %arg2[%c0_80, %239, %c0_81, %c0_82] : memref<1x8x2x128xf32, #tpu.memory_space<vmem>>, vector<1x1x2x128xf32>
    %241 = vector.shape_cast %240 : vector<1x1x2x128xf32> to vector<2x128xf32>
    %cst_83 = arith.constant dense<0.000000e+00> : vector<2x128xf32>
    %242 = tpu.matmul %230, %4, %cst_83 {dimension_numbers = #tpu.dot_dimension_numbers<[1], [0], [0], [1], [0, 0, 1, 1], [], []>} : vector<2x32xf32>, vector<32x128xf32>, vector<2x128xf32> -> vector<2x128xf32>
    %243 = arith.addf %241, %242 : vector<2x128xf32>
    %244 = vector.extract_strided_slice %243 {offsets = [0, 0], sizes = [2, 32], strides = [1, 1]} : vector<2x128xf32> to vector<2x32xf32>
    %245 = arith.negf %244 : vector<2x32xf32>
    %246 = math.exp %245 : vector<2x32xf32>
    %cst_84 = arith.constant 1.000000e+00 : f32
    %247 = vector.broadcast %cst_84 : f32 to vector<2x32xf32>
    %248 = arith.addf %247, %246 : vector<2x32xf32>
    %249 = arith.divf %247, %248 : vector<2x32xf32>
    %250 = vector.extract_strided_slice %243 {offsets = [0, 32], sizes = [2, 32], strides = [1, 1]} : vector<2x128xf32> to vector<2x32xf32>
    %251 = arith.negf %250 : vector<2x32xf32>
    %252 = math.exp %251 : vector<2x32xf32>
    %cst_85 = arith.constant 1.000000e+00 : f32
    %253 = vector.broadcast %cst_85 : f32 to vector<2x32xf32>
    %254 = arith.addf %253, %252 : vector<2x32xf32>
    %255 = arith.divf %253, %254 : vector<2x32xf32>
    %256 = vector.extract_strided_slice %243 {offsets = [0, 64], sizes = [2, 32], strides = [1, 1]} : vector<2x128xf32> to vector<2x32xf32>
    %257 = math.tanh %256 : vector<2x32xf32>
    %258 = vector.extract_strided_slice %243 {offsets = [0, 96], sizes = [2, 32], strides = [1, 1]} : vector<2x128xf32> to vector<2x32xf32>
    %259 = arith.negf %258 : vector<2x32xf32>
    %260 = math.exp %259 : vector<2x32xf32>
    %cst_86 = arith.constant 1.000000e+00 : f32
    %261 = vector.broadcast %cst_86 : f32 to vector<2x32xf32>
    %262 = arith.addf %261, %260 : vector<2x32xf32>
    %263 = arith.divf %261, %262 : vector<2x32xf32>
    %264 = arith.mulf %255, %228 : vector<2x32xf32>
    %265 = arith.mulf %249, %257 : vector<2x32xf32>
    %266 = arith.addf %264, %265 : vector<2x32xf32>
    %267 = math.tanh %266 : vector<2x32xf32>
    %268 = arith.mulf %263, %267 : vector<2x32xf32>
    %c0_87 = arith.constant 0 : index
    %269 = arith.index_cast %238 : i32 to index
    %c0_88 = arith.constant 0 : index
    %c0_89 = arith.constant 0 : index
    %270 = vector.load %arg4[%c0_87, %269, %c0_88, %c0_89] : memref<1x8x2x32xf32, #tpu.memory_space<vmem>>, vector<1x1x2x32xf32>
    %271 = vector.shape_cast %270 : vector<1x1x2x32xf32> to vector<2x32xf32>
    %272 = vector.shape_cast %268 : vector<2x32xf32> to vector<1x1x2x32xf32>
    tpu.vector_store %arg4[%c0_87, %269, %c0_88, %c0_89], %272 {strides = array<i32>} : memref<1x8x2x32xf32, #tpu.memory_space<vmem>>, vector<1x1x2x32xf32>,
    %c7_i32_90 = arith.constant 7 : i32
    %c2_i32_91 = arith.constant 2 : i32
    %273 = arith.muli %c2_i32_91, %c7_i32_90 : i32
    %c7_i32_92 = arith.constant 7 : i32
    %274 = arith.subi %c7_i32_92, %273 : i32
    %275 = arith.muli %arg0, %274 : i32
    %276 = arith.addi %c7_i32_90, %275 : i32
    %c0_93 = arith.constant 0 : index
    %277 = arith.index_cast %276 : i32 to index
    %c0_94 = arith.constant 0 : index
    %c0_95 = arith.constant 0 : index
    %278 = vector.load %arg2[%c0_93, %277, %c0_94, %c0_95] : memref<1x8x2x128xf32, #tpu.memory_space<vmem>>, vector<1x1x2x128xf32>
    %279 = vector.shape_cast %278 : vector<1x1x2x128xf32> to vector<2x128xf32>
    %cst_96 = arith.constant dense<0.000000e+00> : vector<2x128xf32>
    %280 = tpu.matmul %268, %4, %cst_96 {dimension_numbers = #tpu.dot_dimension_numbers<[1], [0], [0], [1], [0, 0, 1, 1], [], []>} : vector<2x32xf32>, vector<32x128xf32>, vector<2x128xf32> -> vector<2x128xf32>
    %281 = arith.addf %279, %280 : vector<2x128xf32>
    %282 = vector.extract_strided_slice %281 {offsets = [0, 0], sizes = [2, 32], strides = [1, 1]} : vector<2x128xf32> to vector<2x32xf32>
    %283 = arith.negf %282 : vector<2x32xf32>
    %284 = math.exp %283 : vector<2x32xf32>
    %cst_97 = arith.constant 1.000000e+00 : f32
    %285 = vector.broadcast %cst_97 : f32 to vector<2x32xf32>
    %286 = arith.addf %285, %284 : vector<2x32xf32>
    %287 = arith.divf %285, %286 : vector<2x32xf32>
    %288 = vector.extract_strided_slice %281 {offsets = [0, 32], sizes = [2, 32], strides = [1, 1]} : vector<2x128xf32> to vector<2x32xf32>
    %289 = arith.negf %288 : vector<2x32xf32>
    %290 = math.exp %289 : vector<2x32xf32>
    %cst_98 = arith.constant 1.000000e+00 : f32
    %291 = vector.broadcast %cst_98 : f32 to vector<2x32xf32>
    %292 = arith.addf %291, %290 : vector<2x32xf32>
    %293 = arith.divf %291, %292 : vector<2x32xf32>
    %294 = vector.extract_strided_slice %281 {offsets = [0, 64], sizes = [2, 32], strides = [1, 1]} : vector<2x128xf32> to vector<2x32xf32>
    %295 = math.tanh %294 : vector<2x32xf32>
    %296 = vector.extract_strided_slice %281 {offsets = [0, 96], sizes = [2, 32], strides = [1, 1]} : vector<2x128xf32> to vector<2x32xf32>
    %297 = arith.negf %296 : vector<2x32xf32>
    %298 = math.exp %297 : vector<2x32xf32>
    %cst_99 = arith.constant 1.000000e+00 : f32
    %299 = vector.broadcast %cst_99 : f32 to vector<2x32xf32>
    %300 = arith.addf %299, %298 : vector<2x32xf32>
    %301 = arith.divf %299, %300 : vector<2x32xf32>
    %302 = arith.mulf %293, %266 : vector<2x32xf32>
    %303 = arith.mulf %287, %295 : vector<2x32xf32>
    %304 = arith.addf %302, %303 : vector<2x32xf32>
    %305 = math.tanh %304 : vector<2x32xf32>
    %306 = arith.mulf %301, %305 : vector<2x32xf32>
    %c0_100 = arith.constant 0 : index
    %307 = arith.index_cast %276 : i32 to index
    %c0_101 = arith.constant 0 : index
    %c0_102 = arith.constant 0 : index
    %308 = vector.load %arg4[%c0_100, %307, %c0_101, %c0_102] : memref<1x8x2x32xf32, #tpu.memory_space<vmem>>, vector<1x1x2x32xf32>
    %309 = vector.shape_cast %308 : vector<1x1x2x32xf32> to vector<2x32xf32>
    %310 = vector.shape_cast %306 : vector<2x32xf32> to vector<1x1x2x32xf32>
    tpu.vector_store %arg4[%c0_100, %307, %c0_101, %c0_102], %310 {strides = array<i32>} : memref<1x8x2x32xf32, #tpu.memory_space<vmem>>, vector<1x1x2x32xf32>,
    %c8_i32 = arith.constant 8 : i32
    %c0_103 = arith.constant 0 : index
    %c0_104 = arith.constant 0 : index
    %311 = vector.load %arg7[%c0_103, %c0_104] : memref<2x32xf32, #tpu.memory_space<vmem>>, vector<2x32xf32>
    tpu.vector_store %arg7[%c0_103, %c0_104], %306 {strides = array<i32>} : memref<2x32xf32, #tpu.memory_space<vmem>>, vector<2x32xf32>,
    %c0_105 = arith.constant 0 : index
    %c0_106 = arith.constant 0 : index
    %312 = vector.load %arg8[%c0_105, %c0_106] : memref<2x32xf32, #tpu.memory_space<vmem>>, vector<2x32xf32>
    tpu.vector_store %arg8[%c0_105, %c0_106], %304 {strides = array<i32>} : memref<2x32xf32, #tpu.memory_space<vmem>>, vector<2x32xf32>,
    %c0_i32_107 = arith.constant 0 : i32
    %313 = arith.cmpi eq, %arg1, %c0_i32_107 : i32
    %314 = arith.extui %313 : i1 to i32
    %c0_i32_108 = arith.constant 0 : i32
    %315 = arith.cmpi ne, %314, %c0_i32_108 : i32
    scf.if %315 {
      %c0_109 = arith.constant 0 : index
      %c0_110 = arith.constant 0 : index
      %c0_111 = arith.constant 0 : index
      %316 = vector.load %arg5[%c0_109, %c0_110, %c0_111] : memref<1x2x32xf32, #tpu.memory_space<vmem>>, vector<1x2x32xf32>
      %317 = vector.shape_cast %316 : vector<1x2x32xf32> to vector<2x32xf32>
      %318 = vector.shape_cast %306 : vector<2x32xf32> to vector<1x2x32xf32>
      tpu.vector_store %arg5[%c0_109, %c0_110, %c0_111], %318 {strides = array<i32>} : memref<1x2x32xf32, #tpu.memory_space<vmem>>, vector<1x2x32xf32>,
      %c0_112 = arith.constant 0 : index
      %c0_113 = arith.constant 0 : index
      %c0_114 = arith.constant 0 : index
      %319 = vector.load %arg6[%c0_112, %c0_113, %c0_114] : memref<1x2x32xf32, #tpu.memory_space<vmem>>, vector<1x2x32xf32>
      %320 = vector.shape_cast %319 : vector<1x2x32xf32> to vector<2x32xf32>
      %321 = vector.shape_cast %304 : vector<2x32xf32> to vector<1x2x32xf32>
      tpu.vector_store %arg6[%c0_112, %c0_113, %c0_114], %321 {strides = array<i32>} : memref<1x2x32xf32, #tpu.memory_space<vmem>>, vector<1x2x32xf32>,
    } else {
    }
    return
  }
  func.func @transform_0(%arg0: i32, %arg1: i32) -> (i32, i32, i32, i32) {
    %c2_i32 = arith.constant 2 : i32
    %0 = arith.muli %c2_i32, %arg1 : i32
    %c0_i32 = arith.constant 0 : i32
    %1 = arith.subi %c0_i32, %0 : i32
    %2 = arith.muli %arg0, %1 : i32
    %3 = arith.addi %arg1, %2 : i32
    %c0_i32_0 = arith.constant 0 : i32
    %c0_i32_1 = arith.constant 0 : i32
    %c0_i32_2 = arith.constant 0 : i32
    return %arg0, %3, %c0_i32_0, %c0_i32_1 : i32, i32, i32, i32
  }
  func.func @transform_1(%arg0: i32, %arg1: i32) -> (i32, i32, i32) {
    %c0_i32 = arith.constant 0 : i32
    %c0_i32_0 = arith.constant 0 : i32
    %c0_i32_1 = arith.constant 0 : i32
    return %arg0, %c0_i32, %c0_i32_0 : i32, i32, i32
  }
  func.func @transform_2(%arg0: i32, %arg1: i32) -> (i32, i32, i32, i32) {
    %c2_i32 = arith.constant 2 : i32
    %0 = arith.muli %c2_i32, %arg1 : i32
    %c0_i32 = arith.constant 0 : i32
    %1 = arith.subi %c0_i32, %0 : i32
    %2 = arith.muli %arg0, %1 : i32
    %3 = arith.addi %arg1, %2 : i32
    %c0_i32_0 = arith.constant 0 : i32
    %c0_i32_1 = arith.constant 0 : i32
    %c0_i32_2 = arith.constant 0 : i32
    return %arg0, %3, %c0_i32_0, %c0_i32_1 : i32, i32, i32, i32
  }
  func.func @transform_3(%arg0: i32, %arg1: i32) -> (i32, i32, i32) {
    %c0_i32 = arith.constant 0 : i32
    %c0_i32_0 = arith.constant 0 : i32
    %c0_i32_1 = arith.constant 0 : i32
    return %arg0, %c0_i32, %c0_i32_0 : i32, i32, i32
  }
  func.func @transform_4(%arg0: i32, %arg1: i32) -> (i32, i32, i32) {
    %c0_i32 = arith.constant 0 : i32
    %c0_i32_0 = arith.constant 0 : i32
    %c0_i32_1 = arith.constant 0 : i32
    return %arg0, %c0_i32, %c0_i32_0 : i32, i32, i32
  }
}

module attributes {stable_mosaic.version = 11 : i64} {
  func.func @_decoder_kernel(%arg0: i32, %arg1: memref<5x2xi32, #tpu.memory_space<smem>>, %arg2: memref<5xi32, #tpu.memory_space<smem>>, %arg3: memref<32x16xf32, #tpu.memory_space<vmem>>, %arg4: memref<2x8x32xf32, #tpu.memory_space<vmem>>, %arg5: memref<2x8x32xf32, #tpu.memory_space<vmem>>, %arg6: memref<32x32xf32, #tpu.memory_space<vmem>>, %arg7: memref<1x32xf32, #tpu.memory_space<vmem>>, %arg8: memref<2x2x32xf32, #tpu.memory_space<vmem>>, %arg9: memref<2x2x32xf32, #tpu.memory_space<vmem>>, %arg10: memref<16x128xf32, #tpu.memory_space<vmem>>, %arg11: memref<32x128xf32, #tpu.memory_space<vmem>>, %arg12: memref<32x128xf32, #tpu.memory_space<vmem>>, %arg13: memref<1x128xf32, #tpu.memory_space<vmem>>, %arg14: memref<32x128xf32, #tpu.memory_space<vmem>>, %arg15: memref<32x128xf32, #tpu.memory_space<vmem>>, %arg16: memref<1x128xf32, #tpu.memory_space<vmem>>, %arg17: memref<32x32xf32, #tpu.memory_space<vmem>>, %arg18: memref<32x32xf32, #tpu.memory_space<vmem>>, %arg19: memref<1x32xf32, #tpu.memory_space<vmem>>, %arg20: memref<1x2x32xf32, #tpu.memory_space<vmem>>, %arg21: memref<2x32xf32, #tpu.memory_space<vmem>>, %arg22: memref<2x32xf32, #tpu.memory_space<vmem>>, %arg23: memref<2x32xf32, #tpu.memory_space<vmem>>, %arg24: memref<2x32xf32, #tpu.memory_space<vmem>>, %arg25: memref<2x1xi32, #tpu.memory_space<vmem>>) attributes {dimension_semantics = [#tpu.dimension_semantics<arbitrary>], iteration_bounds = array<i64: 4>, scalar_prefetch = 2 : i64, scratch_operands = 5 : i64, tpu.core_type = #tpu.core_type<tc>, window_params = [{pipeline_mode = #tpu.pipeline_mode<synchronous>, transform_indices = @transform_0, window_bounds = array<i64: 32, 16>}, {pipeline_mode = #tpu.pipeline_mode<synchronous>, transform_indices = @transform_1, window_bounds = array<i64: 2, 8, 32>}, {pipeline_mode = #tpu.pipeline_mode<synchronous>, transform_indices = @transform_2, window_bounds = array<i64: 2, 8, 32>}, {pipeline_mode = #tpu.pipeline_mode<synchronous>, transform_indices = @transform_3, window_bounds = array<i64: 32, 32>}, {pipeline_mode = #tpu.pipeline_mode<synchronous>, transform_indices = @transform_4, window_bounds = array<i64: 1, 32>}, {pipeline_mode = #tpu.pipeline_mode<synchronous>, transform_indices = @transform_5, window_bounds = array<i64: 2, 2, 32>}, {pipeline_mode = #tpu.pipeline_mode<synchronous>, transform_indices = @transform_6, window_bounds = array<i64: 2, 2, 32>}, {pipeline_mode = #tpu.pipeline_mode<synchronous>, transform_indices = @transform_7, window_bounds = array<i64: 16, 128>}, {pipeline_mode = #tpu.pipeline_mode<synchronous>, transform_indices = @transform_8, window_bounds = array<i64: 32, 128>}, {pipeline_mode = #tpu.pipeline_mode<synchronous>, transform_indices = @transform_9, window_bounds = array<i64: 32, 128>}, {pipeline_mode = #tpu.pipeline_mode<synchronous>, transform_indices = @transform_10, window_bounds = array<i64: 1, 128>}, {pipeline_mode = #tpu.pipeline_mode<synchronous>, transform_indices = @transform_11, window_bounds = array<i64: 32, 128>}, {pipeline_mode = #tpu.pipeline_mode<synchronous>, transform_indices = @transform_12, window_bounds = array<i64: 32, 128>}, {pipeline_mode = #tpu.pipeline_mode<synchronous>, transform_indices = @transform_13, window_bounds = array<i64: 1, 128>}, {pipeline_mode = #tpu.pipeline_mode<synchronous>, transform_indices = @transform_14, window_bounds = array<i64: 32, 32>}, {pipeline_mode = #tpu.pipeline_mode<synchronous>, transform_indices = @transform_15, window_bounds = array<i64: 32, 32>}, {pipeline_mode = #tpu.pipeline_mode<synchronous>, transform_indices = @transform_16, window_bounds = array<i64: 1, 32>}, {transform_indices = @transform_17, window_bounds = array<i64: 1, 2, 32>}]} {
    %c0_i32 = arith.constant 0 : i32
    %0 = arith.cmpi eq, %arg0, %c0_i32 : i32
    %1 = arith.extui %0 : i1 to i32
    %c0_i32_0 = arith.constant 0 : i32
    %2 = arith.cmpi ne, %1, %c0_i32_0 : i32
    scf.if %2 {
      %c0_77 = arith.constant 0 : index
      %c0_78 = arith.constant 0 : index
      %c0_79 = arith.constant 0 : index
      %144 = vector.load %arg8[%c0_77, %c0_78, %c0_79] : memref<2x2x32xf32, #tpu.memory_space<vmem>>, vector<1x2x32xf32>
      %145 = vector.shape_cast %144 : vector<1x2x32xf32> to vector<2x32xf32>
      %c0_80 = arith.constant 0 : index
      %c0_81 = arith.constant 0 : index
      %146 = vector.load %arg21[%c0_80, %c0_81] : memref<2x32xf32, #tpu.memory_space<vmem>>, vector<2x32xf32>
      tpu.vector_store %arg21[%c0_80, %c0_81], %145 {strides = array<i32>} : memref<2x32xf32, #tpu.memory_space<vmem>>, vector<2x32xf32>,
      %c0_82 = arith.constant 0 : index
      %c0_83 = arith.constant 0 : index
      %c0_84 = arith.constant 0 : index
      %147 = vector.load %arg9[%c0_82, %c0_83, %c0_84] : memref<2x2x32xf32, #tpu.memory_space<vmem>>, vector<1x2x32xf32>
      %148 = vector.shape_cast %147 : vector<1x2x32xf32> to vector<2x32xf32>
      %c0_85 = arith.constant 0 : index
      %c0_86 = arith.constant 0 : index
      %149 = vector.load %arg22[%c0_85, %c0_86] : memref<2x32xf32, #tpu.memory_space<vmem>>, vector<2x32xf32>
      tpu.vector_store %arg22[%c0_85, %c0_86], %148 {strides = array<i32>} : memref<2x32xf32, #tpu.memory_space<vmem>>, vector<2x32xf32>,
      %c1 = arith.constant 1 : index
      %c0_87 = arith.constant 0 : index
      %c0_88 = arith.constant 0 : index
      %150 = vector.load %arg8[%c1, %c0_87, %c0_88] : memref<2x2x32xf32, #tpu.memory_space<vmem>>, vector<1x2x32xf32>
      %151 = vector.shape_cast %150 : vector<1x2x32xf32> to vector<2x32xf32>
      %c0_89 = arith.constant 0 : index
      %c0_90 = arith.constant 0 : index
      %152 = vector.load %arg23[%c0_89, %c0_90] : memref<2x32xf32, #tpu.memory_space<vmem>>, vector<2x32xf32>
      tpu.vector_store %arg23[%c0_89, %c0_90], %151 {strides = array<i32>} : memref<2x32xf32, #tpu.memory_space<vmem>>, vector<2x32xf32>,
      %c1_91 = arith.constant 1 : index
      %c0_92 = arith.constant 0 : index
      %c0_93 = arith.constant 0 : index
      %153 = vector.load %arg9[%c1_91, %c0_92, %c0_93] : memref<2x2x32xf32, #tpu.memory_space<vmem>>, vector<1x2x32xf32>
      %154 = vector.shape_cast %153 : vector<1x2x32xf32> to vector<2x32xf32>
      %c0_94 = arith.constant 0 : index
      %c0_95 = arith.constant 0 : index
      %155 = vector.load %arg24[%c0_94, %c0_95] : memref<2x32xf32, #tpu.memory_space<vmem>>, vector<2x32xf32>
      tpu.vector_store %arg24[%c0_94, %c0_95], %154 {strides = array<i32>} : memref<2x32xf32, #tpu.memory_space<vmem>>, vector<2x32xf32>,
      %156 = tpu.iota {dimensions = array<i32: 0>} : vector<2x1xi32>
      %c0_i32_96 = arith.constant 0 : i32
      %157 = vector.broadcast %c0_i32_96 : i32 to vector<2x1xi32>
      %c0_i32_97 = arith.constant 0 : i32
      %158 = vector.broadcast %c0_i32_97 : i32 to vector<2x1xi32>
      %159 = arith.cmpi eq, %156, %158 : vector<2x1xi32>
      %c0_98 = arith.constant 0 : index
      %c0_99 = arith.constant 0 : index
      %160 = memref.load %arg1[%c0_98, %c0_99] : memref<5x2xi32, #tpu.memory_space<smem>>
      %161 = vector.broadcast %160 : i32 to vector<2x1xi32>
      %162 = arith.select %159, %161, %157 : vector<2x1xi1>, vector<2x1xi32>
      %c1_i32_100 = arith.constant 1 : i32
      %163 = vector.broadcast %c1_i32_100 : i32 to vector<2x1xi32>
      %164 = arith.cmpi eq, %156, %163 : vector<2x1xi32>
      %c0_101 = arith.constant 0 : index
      %c1_102 = arith.constant 1 : index
      %165 = memref.load %arg1[%c0_101, %c1_102] : memref<5x2xi32, #tpu.memory_space<smem>>
      %166 = vector.broadcast %165 : i32 to vector<2x1xi32>
      %167 = arith.select %164, %166, %162 : vector<2x1xi1>, vector<2x1xi32>
      %c0_103 = arith.constant 0 : index
      %c0_104 = arith.constant 0 : index
      %168 = vector.load %arg25[%c0_103, %c0_104] : memref<2x1xi32, #tpu.memory_space<vmem>>, vector<2x1xi32>
      tpu.vector_store %arg25[%c0_103, %c0_104], %167 {strides = array<i32>} : memref<2x1xi32, #tpu.memory_space<vmem>>, vector<2x1xi32>,
    } else {
    }
    %c0 = arith.constant 0 : index
    %c0_1 = arith.constant 0 : index
    %3 = vector.load %arg25[%c0, %c0_1] : memref<2x1xi32, #tpu.memory_space<vmem>>, vector<2x1xi32>
    %4 = tpu.iota {dimensions = array<i32: 1>} : vector<2x32xi32>
    %5 = vector.broadcast %3 : vector<2x1xi32> to vector<2x32xi32>
    %6 = arith.cmpi eq, %4, %5 : vector<2x32xi32>
    %7 = arith.extui %6 : vector<2x32xi1> to vector<2x32xi32>
    %8 = arith.sitofp %7 : vector<2x32xi32> to vector<2x32xf32>
    %c0_2 = arith.constant 0 : index
    %c0_3 = arith.constant 0 : index
    %9 = vector.load %arg3[%c0_2, %c0_3] : memref<32x16xf32, #tpu.memory_space<vmem>>, vector<32x16xf32>
    %cst = arith.constant dense<0.000000e+00> : vector<2x16xf32>
    %10 = tpu.matmul %8, %9, %cst {dimension_numbers = #tpu.dot_dimension_numbers<[1], [0], [0], [1], [0, 0, 1, 1], [], []>} : vector<2x32xf32>, vector<32x16xf32>, vector<2x16xf32> -> vector<2x16xf32>
    %c0_4 = arith.constant 0 : index
    %c0_5 = arith.constant 0 : index
    %11 = vector.load %arg23[%c0_4, %c0_5] : memref<2x32xf32, #tpu.memory_space<vmem>>, vector<2x32xf32>
    %c0_6 = arith.constant 0 : index
    %c0_7 = arith.constant 0 : index
    %12 = vector.load %arg6[%c0_6, %c0_7] : memref<32x32xf32, #tpu.memory_space<vmem>>, vector<32x32xf32>
    %cst_8 = arith.constant dense<0.000000e+00> : vector<2x32xf32>
    %13 = tpu.matmul %11, %12, %cst_8 {dimension_numbers = #tpu.dot_dimension_numbers<[1], [0], [0], [1], [0, 0, 1, 1], [], []>} : vector<2x32xf32>, vector<32x32xf32>, vector<2x32xf32> -> vector<2x32xf32>
    %14 = vector.shape_cast %13 : vector<2x32xf32> to vector<2x1x32xf32>
    %c0_9 = arith.constant 0 : index
    %c0_10 = arith.constant 0 : index
    %c0_11 = arith.constant 0 : index
    %15 = vector.load %arg5[%c0_9, %c0_10, %c0_11] : memref<2x8x32xf32, #tpu.memory_space<vmem>>, vector<2x8x32xf32>
    %16 = vector.broadcast %14 : vector<2x1x32xf32> to vector<2x8x32xf32>
    %17 = arith.addf %16, %15 : vector<2x8x32xf32>
    %18 = math.tanh %17 : vector<2x8x32xf32>
    %c0_12 = arith.constant 0 : index
    %c0_13 = arith.constant 0 : index
    %19 = vector.load %arg7[%c0_12, %c0_13] : memref<1x32xf32, #tpu.memory_space<vmem>>, vector<1x32xf32>
    %20 = vector.shape_cast %19 : vector<1x32xf32> to vector<1x1x32xf32>
    %21 = vector.shape_cast %20 : vector<1x1x32xf32> to vector<1x1x32xf32>
    %22 = vector.broadcast %21 : vector<1x1x32xf32> to vector<2x1x32xf32>
    "tpu.trace_start"() <{level = 10 : i32, message = "bqh,bsh->bqs"}> : () -> ()
    %cst_14 = arith.constant dense<0.000000e+00> : vector<2x1x8xf32>
    %23 = tpu.matmul %22, %18, %cst_14 {dimension_numbers = #tpu.dot_dimension_numbers<[2], [2], [1], [1], [0, 0, 0, 1, 1, 1], [0], [0]>} : vector<2x1x32xf32>, vector<2x8x32xf32>, vector<2x1x8xf32> -> vector<2x1x8xf32>
    "tpu.trace_stop"() : () -> ()
    %cst_15 = arith.constant dense<0xFF800000> : vector<2x1xf32>
    %24 = vector.multi_reduction <maximumf>, %23, %cst_15 [2] : vector<2x1x8xf32> to vector<2x1xf32>
    %25 = vector.shape_cast %24 : vector<2x1xf32> to vector<2x1x1xf32>
    %26 = vector.broadcast %25 : vector<2x1x1xf32> to vector<2x1x8xf32>
    %27 = arith.subf %23, %26 : vector<2x1x8xf32>
    %28 = math.exp %27 : vector<2x1x8xf32>
    %cst_16 = arith.constant dense<0.000000e+00> : vector<2x1xf32>
    %29 = vector.multi_reduction <add>, %28, %cst_16 [2] : vector<2x1x8xf32> to vector<2x1xf32>
    %30 = vector.shape_cast %29 : vector<2x1xf32> to vector<2x1x1xf32>
    %31 = tpu.reciprocal %30 {approx = true} : vector<2x1x1xf32> -> vector<2x1x1xf32>
    %32 = vector.broadcast %31 : vector<2x1x1xf32> to vector<2x1x8xf32>
    %33 = arith.mulf %28, %32 : vector<2x1x8xf32>
    %c0_17 = arith.constant 0 : index
    %c0_18 = arith.constant 0 : index
    %c0_19 = arith.constant 0 : index
    %34 = vector.load %arg4[%c0_17, %c0_18, %c0_19] : memref<2x8x32xf32, #tpu.memory_space<vmem>>, vector<2x8x32xf32>
    "tpu.trace_start"() <{level = 10 : i32, message = "bqs,bsh->bqh"}> : () -> ()
    %cst_20 = arith.constant dense<0.000000e+00> : vector<2x1x32xf32>
    %35 = tpu.matmul %33, %34, %cst_20 {dimension_numbers = #tpu.dot_dimension_numbers<[2], [1], [1], [2], [0, 0, 0, 1, 1, 2], [0], [0]>} : vector<2x1x8xf32>, vector<2x8x32xf32>, vector<2x1x32xf32> -> vector<2x1x32xf32>
    "tpu.trace_stop"() : () -> ()
    %36 = vector.shape_cast %35 : vector<2x1x32xf32> to vector<2x32xf32>
    %c0_21 = arith.constant 0 : index
    %c0_22 = arith.constant 0 : index
    %37 = vector.load %arg21[%c0_21, %c0_22] : memref<2x32xf32, #tpu.memory_space<vmem>>, vector<2x32xf32>
    %c0_23 = arith.constant 0 : index
    %c0_24 = arith.constant 0 : index
    %38 = vector.load %arg22[%c0_23, %c0_24] : memref<2x32xf32, #tpu.memory_space<vmem>>, vector<2x32xf32>
    %c0_25 = arith.constant 0 : index
    %c0_26 = arith.constant 0 : index
    %39 = vector.load %arg10[%c0_25, %c0_26] : memref<16x128xf32, #tpu.memory_space<vmem>>, vector<16x128xf32>
    %cst_27 = arith.constant dense<0.000000e+00> : vector<2x128xf32>
    %40 = tpu.matmul %10, %39, %cst_27 {dimension_numbers = #tpu.dot_dimension_numbers<[1], [0], [0], [1], [0, 0, 1, 1], [], []>} : vector<2x16xf32>, vector<16x128xf32>, vector<2x128xf32> -> vector<2x128xf32>
    %c0_28 = arith.constant 0 : index
    %c0_29 = arith.constant 0 : index
    %41 = vector.load %arg11[%c0_28, %c0_29] : memref<32x128xf32, #tpu.memory_space<vmem>>, vector<32x128xf32>
    %cst_30 = arith.constant dense<0.000000e+00> : vector<2x128xf32>
    %42 = tpu.matmul %36, %41, %cst_30 {dimension_numbers = #tpu.dot_dimension_numbers<[1], [0], [0], [1], [0, 0, 1, 1], [], []>} : vector<2x32xf32>, vector<32x128xf32>, vector<2x128xf32> -> vector<2x128xf32>
    %43 = arith.addf %40, %42 : vector<2x128xf32>
    %c0_31 = arith.constant 0 : index
    %c0_32 = arith.constant 0 : index
    %44 = vector.load %arg12[%c0_31, %c0_32] : memref<32x128xf32, #tpu.memory_space<vmem>>, vector<32x128xf32>
    %cst_33 = arith.constant dense<0.000000e+00> : vector<2x128xf32>
    %45 = tpu.matmul %37, %44, %cst_33 {dimension_numbers = #tpu.dot_dimension_numbers<[1], [0], [0], [1], [0, 0, 1, 1], [], []>} : vector<2x32xf32>, vector<32x128xf32>, vector<2x128xf32> -> vector<2x128xf32>
    %46 = arith.addf %43, %45 : vector<2x128xf32>
    %c0_34 = arith.constant 0 : index
    %c0_35 = arith.constant 0 : index
    %47 = vector.load %arg13[%c0_34, %c0_35] : memref<1x128xf32, #tpu.memory_space<vmem>>, vector<1x128xf32>
    %48 = vector.broadcast %47 : vector<1x128xf32> to vector<2x128xf32>
    %49 = arith.addf %46, %48 : vector<2x128xf32>
    %50 = vector.extract_strided_slice %49 {offsets = [0, 0], sizes = [2, 32], strides = [1, 1]} : vector<2x128xf32> to vector<2x32xf32>
    %51 = arith.negf %50 : vector<2x32xf32>
    %52 = math.exp %51 : vector<2x32xf32>
    %cst_36 = arith.constant 1.000000e+00 : f32
    %53 = vector.broadcast %cst_36 : f32 to vector<2x32xf32>
    %54 = arith.addf %53, %52 : vector<2x32xf32>
    %55 = arith.divf %53, %54 : vector<2x32xf32>
    %56 = vector.extract_strided_slice %49 {offsets = [0, 32], sizes = [2, 32], strides = [1, 1]} : vector<2x128xf32> to vector<2x32xf32>
    %57 = arith.negf %56 : vector<2x32xf32>
    %58 = math.exp %57 : vector<2x32xf32>
    %cst_37 = arith.constant 1.000000e+00 : f32
    %59 = vector.broadcast %cst_37 : f32 to vector<2x32xf32>
    %60 = arith.addf %59, %58 : vector<2x32xf32>
    %61 = arith.divf %59, %60 : vector<2x32xf32>
    %62 = vector.extract_strided_slice %49 {offsets = [0, 64], sizes = [2, 32], strides = [1, 1]} : vector<2x128xf32> to vector<2x32xf32>
    %63 = math.tanh %62 : vector<2x32xf32>
    %64 = vector.extract_strided_slice %49 {offsets = [0, 96], sizes = [2, 32], strides = [1, 1]} : vector<2x128xf32> to vector<2x32xf32>
    %65 = arith.negf %64 : vector<2x32xf32>
    %66 = math.exp %65 : vector<2x32xf32>
    %cst_38 = arith.constant 1.000000e+00 : f32
    %67 = vector.broadcast %cst_38 : f32 to vector<2x32xf32>
    %68 = arith.addf %67, %66 : vector<2x32xf32>
    %69 = arith.divf %67, %68 : vector<2x32xf32>
    %70 = arith.mulf %61, %38 : vector<2x32xf32>
    %71 = arith.mulf %55, %63 : vector<2x32xf32>
    %72 = arith.addf %70, %71 : vector<2x32xf32>
    %73 = math.tanh %72 : vector<2x32xf32>
    %74 = arith.mulf %69, %73 : vector<2x32xf32>
    %c0_39 = arith.constant 0 : index
    %c0_40 = arith.constant 0 : index
    %75 = vector.load %arg24[%c0_39, %c0_40] : memref<2x32xf32, #tpu.memory_space<vmem>>, vector<2x32xf32>
    %c0_41 = arith.constant 0 : index
    %c0_42 = arith.constant 0 : index
    %76 = vector.load %arg14[%c0_41, %c0_42] : memref<32x128xf32, #tpu.memory_space<vmem>>, vector<32x128xf32>
    %cst_43 = arith.constant dense<0.000000e+00> : vector<2x128xf32>
    %77 = tpu.matmul %74, %76, %cst_43 {dimension_numbers = #tpu.dot_dimension_numbers<[1], [0], [0], [1], [0, 0, 1, 1], [], []>} : vector<2x32xf32>, vector<32x128xf32>, vector<2x128xf32> -> vector<2x128xf32>
    %c0_44 = arith.constant 0 : index
    %c0_45 = arith.constant 0 : index
    %78 = vector.load %arg15[%c0_44, %c0_45] : memref<32x128xf32, #tpu.memory_space<vmem>>, vector<32x128xf32>
    %cst_46 = arith.constant dense<0.000000e+00> : vector<2x128xf32>
    %79 = tpu.matmul %11, %78, %cst_46 {dimension_numbers = #tpu.dot_dimension_numbers<[1], [0], [0], [1], [0, 0, 1, 1], [], []>} : vector<2x32xf32>, vector<32x128xf32>, vector<2x128xf32> -> vector<2x128xf32>
    %80 = arith.addf %77, %79 : vector<2x128xf32>
    %c0_47 = arith.constant 0 : index
    %c0_48 = arith.constant 0 : index
    %81 = vector.load %arg16[%c0_47, %c0_48] : memref<1x128xf32, #tpu.memory_space<vmem>>, vector<1x128xf32>
    %82 = vector.broadcast %81 : vector<1x128xf32> to vector<2x128xf32>
    %83 = arith.addf %80, %82 : vector<2x128xf32>
    %84 = vector.extract_strided_slice %83 {offsets = [0, 0], sizes = [2, 32], strides = [1, 1]} : vector<2x128xf32> to vector<2x32xf32>
    %85 = arith.negf %84 : vector<2x32xf32>
    %86 = math.exp %85 : vector<2x32xf32>
    %cst_49 = arith.constant 1.000000e+00 : f32
    %87 = vector.broadcast %cst_49 : f32 to vector<2x32xf32>
    %88 = arith.addf %87, %86 : vector<2x32xf32>
    %89 = arith.divf %87, %88 : vector<2x32xf32>
    %90 = vector.extract_strided_slice %83 {offsets = [0, 32], sizes = [2, 32], strides = [1, 1]} : vector<2x128xf32> to vector<2x32xf32>
    %91 = arith.negf %90 : vector<2x32xf32>
    %92 = math.exp %91 : vector<2x32xf32>
    %cst_50 = arith.constant 1.000000e+00 : f32
    %93 = vector.broadcast %cst_50 : f32 to vector<2x32xf32>
    %94 = arith.addf %93, %92 : vector<2x32xf32>
    %95 = arith.divf %93, %94 : vector<2x32xf32>
    %96 = vector.extract_strided_slice %83 {offsets = [0, 64], sizes = [2, 32], strides = [1, 1]} : vector<2x128xf32> to vector<2x32xf32>
    %97 = math.tanh %96 : vector<2x32xf32>
    %98 = vector.extract_strided_slice %83 {offsets = [0, 96], sizes = [2, 32], strides = [1, 1]} : vector<2x128xf32> to vector<2x32xf32>
    %99 = arith.negf %98 : vector<2x32xf32>
    %100 = math.exp %99 : vector<2x32xf32>
    %cst_51 = arith.constant 1.000000e+00 : f32
    %101 = vector.broadcast %cst_51 : f32 to vector<2x32xf32>
    %102 = arith.addf %101, %100 : vector<2x32xf32>
    %103 = arith.divf %101, %102 : vector<2x32xf32>
    %104 = arith.mulf %95, %75 : vector<2x32xf32>
    %105 = arith.mulf %89, %97 : vector<2x32xf32>
    %106 = arith.addf %104, %105 : vector<2x32xf32>
    %107 = math.tanh %106 : vector<2x32xf32>
    %108 = arith.mulf %103, %107 : vector<2x32xf32>
    %c0_52 = arith.constant 0 : index
    %c0_53 = arith.constant 0 : index
    %109 = vector.load %arg17[%c0_52, %c0_53] : memref<32x32xf32, #tpu.memory_space<vmem>>, vector<32x32xf32>
    %cst_54 = arith.constant dense<0.000000e+00> : vector<2x32xf32>
    %110 = tpu.matmul %108, %109, %cst_54 {dimension_numbers = #tpu.dot_dimension_numbers<[1], [0], [0], [1], [0, 0, 1, 1], [], []>} : vector<2x32xf32>, vector<32x32xf32>, vector<2x32xf32> -> vector<2x32xf32>
    %c0_55 = arith.constant 0 : index
    %c0_56 = arith.constant 0 : index
    %111 = vector.load %arg18[%c0_55, %c0_56] : memref<32x32xf32, #tpu.memory_space<vmem>>, vector<32x32xf32>
    %cst_57 = arith.constant dense<0.000000e+00> : vector<2x32xf32>
    %112 = tpu.matmul %36, %111, %cst_57 {dimension_numbers = #tpu.dot_dimension_numbers<[1], [0], [0], [1], [0, 0, 1, 1], [], []>} : vector<2x32xf32>, vector<32x32xf32>, vector<2x32xf32> -> vector<2x32xf32>
    %113 = arith.addf %110, %112 : vector<2x32xf32>
    %c0_58 = arith.constant 0 : index
    %c0_59 = arith.constant 0 : index
    %114 = vector.load %arg19[%c0_58, %c0_59] : memref<1x32xf32, #tpu.memory_space<vmem>>, vector<1x32xf32>
    %115 = vector.broadcast %114 : vector<1x32xf32> to vector<2x32xf32>
    %116 = arith.addf %113, %115 : vector<2x32xf32>
    %cst_60 = arith.constant dense<0xFF800000> : vector<2xf32>
    %117 = vector.multi_reduction <maximumf>, %116, %cst_60 [1] : vector<2x32xf32> to vector<2xf32>
    %118 = vector.shape_cast %117 : vector<2xf32> to vector<2x1xf32>
    %119 = vector.broadcast %118 : vector<2x1xf32> to vector<2x32xf32>
    %120 = arith.subf %116, %119 : vector<2x32xf32>
    %121 = math.exp %120 : vector<2x32xf32>
    %cst_61 = arith.constant dense<0.000000e+00> : vector<2xf32>
    %122 = vector.multi_reduction <add>, %121, %cst_61 [1] : vector<2x32xf32> to vector<2xf32>
    %123 = vector.shape_cast %122 : vector<2xf32> to vector<2x1xf32>
    %124 = math.log %123 : vector<2x1xf32>
    %125 = arith.addf %124, %118 : vector<2x1xf32>
    %126 = vector.broadcast %125 : vector<2x1xf32> to vector<2x32xf32>
    %127 = arith.subf %116, %126 : vector<2x32xf32>
    %c0_62 = arith.constant 0 : index
    %c0_63 = arith.constant 0 : index
    %c0_64 = arith.constant 0 : index
    %128 = vector.load %arg20[%c0_62, %c0_63, %c0_64] : memref<1x2x32xf32, #tpu.memory_space<vmem>>, vector<1x2x32xf32>
    %129 = vector.shape_cast %128 : vector<1x2x32xf32> to vector<2x32xf32>
    %130 = vector.shape_cast %127 : vector<2x32xf32> to vector<1x2x32xf32>
    tpu.vector_store %arg20[%c0_62, %c0_63, %c0_64], %130 {strides = array<i32>} : memref<1x2x32xf32, #tpu.memory_space<vmem>>, vector<1x2x32xf32>,
    %c0_65 = arith.constant 0 : index
    %c0_66 = arith.constant 0 : index
    %131 = vector.load %arg21[%c0_65, %c0_66] : memref<2x32xf32, #tpu.memory_space<vmem>>, vector<2x32xf32>
    tpu.vector_store %arg21[%c0_65, %c0_66], %74 {strides = array<i32>} : memref<2x32xf32, #tpu.memory_space<vmem>>, vector<2x32xf32>,
    %c0_67 = arith.constant 0 : index
    %c0_68 = arith.constant 0 : index
    %132 = vector.load %arg22[%c0_67, %c0_68] : memref<2x32xf32, #tpu.memory_space<vmem>>, vector<2x32xf32>
    tpu.vector_store %arg22[%c0_67, %c0_68], %72 {strides = array<i32>} : memref<2x32xf32, #tpu.memory_space<vmem>>, vector<2x32xf32>,
    %c0_69 = arith.constant 0 : index
    %c0_70 = arith.constant 0 : index
    %133 = vector.load %arg23[%c0_69, %c0_70] : memref<2x32xf32, #tpu.memory_space<vmem>>, vector<2x32xf32>
    tpu.vector_store %arg23[%c0_69, %c0_70], %108 {strides = array<i32>} : memref<2x32xf32, #tpu.memory_space<vmem>>, vector<2x32xf32>,
    %c0_71 = arith.constant 0 : index
    %c0_72 = arith.constant 0 : index
    %134 = vector.load %arg24[%c0_71, %c0_72] : memref<2x32xf32, #tpu.memory_space<vmem>>, vector<2x32xf32>
    tpu.vector_store %arg24[%c0_71, %c0_72], %106 {strides = array<i32>} : memref<2x32xf32, #tpu.memory_space<vmem>>, vector<2x32xf32>,
    %c1_i32 = arith.constant 1 : i32
    %135 = arith.addi %arg0, %c1_i32 : i32
    %136 = arith.index_cast %135 : i32 to index
    %137 = memref.load %arg2[%136] : memref<5xi32, #tpu.memory_space<smem>>
    %c0_i32_73 = arith.constant 0 : i32
    %138 = arith.cmpi ne, %137, %c0_i32_73 : i32
    %139 = arith.extui %138 : i1 to i32
    %c0_i32_74 = arith.constant 0 : i32
    %140 = arith.cmpi ne, %139, %c0_i32_74 : i32
    scf.if %140 {
      %144 = tpu.iota {dimensions = array<i32: 0>} : vector<2x1xi32>
      %c0_i32_77 = arith.constant 0 : i32
      %145 = vector.broadcast %c0_i32_77 : i32 to vector<2x1xi32>
      %c0_i32_78 = arith.constant 0 : i32
      %146 = vector.broadcast %c0_i32_78 : i32 to vector<2x1xi32>
      %147 = arith.cmpi eq, %144, %146 : vector<2x1xi32>
      %148 = arith.index_cast %135 : i32 to index
      %c0_79 = arith.constant 0 : index
      %149 = memref.load %arg1[%148, %c0_79] : memref<5x2xi32, #tpu.memory_space<smem>>
      %150 = vector.broadcast %149 : i32 to vector<2x1xi32>
      %151 = arith.select %147, %150, %145 : vector<2x1xi1>, vector<2x1xi32>
      %c1_i32_80 = arith.constant 1 : i32
      %152 = vector.broadcast %c1_i32_80 : i32 to vector<2x1xi32>
      %153 = arith.cmpi eq, %144, %152 : vector<2x1xi32>
      %154 = arith.index_cast %135 : i32 to index
      %c1 = arith.constant 1 : index
      %155 = memref.load %arg1[%154, %c1] : memref<5x2xi32, #tpu.memory_space<smem>>
      %156 = vector.broadcast %155 : i32 to vector<2x1xi32>
      %157 = arith.select %153, %156, %151 : vector<2x1xi1>, vector<2x1xi32>
      %c0_81 = arith.constant 0 : index
      %c0_82 = arith.constant 0 : index
      %158 = vector.load %arg25[%c0_81, %c0_82] : memref<2x1xi32, #tpu.memory_space<vmem>>, vector<2x1xi32>
      tpu.vector_store %arg25[%c0_81, %c0_82], %157 {strides = array<i32>} : memref<2x1xi32, #tpu.memory_space<vmem>>, vector<2x1xi32>,
    } else {
    }
    %c0_i32_75 = arith.constant 0 : i32
    %141 = arith.cmpi eq, %137, %c0_i32_75 : i32
    %142 = arith.extui %141 : i1 to i32
    %c0_i32_76 = arith.constant 0 : i32
    %143 = arith.cmpi ne, %142, %c0_i32_76 : i32
    scf.if %143 {
      %144 = vector.broadcast %118 : vector<2x1xf32> to vector<2x32xf32>
      %145 = arith.cmpf oge, %116, %144 : vector<2x32xf32>
      %c32_i32 = arith.constant 32 : i32
      %146 = vector.broadcast %c32_i32 : i32 to vector<2x32xi32>
      %147 = arith.select %145, %4, %146 : vector<2x32xi1>, vector<2x32xi32>
      %cst_77 = arith.constant dense<2147483647> : vector<2xi32>
      %148 = vector.multi_reduction <minsi>, %147, %cst_77 [1] : vector<2x32xi32> to vector<2xi32>
      %149 = vector.shape_cast %148 : vector<2xi32> to vector<2x1xi32>
      %c0_78 = arith.constant 0 : index
      %c0_79 = arith.constant 0 : index
      %150 = vector.load %arg25[%c0_78, %c0_79] : memref<2x1xi32, #tpu.memory_space<vmem>>, vector<2x1xi32>
      tpu.vector_store %arg25[%c0_78, %c0_79], %149 {strides = array<i32>} : memref<2x1xi32, #tpu.memory_space<vmem>>, vector<2x1xi32>,
    } else {
    }
    return
  }
  func.func @transform_0(%arg0: i32, %arg1: memref<5x2xi32, #tpu.memory_space<smem>>, %arg2: memref<5xi32, #tpu.memory_space<smem>>) -> (i32, i32) {
    %c0_i32 = arith.constant 0 : i32
    %c0_i32_0 = arith.constant 0 : i32
    %c0_i32_1 = arith.constant 0 : i32
    return %c0_i32, %c0_i32_0 : i32, i32
  }
  func.func @transform_1(%arg0: i32, %arg1: memref<5x2xi32, #tpu.memory_space<smem>>, %arg2: memref<5xi32, #tpu.memory_space<smem>>) -> (i32, i32, i32) {
    %c0_i32 = arith.constant 0 : i32
    %c0_i32_0 = arith.constant 0 : i32
    %c0_i32_1 = arith.constant 0 : i32
    %c0_i32_2 = arith.constant 0 : i32
    return %c0_i32, %c0_i32_0, %c0_i32_1 : i32, i32, i32
  }
  func.func @transform_2(%arg0: i32, %arg1: memref<5x2xi32, #tpu.memory_space<smem>>, %arg2: memref<5xi32, #tpu.memory_space<smem>>) -> (i32, i32, i32) {
    %c0_i32 = arith.constant 0 : i32
    %c0_i32_0 = arith.constant 0 : i32
    %c0_i32_1 = arith.constant 0 : i32
    %c0_i32_2 = arith.constant 0 : i32
    return %c0_i32, %c0_i32_0, %c0_i32_1 : i32, i32, i32
  }
  func.func @transform_3(%arg0: i32, %arg1: memref<5x2xi32, #tpu.memory_space<smem>>, %arg2: memref<5xi32, #tpu.memory_space<smem>>) -> (i32, i32) {
    %c0_i32 = arith.constant 0 : i32
    %c0_i32_0 = arith.constant 0 : i32
    %c0_i32_1 = arith.constant 0 : i32
    return %c0_i32, %c0_i32_0 : i32, i32
  }
  func.func @transform_4(%arg0: i32, %arg1: memref<5x2xi32, #tpu.memory_space<smem>>, %arg2: memref<5xi32, #tpu.memory_space<smem>>) -> (i32, i32) {
    %c0_i32 = arith.constant 0 : i32
    %c0_i32_0 = arith.constant 0 : i32
    %c0_i32_1 = arith.constant 0 : i32
    return %c0_i32, %c0_i32_0 : i32, i32
  }
  func.func @transform_5(%arg0: i32, %arg1: memref<5x2xi32, #tpu.memory_space<smem>>, %arg2: memref<5xi32, #tpu.memory_space<smem>>) -> (i32, i32, i32) {
    %c0_i32 = arith.constant 0 : i32
    %c0_i32_0 = arith.constant 0 : i32
    %c0_i32_1 = arith.constant 0 : i32
    %c0_i32_2 = arith.constant 0 : i32
    return %c0_i32, %c0_i32_0, %c0_i32_1 : i32, i32, i32
  }
  func.func @transform_6(%arg0: i32, %arg1: memref<5x2xi32, #tpu.memory_space<smem>>, %arg2: memref<5xi32, #tpu.memory_space<smem>>) -> (i32, i32, i32) {
    %c0_i32 = arith.constant 0 : i32
    %c0_i32_0 = arith.constant 0 : i32
    %c0_i32_1 = arith.constant 0 : i32
    %c0_i32_2 = arith.constant 0 : i32
    return %c0_i32, %c0_i32_0, %c0_i32_1 : i32, i32, i32
  }
  func.func @transform_7(%arg0: i32, %arg1: memref<5x2xi32, #tpu.memory_space<smem>>, %arg2: memref<5xi32, #tpu.memory_space<smem>>) -> (i32, i32) {
    %c0_i32 = arith.constant 0 : i32
    %c0_i32_0 = arith.constant 0 : i32
    %c0_i32_1 = arith.constant 0 : i32
    return %c0_i32, %c0_i32_0 : i32, i32
  }
  func.func @transform_8(%arg0: i32, %arg1: memref<5x2xi32, #tpu.memory_space<smem>>, %arg2: memref<5xi32, #tpu.memory_space<smem>>) -> (i32, i32) {
    %c0_i32 = arith.constant 0 : i32
    %c0_i32_0 = arith.constant 0 : i32
    %c0_i32_1 = arith.constant 0 : i32
    return %c0_i32, %c0_i32_0 : i32, i32
  }
  func.func @transform_9(%arg0: i32, %arg1: memref<5x2xi32, #tpu.memory_space<smem>>, %arg2: memref<5xi32, #tpu.memory_space<smem>>) -> (i32, i32) {
    %c0_i32 = arith.constant 0 : i32
    %c0_i32_0 = arith.constant 0 : i32
    %c0_i32_1 = arith.constant 0 : i32
    return %c0_i32, %c0_i32_0 : i32, i32
  }
  func.func @transform_10(%arg0: i32, %arg1: memref<5x2xi32, #tpu.memory_space<smem>>, %arg2: memref<5xi32, #tpu.memory_space<smem>>) -> (i32, i32) {
    %c0_i32 = arith.constant 0 : i32
    %c0_i32_0 = arith.constant 0 : i32
    %c0_i32_1 = arith.constant 0 : i32
    return %c0_i32, %c0_i32_0 : i32, i32
  }
  func.func @transform_11(%arg0: i32, %arg1: memref<5x2xi32, #tpu.memory_space<smem>>, %arg2: memref<5xi32, #tpu.memory_space<smem>>) -> (i32, i32) {
    %c0_i32 = arith.constant 0 : i32
    %c0_i32_0 = arith.constant 0 : i32
    %c0_i32_1 = arith.constant 0 : i32
    return %c0_i32, %c0_i32_0 : i32, i32
  }
  func.func @transform_12(%arg0: i32, %arg1: memref<5x2xi32, #tpu.memory_space<smem>>, %arg2: memref<5xi32, #tpu.memory_space<smem>>) -> (i32, i32) {
    %c0_i32 = arith.constant 0 : i32
    %c0_i32_0 = arith.constant 0 : i32
    %c0_i32_1 = arith.constant 0 : i32
    return %c0_i32, %c0_i32_0 : i32, i32
  }
  func.func @transform_13(%arg0: i32, %arg1: memref<5x2xi32, #tpu.memory_space<smem>>, %arg2: memref<5xi32, #tpu.memory_space<smem>>) -> (i32, i32) {
    %c0_i32 = arith.constant 0 : i32
    %c0_i32_0 = arith.constant 0 : i32
    %c0_i32_1 = arith.constant 0 : i32
    return %c0_i32, %c0_i32_0 : i32, i32
  }
  func.func @transform_14(%arg0: i32, %arg1: memref<5x2xi32, #tpu.memory_space<smem>>, %arg2: memref<5xi32, #tpu.memory_space<smem>>) -> (i32, i32) {
    %c0_i32 = arith.constant 0 : i32
    %c0_i32_0 = arith.constant 0 : i32
    %c0_i32_1 = arith.constant 0 : i32
    return %c0_i32, %c0_i32_0 : i32, i32
  }
  func.func @transform_15(%arg0: i32, %arg1: memref<5x2xi32, #tpu.memory_space<smem>>, %arg2: memref<5xi32, #tpu.memory_space<smem>>) -> (i32, i32) {
    %c0_i32 = arith.constant 0 : i32
    %c0_i32_0 = arith.constant 0 : i32
    %c0_i32_1 = arith.constant 0 : i32
    return %c0_i32, %c0_i32_0 : i32, i32
  }
  func.func @transform_16(%arg0: i32, %arg1: memref<5x2xi32, #tpu.memory_space<smem>>, %arg2: memref<5xi32, #tpu.memory_space<smem>>) -> (i32, i32) {
    %c0_i32 = arith.constant 0 : i32
    %c0_i32_0 = arith.constant 0 : i32
    %c0_i32_1 = arith.constant 0 : i32
    return %c0_i32, %c0_i32_0 : i32, i32
  }
  func.func @transform_17(%arg0: i32, %arg1: memref<5x2xi32, #tpu.memory_space<smem>>, %arg2: memref<5xi32, #tpu.memory_space<smem>>) -> (i32, i32, i32) {
    %c0_i32 = arith.constant 0 : i32
    %c0_i32_0 = arith.constant 0 : i32
    %c0_i32_1 = arith.constant 0 : i32
    return %arg0, %c0_i32, %c0_i32_0 : i32, i32, i32
  }
}

</mosaic_0001>

<llo_original>
// kernel: _lambda_.2
$region0: #{_lambda_.2}
  #allocation0 [shape = 'u32[]', space=smem, size = 0x4, offset = 0x4, fixed_abs, tag = 'smem constant byte address 0x4 - core index']
  #allocation1 [shape = 'u32[144,128]{1,0:T(1,128)}', space=vmem, size = 0x12000, scoped, tag = 'internal scratch']
  #allocation2 [shape = 'f32[2,32]{1,0:T(2,128)}', space=vmem, size = 0x400, scoped, tag = 'scratch operand']
  #allocation3 [shape = 'f32[2,32]{1,0:T(2,128)}', space=vmem, size = 0x400, scoped, tag = 'scratch operand']
  %s0 = inlined_call_operand.vmem [shape: f32[2,8,2,128], index: 0, kind: input, shape index: {}]
  %s1 = inlined_call_operand.vmem [shape: f32[2,32,128], index: 1, kind: input, shape index: {}]
  %s2 = inlined_call_operand.vmem [shape: f32[2,8,2,32], index: 2, kind: output, shape index: {0}]
  %s3 = inlined_call_operand.vmem [shape: f32[2,2,32], index: 3, kind: output, shape index: {1}]
  %s4 = inlined_call_operand.vmem [shape: f32[2,2,32], index: 4, kind: output, shape index: {2}]
  %5 = xla_tuple %s2, %s3, %s4
  %s6 = sld [smem:[#allocation0]]
  $region65: #{_lambda_.2} parent=0
    _
  %s8 = ssub.s32 1, %s6
  %s9 = scalar_select 0, %s8, %s6
  loop: start=0, step=1, limit=4
  $region2: #{_lambda_.2} parent=0 // loop_pre_header
    _
  $region3: #{_lambda_.2} parent=0 // loop_header
    %s11 = sphi 0, %s15
    %p12 = scmp.ge.s32.totalorder %s11, 4
    %s18 = sphi 0, %s30
    %s19 = sphi 0, %s26
    %s20 = sphi 0, %s18
    %s21 = sphi 0, %s19
    %s22 = sphi 0, %s20
    %s23 = sphi 0, %s21
    %s43 = sphi 0, %s45
    %s46 = sphi 0, %s43
    %s47 = sphi 0, %s46
    %s63 = sphi 0, %s47
    %s69 = sphi 0, %s71
    %s72 = sphi 0, %s69
    %s73 = sphi 0, %s72
    %s89 = sphi 0, %s73
    %s105 = sphi 0, %s107
    %s108 = sphi 0, %s105
    %s109 = sphi 0, %s108
    %s125 = sphi 0, %s109
    %s131 = sphi 0, %s133
    %s134 = sphi 0, %s131
    %s135 = sphi 0, %s134
    %s151 = sphi 0, %s135
    %s157 = sphi 0, %s159
    %s160 = sphi 0, %s157
    %s161 = sphi 0, %s160
    %s177 = sphi 0, %s161
  $region4: #{_lambda_.2} parent=0 // loop_header_branch
    %14 = sbr.rel (%p12) target = $region8
  $region5: #{_lambda_.2} parent=0 // loop_body
    %s16 = ssub.s32 %s11, 1
    %s17 = ssub.s32 %s11, 2
    %s24 = sadd.s32 1, %s19
    %p25 = scmp.ge.s32.totalorder %s24, 1
    %s26 = scalar_select %p25, 0, %s24
    %s27 = sadd.s32 1, %s18
    %s28 = scalar_select %p25, %s27, %s18
    %p29 = scmp.ge.s32.totalorder %s28, 2
    %s30 = scalar_select %p29, 0, %s28
    %s31 = smul.u32 %s19, 2
    %s32 = ssub.s32 0, %s31
    %s33 = smul.u32 %s18, %s32
    %s34 = sadd.s32 %s19, %s33
    %s35 = smul.u32 %s26, 2
    %s36 = ssub.s32 0, %s35
    %s37 = smul.u32 %s30, %s36
    %s38 = sadd.s32 %s26, %s37
    %s39 = ssub.s32 %s18, %s30
    %s40 = ssub.s32 %s34, %s38
    %s41 = sor.u32 %s39, %s40
    %p42 = scmp.eq.s32.totalorder %s41, 0
    %s44 = sadd.s32 %s43, 1
    %s45 = scalar_select %p42, %s43, %s44
    %p48 = pneg %p42
    %p49 = scmp.eq.s32.totalorder %s11, 1
    %p50 = por %p48, %p49
    %p51 = scmp.ne.s32.totalorder %s43, %s46
    %p52 = scmp.eq.s32.totalorder %s11, 0
    %p53 = por %p51, %p52
    %p54 = scmp.ne.s32.totalorder %s43, %s46
    %p55 = scmp.eq.s32.totalorder %s16, 1
    %p56 = por %p54, %p55
    %p57 = scmp.ne.s32.totalorder %s46, %s47
    %p58 = scmp.eq.s32.totalorder %s16, 0
    %p59 = por %p57, %p58
    %p60 = scmp.ne.s32.totalorder %s46, %s47
    %p61 = scmp.eq.s32.totalorder %s17, 1
    %p62 = por %p60, %p61
    %p64 = scmp.ne.s32.totalorder %s47, %s63
    %p65 = scmp.eq.s32.totalorder %s17, 0
    %p66 = por %p64, %p65
    %s67 = ssub.s32 %s18, %s30
    %p68 = scmp.eq.s32.totalorder %s67, 0
    %s70 = sadd.s32 %s69, 1
    %s71 = scalar_select %p68, %s69, %s70
    %p74 = pneg %p68
    %p75 = scmp.eq.s32.totalorder %s11, 1
    %p76 = por %p74, %p75
    %p77 = scmp.ne.s32.totalorder %s69, %s72
    %p78 = scmp.eq.s32.totalorder %s11, 0
    %p79 = por %p77, %p78
    %p80 = scmp.ne.s32.totalorder %s69, %s72
    %p81 = scmp.eq.s32.totalorder %s16, 1
    %p82 = por %p80, %p81
    %p83 = scmp.ne.s32.totalorder %s72, %s73
    %p84 = scmp.eq.s32.totalorder %s16, 0
    %p85 = por %p83, %p84
    %p86 = scmp.ne.s32.totalorder %s72, %s73
    %p87 = scmp.eq.s32.totalorder %s17, 1
    %p88 = por %p86, %p87
    %p90 = scmp.ne.s32.totalorder %s73, %s89
    %p91 = scmp.eq.s32.totalorder %s17, 0
    %p92 = por %p90, %p91
    %s93 = smul.u32 %s19, 2
    %s94 = ssub.s32 0, %s93
    %s95 = smul.u32 %s18, %s94
    %s96 = sadd.s32 %s19, %s95
    %s97 = smul.u32 %s26, 2
    %s98 = ssub.s32 0, %s97
    %s99 = smul.u32 %s30, %s98
    %s100 = sadd.s32 %s26, %s99
    %s101 = ssub.s32 %s18, %s30
    %s102 = ssub.s32 %s96, %s100
    %s103 = sor.u32 %s101, %s102
    %p104 = scmp.eq.s32.totalorder %s103, 0
    %s106 = sadd.s32 %s105, 1
    %s107 = scalar_select %p104, %s105, %s106
    %p110 = pneg %p104
    %p111 = scmp.eq.s32.totalorder %s11, 1
    %p112 = por %p110, %p111
    %p113 = scmp.ne.s32.totalorder %s105, %s108
    %p114 = scmp.eq.s32.totalorder %s11, 0
    %p115 = por %p113, %p114
    %p116 = scmp.ne.s32.totalorder %s105, %s108
    %p117 = scmp.eq.s32.totalorder %s16, 1
    %p118 = por %p116, %p117
    %p119 = scmp.ne.s32.totalorder %s108, %s109
    %p120 = scmp.eq.s32.totalorder %s16, 0
    %p121 = por %p119, %p120
    %p122 = scmp.ne.s32.totalorder %s108, %s109
    %p123 = scmp.eq.s32.totalorder %s17, 1
    %p124 = por %p122, %p123
    %p126 = scmp.ne.s32.totalorder %s109, %s125
    %p127 = scmp.eq.s32.totalorder %s17, 0
    %p128 = por %p126, %p127
    %s129 = ssub.s32 %s18, %s30
    %p130 = scmp.eq.s32.totalorder %s129, 0
    %s132 = sadd.s32 %s131, 1
    %s133 = scalar_select %p130, %s131, %s132
    %p136 = pneg %p130
    %p137 = scmp.eq.s32.totalorder %s11, 1
    %p138 = por %p136, %p137
    %p139 = scmp.ne.s32.totalorder %s131, %s134
    %p140 = scmp.eq.s32.totalorder %s11, 0
    %p141 = por %p139, %p140
    %p142 = scmp.ne.s32.totalorder %s131, %s134
    %p143 = scmp.eq.s32.totalorder %s16, 1
    %p144 = por %p142, %p143
    %p145 = scmp.ne.s32.totalorder %s134, %s135
    %p146 = scmp.eq.s32.totalorder %s16, 0
    %p147 = por %p145, %p146
    %p148 = scmp.ne.s32.totalorder %s134, %s135
    %p149 = scmp.eq.s32.totalorder %s17, 1
    %p150 = por %p148, %p149
    %p152 = scmp.ne.s32.totalorder %s135, %s151
    %p153 = scmp.eq.s32.totalorder %s17, 0
    %p154 = por %p152, %p153
    %s155 = ssub.s32 %s18, %s30
    %p156 = scmp.eq.s32.totalorder %s155, 0
    %s158 = sadd.s32 %s157, 1
    %s159 = scalar_select %p156, %s157, %s158
    %p162 = pneg %p156
    %p163 = scmp.eq.s32.totalorder %s11, 1
    %p164 = por %p162, %p163
    %p165 = scmp.ne.s32.totalorder %s157, %s160
    %p166 = scmp.eq.s32.totalorder %s11, 0
    %p167 = por %p165, %p166
    %p168 = scmp.ne.s32.totalorder %s157, %s160
    %p169 = scmp.eq.s32.totalorder %s16, 1
    %p170 = por %p168, %p169
    %p171 = scmp.ne.s32.totalorder %s160, %s161
    %p172 = scmp.eq.s32.totalorder %s16, 0
    %p173 = por %p171, %p172
    %p174 = scmp.ne.s32.totalorder %s160, %s161
    %p175 = scmp.eq.s32.totalorder %s17, 1
    %p176 = por %p174, %p175
    %p178 = scmp.ne.s32.totalorder %s161, %s177
    %p179 = scmp.eq.s32.totalorder %s17, 0
    %p180 = por %p178, %p179
    %p181 = scmp.le.s32.totalorder 1, %s11
    %p182 = scmp.lt.s32.totalorder %s11, 3
    %p183 = pnand %p181, %p182
    %p184 = pneg %p183
    // Predicated region
    $region9: #{_lambda_.2} parent=5 // pred_check
      _
    $region10: #{_lambda_.2} parent=5 // pred_check_branch
      %186 = sbr.rel (%p183) target = $region12
    $region11: #{_lambda_.2} parent=5 // pred_region
      %s187 = ssub.s32 %s11, 1
    $region12: #{_lambda_.2} parent=5 // pred_fallthru
      _
    %p188 = scmp.lt.s32.totalorder %s11, 2
    // Predicated region
    $region13: #{_lambda_.2} parent=5 // pred_check
      %p189 = pneg %p188
    $region14: #{_lambda_.2} parent=5 // pred_check_branch
      %191 = sbr.rel (%p189) target = $region16
    $region15: #{_lambda_.2} parent=5 // pred_region
      // Predicated region
      $region17: #{_lambda_.2} parent=15 // pred_check
        %p192 = pneg %p53
      $region18: #{_lambda_.2} parent=15 // pred_check_branch
        %194 = sbr.rel (%p192) target = $region20
      $region19: #{_lambda_.2} parent=15 // pred_region
        %s195 = smul.u32 %s19, 2
        %s196 = ssub.s32 0, %s195
        %s197 = smul.u32 %s18, %s196
        %s198 = sadd.s32 %s19, %s197
        %s199 = smul.u32 8, %s198
        %p200 = scmp.lt.s32.totalorder %s18, 1
        %s201 = scalar_select %p200, %s18, 1
        %p202 = scmp.lt.s32.totalorder %s199, 7
        %s203 = scalar_select %p202, %s199, 7
        %s204 = smul.addr %s201, 8
        %s205 = sadd.s32 %s203, %s204
        %s206 = smul.addr %s205, 2
        %s207 = scalar_lea.vmem %s0, %s206
        %s208 = smul.u32 %s19, 2
        %s209 = ssub.s32 0, %s208
        %s210 = smul.u32 %s18, %s209
        %s211 = sadd.s32 %s19, %s210
        %s212 = smul.u32 8, %s211
      $region20: #{_lambda_.2} parent=15 // pred_fallthru
        _
      // Predicated region
      $region21: #{_lambda_.2} parent=15 // pred_check
        %p213 = pneg %p79
      $region22: #{_lambda_.2} parent=15 // pred_check_branch
        %215 = sbr.rel (%p213) target = $region24
      $region23: #{_lambda_.2} parent=15 // pred_region
        %p216 = scmp.lt.s32.totalorder %s18, 1
        %s217 = scalar_select %p216, %s18, 1
        %s218 = smul.addr %s217, 4
        %s219 = smul.addr %s218, 8
        %s220 = scalar_lea.vmem %s1, %s219
      $region24: #{_lambda_.2} parent=15 // pred_fallthru
        _
    $region16: #{_lambda_.2} parent=5 // pred_fallthru
      _
    %p221 = scmp.le.s32.totalorder 1, %s11
    %p222 = scmp.lt.s32.totalorder %s11, 3
    %p223 = pnand %p221, %p222
    %p224 = pneg %p223
    // Predicated region
    $region25: #{_lambda_.2} parent=5 // pred_check
      _
    $region26: #{_lambda_.2} parent=5 // pred_check_branch
      %226 = sbr.rel (%p223) target = $region28
    $region27: #{_lambda_.2} parent=5 // pred_region
      %s227 = ssub.s32 %s11, 1
      %s228 = smul.u32 %s21, 2
      %s229 = ssub.s32 0, %s228
      %s230 = smul.u32 %s20, %s229
      %s231 = sadd.s32 %s21, %s230
      %s232 = smul.u32 8, %s231
      %p233 = scmp.lt.s32.totalorder %s20, 1
      %s234 = scalar_select %p233, %s20, 1
      %p235 = scmp.lt.s32.totalorder %s232, 7
      %s236 = scalar_select %p235, %s232, 7
      %s237 = smul.addr %s234, 8
      %s238 = sadd.s32 %s236, %s237
      %s239 = smul.addr %s238, 2
      %s240 = scalar_lea.vmem %s0, %s239
      %p241 = pneg %p59
      %p242 = pneg %p56
      %p243 = scmp.lt.s32.totalorder %s20, 1
      %s244 = scalar_select %p243, %s20, 1
      %s245 = smul.addr %s244, 4
      %s246 = smul.addr %s245, 8
      %s247 = scalar_lea.vmem %s1, %s246
      %p248 = pneg %p85
      %p249 = pneg %p82
      %p250 = pneg %p121
      %p251 = pneg %p118
      %s252 = smul.u32 %s21, 2
      %s253 = ssub.s32 0, %s252
      %s254 = smul.u32 %s20, %s253
      %s255 = sadd.s32 %s21, %s254
      %s256 = smul.u32 8, %s255
      %p257 = scmp.lt.s32.totalorder %s20, 1
      %s258 = scalar_select %p257, %s20, 1
      %p259 = scmp.lt.s32.totalorder %s256, 7
      %s260 = scalar_select %p259, %s256, 7
      %s261 = smul.addr %s258, 8
      %s262 = sadd.s32 %s260, %s261
      %s263 = smul.addr %s262, 2
      %s264 = scalar_lea.vmem %s2, %s263
      %p265 = pneg %p147
      %p266 = pneg %p144
      %p267 = scmp.lt.s32.totalorder %s20, 1
      %s268 = scalar_select %p267, %s20, 1
      %s269 = smul.addr %s268, 2
      %s270 = scalar_lea.vmem %s3, %s269
      %p271 = pneg %p173
      %p272 = pneg %p170
      %p273 = scmp.lt.s32.totalorder %s20, 1
      %s274 = scalar_select %p273, %s20, 1
      %s275 = smul.addr %s274, 2
      %s276 = scalar_lea.vmem %s4, %s275
      %s277 = smul.u32 %s21, 2
      %s278 = ssub.s32 0, %s277
      %s279 = smul.u32 %s20, %s278
      %s280 = sadd.s32 %s21, %s279
      %s281 = smul.u32 8, %s280
      %p282 = scmp.lt.s32.totalorder %s20, 1
      %s283 = scalar_select %p282, %s20, 1
      %p284 = scmp.lt.s32.totalorder %s281, 7
      %s285 = scalar_select %p284, %s281, 7
      %s286 = smul.addr %s283, 8
      %s287 = sadd.s32 %s285, %s286
      %s288 = smul.addr %s287, 2
      %s289 = scalar_lea.vmem %s0, %s288
      %s290 = smul.u32 %s21, 2
      %s291 = ssub.s32 0, %s290
      %s292 = smul.u32 %s20, %s291
      %s293 = sadd.s32 %s21, %s292
      %s294 = smul.u32 8, %s293
      %p295 = scmp.lt.s32.totalorder %s20, 1
      %s296 = scalar_select %p295, %s20, 1
      %s297 = smul.addr %s296, 4
      %s298 = smul.addr %s297, 8
      %s299 = scalar_lea.vmem %s1, %s298
      %s300 = smul.u32 %s21, 2
      %s301 = ssub.s32 0, %s300
      %s302 = smul.u32 %s20, %s301
      %s303 = sadd.s32 %s21, %s302
      %s304 = smul.u32 8, %s303
      %p305 = scmp.lt.s32.totalorder %s20, 1
      %s306 = scalar_select %p305, %s20, 1
      %p307 = scmp.lt.s32.totalorder %s304, 7
      %s308 = scalar_select %p307, %s304, 7
      %s309 = smul.addr %s306, 8
      %s310 = sadd.s32 %s308, %s309
      %s311 = smul.addr %s310, 2
      %s312 = scalar_lea.vmem %s2, %s311
      %s313 = smul.u32 %s21, 2
      %s314 = ssub.s32 0, %s313
      %s315 = smul.u32 %s20, %s314
      %s316 = sadd.s32 %s21, %s315
      %s317 = smul.u32 8, %s316
      %p318 = scmp.lt.s32.totalorder %s20, 1
      %s319 = scalar_select %p318, %s20, 1
      %s320 = smul.addr %s319, 2
      %s321 = scalar_lea.vmem %s3, %s320
      %p322 = scmp.lt.s32.totalorder %s20, 1
      %s323 = scalar_select %p322, %s20, 1
      %s324 = smul.addr %s323, 2
      %s325 = scalar_lea.vmem %s4, %s324
      %p326 = scmp.eq.s32.totalorder %s21, 0
      // Predicated region
      $region29: #{_lambda_.2} parent=27 // pred_check
        %p327 = pneg %p326
      $region30: #{_lambda_.2} parent=27 // pred_check_branch
        %329 = sbr.rel (%p327) target = $region32
      $region31: #{_lambda_.2} parent=27 // pred_region
        %vm330 = vcmask 254976
        %331 = vst.msk [vmem:[#allocation2] sm:$0x3] %vm330, 0.0
        %332 = vst.msk [vmem:[#allocation3] sm:$0x3] %vm330, 0.0
      $region32: #{_lambda_.2} parent=27 // pred_fallthru
        _
      %v333 = vld [vmem:[%s299] sm:$0xff]
      %v334 = vld [vmem:[%s299 + $0x8] sm:$0xff]
      %v335 = vld [vmem:[%s299 + $0x10] sm:$0xff]
      %v336 = vld [vmem:[%s299 + $0x18] sm:$0xff]
      %v337 = vld [vmem:[#allocation2] sm:$0x3]
      %v338 = vld [vmem:[#allocation3] sm:$0x3]
      %s339 = smul.u32 %s20, 7
      %s340 = smul.u32 %s339, 2
      %s341 = scalar_lea.vmem %s289, %s340
      %v342 = vld [vmem:[%s341] sm:$0x3]
      %vm343 = vcmask 261120
      %v345 = vsel %vm343, %v337, 0
      %347 = vmatprep.subr.mxu0 0.0
      %348 = vmatpush1.msra.mxu0 0.0
      %349 = vmatprep.subr.mxu0 0.0
      %350 = vmatpush1.msra.mxu0 0.0
      %351 = vmatprep.subr.mxu0 0.0
      %352 = vmatpush1.msra.mxu0 0.0
      %353 = vmatprep.subr.mxu0 0.0
      %354 = vmatpush1.msra.mxu0 0.0
      %355 = vmatprep.subr.mxu0 0.0
      %356 = vmatpush1.msra.mxu0 0.0
      %357 = vmatprep.subr.mxu0 0.0
      %358 = vmatpush1.msra.mxu0 0.0
      %359 = vmatprep.subr.mxu0 0.0
      %360 = vmatpush1.msra.mxu0 0.0
      %361 = vmatprep.subr.mxu0 0.0
      %362 = vmatpush1.msra.mxu0 0.0
      %363 = vmatprep.subr.mxu0 0.0
      %364 = vmatpush1.msra.mxu0 0.0
      %365 = vmatprep.subr.mxu0 0.0
      %366 = vmatpush1.msra.mxu0 0.0
      %367 = vmatprep.subr.mxu0 0.0
      %368 = vmatpush1.msra.mxu0 0.0
      %369 = vmatprep.subr.mxu0 0.0
      %370 = vmatpush1.msra.mxu0 0.0
      %371 = vmatprep.subr.mxu0 0.0
      %372 = vmatpush1.msra.mxu0 %v336
      %373 = vmatprep.subr.mxu0 0.0
      %374 = vmatpush1.msra.mxu0 %v335
      %375 = vmatprep.subr.mxu0 0.0
      %376 = vmatpush1.msra.mxu0 %v334
      %377 = vmatprep.subr.mxu0 0.0
      %378 = vmatpush1.msra.mxu0 %v333
      %379 = vmatprep.subr.mxu0 0.0
      %380 = vmatpush2.msra.mxu0 0.0
      %381 = vmatprep.subr.mxu0 0.0
      %382 = vmatpush2.msra.mxu0 0.0
      %383 = vmatprep.subr.mxu0 0.0
      %384 = vmatpush2.msra.mxu0 0.0
      %385 = vmatprep.subr.mxu0 0.0
      %386 = vmatpush2.msra.mxu0 0.0
      %387 = vmatprep.subr.mxu0 0.0
      %388 = vmatpush2.msra.mxu0 0.0
      %389 = vmatprep.subr.mxu0 0.0
      %390 = vmatpush2.msra.mxu0 0.0
      %391 = vmatprep.subr.mxu0 0.0
      %392 = vmatpush2.msra.mxu0 0.0
      %393 = vmatprep.subr.mxu0 0.0
      %394 = vmatpush2.msra.mxu0 0.0
      %395 = vmatprep.subr.mxu0 0.0
      %396 = vmatpush2.msra.mxu0 0.0
      %397 = vmatprep.subr.mxu0 0.0
      %398 = vmatpush2.msra.mxu0 0.0
      %399 = vmatprep.subr.mxu0 0.0
      %400 = vmatpush2.msra.mxu0 0.0
      %401 = vmatprep.subr.mxu0 0.0
      %402 = vmatpush2.msra.mxu0 0.0
      %403 = vmatprep.subr.mxu0 0.0
      %404 = vmatpush2.msra.mxu0 0.0
      %405 = vmatprep.subr.mxu0 0.0
      %406 = vmatpush2.msra.mxu0 0.0
      %407 = vmatprep.subr.mxu0 0.0
      %408 = vmatpush2.msra.mxu0 0.0
      %409 = vmatprep.subr.mxu0 0.0
      %410 = vmatpush2.msra.mxu0 0.0
      %411 = vmatprep.mubr.f32.mxu0 0.0
      %412 = vmatmul.mubr.f32.gmra.mxu0 %v345
      %v413 = vpop.f32.mrf.mxu0
      %v414 = vadd.f32 0.0, %v413
      %v415 = vpop.f32.mrf.mxu0
      %416 = vdwg.mxu0
      %v417 = vadd.f32 %v342, %v414
      %v418 = vxor.u32 %v417, 2147483648
      %v419 = vmul.f32 %v418, 1.442695
      %v420 = vpow.pop %v419
      %v421 = vadd.f32 %v420, 1.0
      %v422 = vrcp.pop %v421
      %v423 = vmul.f32 1.0, %v422
      %v424 = vtanh.pop %v417
      %426 = vrot.lane.b32.xlu0 %v338, 32
      %v427 = vpop.permute.xlu0 %426
      %v429 = vmul.f32 %v423, %v427
      %431 = vrot.lane.b32.xlu0 %v424, 64
      %v432 = vpop.permute.xlu0 %431
      %v434 = vmul.f32 %v423, %v432
      %436 = vrot.lane.b32.xlu0 %v434, 32
      %v437 = vpop.permute.xlu0 %436
      %v439 = vadd.f32 %v429, %v437
      %v440 = vtanh.pop %v439
      %442 = vrot.lane.b32.xlu0 %v440, 64
      %v443 = vpop.permute.xlu0 %442
      %v445 = vmul.f32 %v423, %v443
      %447 = vrot.lane.b32.xlu0 %v445, 32
      %v448 = vpop.permute.xlu0 %447
      %s450 = scalar_lea.vmem %s312, %s340
      %vm451 = vcmask 254976
      %452 = vst.msk [vmem:[%s450] sm:$0x3] %vm451, %v448
      %s453 = smul.u32 %s20, 5
      %s454 = sadd.s32 %s453, 1
      %s455 = smul.u32 %s454, 2
      %s456 = scalar_lea.vmem %s289, %s455
      %v457 = vld [vmem:[%s456] sm:$0x3]
      %v458 = vsel %vm343, %v448, 0
      %460 = vmatprep.subr.mxu0 0.0
      %461 = vmatpush1.msra.mxu0 0.0
      %462 = vmatprep.subr.mxu0 0.0
      %463 = vmatpush1.msra.mxu0 0.0
      %464 = vmatprep.subr.mxu0 0.0
      %465 = vmatpush1.msra.mxu0 0.0
      %466 = vmatprep.subr.mxu0 0.0
      %467 = vmatpush1.msra.mxu0 0.0
      %468 = vmatprep.subr.mxu0 0.0
      %469 = vmatpush1.msra.mxu0 0.0
      %470 = vmatprep.subr.mxu0 0.0
      %471 = vmatpush1.msra.mxu0 0.0
      %472 = vmatprep.subr.mxu0 0.0
      %473 = vmatpush1.msra.mxu0 0.0
      %474 = vmatprep.subr.mxu0 0.0
      %475 = vmatpush1.msra.mxu0 0.0
      %476 = vmatprep.subr.mxu0 0.0
      %477 = vmatpush1.msra.mxu0 0.0
      %478 = vmatprep.subr.mxu0 0.0
      %479 = vmatpush1.msra.mxu0 0.0
      %480 = vmatprep.subr.mxu0 0.0
      %481 = vmatpush1.msra.mxu0 0.0
      %482 = vmatprep.subr.mxu0 0.0
      %483 = vmatpush1.msra.mxu0 0.0
      %484 = vmatprep.subr.mxu0 0.0
      %485 = vmatpush1.msra.mxu0 %v336
      %486 = vmatprep.subr.mxu0 0.0
      %487 = vmatpush1.msra.mxu0 %v335
      %488 = vmatprep.subr.mxu0 0.0
      %489 = vmatpush1.msra.mxu0 %v334
      %490 = vmatprep.subr.mxu0 0.0
      %491 = vmatpush1.msra.mxu0 %v333
      %492 = vmatprep.subr.mxu0 0.0
      %493 = vmatpush2.msra.mxu0 0.0
      %494 = vmatprep.subr.mxu0 0.0
      %495 = vmatpush2.msra.mxu0 0.0
      %496 = vmatprep.subr.mxu0 0.0
      %497 = vmatpush2.msra.mxu0 0.0
      %498 = vmatprep.subr.mxu0 0.0
      %499 = vmatpush2.msra.mxu0 0.0
      %500 = vmatprep.subr.mxu0 0.0
      %501 = vmatpush2.msra.mxu0 0.0
      %502 = vmatprep.subr.mxu0 0.0
      %503 = vmatpush2.msra.mxu0 0.0
      %504 = vmatprep.subr.mxu0 0.0
      %505 = vmatpush2.msra.mxu0 0.0
      %506 = vmatprep.subr.mxu0 0.0
      %507 = vmatpush2.msra.mxu0 0.0
      %508 = vmatprep.subr.mxu0 0.0
      %509 = vmatpush2.msra.mxu0 0.0
      %510 = vmatprep.subr.mxu0 0.0
      %511 = vmatpush2.msra.mxu0 0.0
      %512 = vmatprep.subr.mxu0 0.0
      %513 = vmatpush2.msra.mxu0 0.0
      %514 = vmatprep.subr.mxu0 0.0
      %515 = vmatpush2.msra.mxu0 0.0
      %516 = vmatprep.subr.mxu0 0.0
      %517 = vmatpush2.msra.mxu0 0.0
      %518 = vmatprep.subr.mxu0 0.0
      %519 = vmatpush2.msra.mxu0 0.0
      %520 = vmatprep.subr.mxu0 0.0
      %521 = vmatpush2.msra.mxu0 0.0
      %522 = vmatprep.subr.mxu0 0.0
      %523 = vmatpush2.msra.mxu0 0.0
      %524 = vmatprep.mubr.f32.mxu0 0.0
      %525 = vmatmul.mubr.f32.gmra.mxu0 %v458
      %v526 = vpop.f32.mrf.mxu0
      %v527 = vadd.f32 0.0, %v526
      %v528 = vpop.f32.mrf.mxu0
      %529 = vdwg.mxu0
      %v530 = vadd.f32 %v457, %v527
      %v531 = vxor.u32 %v530, 2147483648
      %v532 = vmul.f32 %v531, 1.442695
      %v533 = vpow.pop %v532
      %v534 = vadd.f32 %v533, 1.0
      %v535 = vrcp.pop %v534
      %v536 = vmul.f32 1.0, %v535
      %v537 = vtanh.pop %v530
      %v538 = vmul.f32 %v536, %v439
      %540 = vrot.lane.b32.xlu0 %v537, 64
      %v541 = vpop.permute.xlu0 %540
      %v543 = vmul.f32 %v536, %v541
      %545 = vrot.lane.b32.xlu0 %v543, 32
      %v546 = vpop.permute.xlu0 %545
      %v548 = vadd.f32 %v538, %v546
      %v549 = vtanh.pop %v548
      %551 = vrot.lane.b32.xlu0 %v549, 64
      %v552 = vpop.permute.xlu0 %551
      %v554 = vmul.f32 %v536, %v552
      %556 = vrot.lane.b32.xlu0 %v554, 32
      %v557 = vpop.permute.xlu0 %556
      %s559 = scalar_lea.vmem %s312, %s455
      %560 = vst.msk [vmem:[%s559] sm:$0x3] %vm451, %v557
      %s561 = smul.u32 %s20, 3
      %s562 = sadd.s32 %s561, 2
      %s563 = smul.u32 %s562, 2
      %s564 = scalar_lea.vmem %s289, %s563
      %v565 = vld [vmem:[%s564] sm:$0x3]
      %v566 = vsel %vm343, %v557, 0
      %568 = vmatprep.subr.mxu0 0.0
      %569 = vmatpush1.msra.mxu0 0.0
      %570 = vmatprep.subr.mxu0 0.0
      %571 = vmatpush1.msra.mxu0 0.0
      %572 = vmatprep.subr.mxu0 0.0
      %573 = vmatpush1.msra.mxu0 0.0
      %574 = vmatprep.subr.mxu0 0.0
      %575 = vmatpush1.msra.mxu0 0.0
      %576 = vmatprep.subr.mxu0 0.0
      %577 = vmatpush1.msra.mxu0 0.0
      %578 = vmatprep.subr.mxu0 0.0
      %579 = vmatpush1.msra.mxu0 0.0
      %580 = vmatprep.subr.mxu0 0.0
      %581 = vmatpush1.msra.mxu0 0.0
      %582 = vmatprep.subr.mxu0 0.0
      %583 = vmatpush1.msra.mxu0 0.0
      %584 = vmatprep.subr.mxu0 0.0
      %585 = vmatpush1.msra.mxu0 0.0
      %586 = vmatprep.subr.mxu0 0.0
      %587 = vmatpush1.msra.mxu0 0.0
      %588 = vmatprep.subr.mxu0 0.0
      %589 = vmatpush1.msra.mxu0 0.0
      %590 = vmatprep.subr.mxu0 0.0
      %591 = vmatpush1.msra.mxu0 0.0
      %592 = vmatprep.subr.mxu0 0.0
      %593 = vmatpush1.msra.mxu0 %v336
      %594 = vmatprep.subr.mxu0 0.0
      %595 = vmatpush1.msra.mxu0 %v335
      %596 = vmatprep.subr.mxu0 0.0
      %597 = vmatpush1.msra.mxu0 %v334
      %598 = vmatprep.subr.mxu0 0.0
      %599 = vmatpush1.msra.mxu0 %v333
      %600 = vmatprep.subr.mxu0 0.0
      %601 = vmatpush2.msra.mxu0 0.0
      %602 = vmatprep.subr.mxu0 0.0
      %603 = vmatpush2.msra.mxu0 0.0
      %604 = vmatprep.subr.mxu0 0.0
      %605 = vmatpush2.msra.mxu0 0.0
      %606 = vmatprep.subr.mxu0 0.0
      %607 = vmatpush2.msra.mxu0 0.0
      %608 = vmatprep.subr.mxu0 0.0
      %609 = vmatpush2.msra.mxu0 0.0
      %610 = vmatprep.subr.mxu0 0.0
      %611 = vmatpush2.msra.mxu0 0.0
      %612 = vmatprep.subr.mxu0 0.0
      %613 = vmatpush2.msra.mxu0 0.0
      %614 = vmatprep.subr.mxu0 0.0
      %615 = vmatpush2.msra.mxu0 0.0
      %616 = vmatprep.subr.mxu0 0.0
      %617 = vmatpush2.msra.mxu0 0.0
      %618 = vmatprep.subr.mxu0 0.0
      %619 = vmatpush2.msra.mxu0 0.0
      %620 = vmatprep.subr.mxu0 0.0
      %621 = vmatpush2.msra.mxu0 0.0
      %622 = vmatprep.subr.mxu0 0.0
      %623 = vmatpush2.msra.mxu0 0.0
      %624 = vmatprep.subr.mxu0 0.0
      %625 = vmatpush2.msra.mxu0 0.0
      %626 = vmatprep.subr.mxu0 0.0
      %627 = vmatpush2.msra.mxu0 0.0
      %628 = vmatprep.subr.mxu0 0.0
      %629 = vmatpush2.msra.mxu0 0.0
      %630 = vmatprep.subr.mxu0 0.0
      %631 = vmatpush2.msra.mxu0 0.0
      %632 = vmatprep.mubr.f32.mxu0 0.0
      %633 = vmatmul.mubr.f32.gmra.mxu0 %v566
      %v634 = vpop.f32.mrf.mxu0
      %v635 = vadd.f32 0.0, %v634
      %v636 = vpop.f32.mrf.mxu0
      %637 = vdwg.mxu0
      %v638 = vadd.f32 %v565, %v635
      %v639 = vxor.u32 %v638, 2147483648
      %v640 = vmul.f32 %v639, 1.442695
      %v641 = vpow.pop %v640
      %v642 = vadd.f32 %v641, 1.0
      %v643 = vrcp.pop %v642
      %v644 = vmul.f32 1.0, %v643
      %v645 = vtanh.pop %v638
      %v646 = vmul.f32 %v644, %v548
      %648 = vrot.lane.b32.xlu0 %v645, 64
      %v649 = vpop.permute.xlu0 %648
      %v651 = vmul.f32 %v644, %v649
      %653 = vrot.lane.b32.xlu0 %v651, 32
      %v654 = vpop.permute.xlu0 %653
      %v656 = vadd.f32 %v646, %v654
      %v657 = vtanh.pop %v656
      %659 = vrot.lane.b32.xlu0 %v657, 64
      %v660 = vpop.permute.xlu0 %659
      %v662 = vmul.f32 %v644, %v660
      %664 = vrot.lane.b32.xlu0 %v662, 32
      %v665 = vpop.permute.xlu0 %664
      %s667 = scalar_lea.vmem %s312, %s563
      %668 = vst.msk [vmem:[%s667] sm:$0x3] %vm451, %v665
      %s669 = sadd.s32 %s20, 3
      %s670 = smul.u32 %s669, 2
      %s671 = scalar_lea.vmem %s289, %s670
      %v672 = vld [vmem:[%s671] sm:$0x3]
      %v673 = vsel %vm343, %v665, 0
      %675 = vmatprep.subr.mxu0 0.0
      %676 = vmatpush1.msra.mxu0 0.0
      %677 = vmatprep.subr.mxu0 0.0
      %678 = vmatpush1.msra.mxu0 0.0
      %679 = vmatprep.subr.mxu0 0.0
      %680 = vmatpush1.msra.mxu0 0.0
      %681 = vmatprep.subr.mxu0 0.0
      %682 = vmatpush1.msra.mxu0 0.0
      %683 = vmatprep.subr.mxu0 0.0
      %684 = vmatpush1.msra.mxu0 0.0
      %685 = vmatprep.subr.mxu0 0.0
      %686 = vmatpush1.msra.mxu0 0.0
      %687 = vmatprep.subr.mxu0 0.0
      %688 = vmatpush1.msra.mxu0 0.0
      %689 = vmatprep.subr.mxu0 0.0
      %690 = vmatpush1.msra.mxu0 0.0
      %691 = vmatprep.subr.mxu0 0.0
      %692 = vmatpush1.msra.mxu0 0.0
      %693 = vmatprep.subr.mxu0 0.0
      %694 = vmatpush1.msra.mxu0 0.0
      %695 = vmatprep.subr.mxu0 0.0
      %696 = vmatpush1.msra.mxu0 0.0
      %697 = vmatprep.subr.mxu0 0.0
      %698 = vmatpush1.msra.mxu0 0.0
      %699 = vmatprep.subr.mxu0 0.0
      %700 = vmatpush1.msra.mxu0 %v336
      %701 = vmatprep.subr.mxu0 0.0
      %702 = vmatpush1.msra.mxu0 %v335
      %703 = vmatprep.subr.mxu0 0.0
      %704 = vmatpush1.msra.mxu0 %v334
      %705 = vmatprep.subr.mxu0 0.0
      %706 = vmatpush1.msra.mxu0 %v333
      %707 = vmatprep.subr.mxu0 0.0
      %708 = vmatpush2.msra.mxu0 0.0
      %709 = vmatprep.subr.mxu0 0.0
      %710 = vmatpush2.msra.mxu0 0.0
      %711 = vmatprep.subr.mxu0 0.0
      %712 = vmatpush2.msra.mxu0 0.0
      %713 = vmatprep.subr.mxu0 0.0
      %714 = vmatpush2.msra.mxu0 0.0
      %715 = vmatprep.subr.mxu0 0.0
      %716 = vmatpush2.msra.mxu0 0.0
      %717 = vmatprep.subr.mxu0 0.0
      %718 = vmatpush2.msra.mxu0 0.0
      %719 = vmatprep.subr.mxu0 0.0
      %720 = vmatpush2.msra.mxu0 0.0
      %721 = vmatprep.subr.mxu0 0.0
      %722 = vmatpush2.msra.mxu0 0.0
      %723 = vmatprep.subr.mxu0 0.0
      %724 = vmatpush2.msra.mxu0 0.0
      %725 = vmatprep.subr.mxu0 0.0
      %726 = vmatpush2.msra.mxu0 0.0
      %727 = vmatprep.subr.mxu0 0.0
      %728 = vmatpush2.msra.mxu0 0.0
      %729 = vmatprep.subr.mxu0 0.0
      %730 = vmatpush2.msra.mxu0 0.0
      %731 = vmatprep.subr.mxu0 0.0
      %732 = vmatpush2.msra.mxu0 0.0
      %733 = vmatprep.subr.mxu0 0.0
      %734 = vmatpush2.msra.mxu0 0.0
      %735 = vmatprep.subr.mxu0 0.0
      %736 = vmatpush2.msra.mxu0 0.0
      %737 = vmatprep.subr.mxu0 0.0
      %738 = vmatpush2.msra.mxu0 0.0
      %739 = vmatprep.mubr.f32.mxu0 0.0
      %740 = vmatmul.mubr.f32.gmra.mxu0 %v673
      %v741 = vpop.f32.mrf.mxu0
      %v742 = vadd.f32 0.0, %v741
      %v743 = vpop.f32.mrf.mxu0
      %744 = vdwg.mxu0
      %v745 = vadd.f32 %v672, %v742
      %v746 = vxor.u32 %v745, 2147483648
      %v747 = vmul.f32 %v746, 1.442695
      %v748 = vpow.pop %v747
      %v749 = vadd.f32 %v748, 1.0
      %v750 = vrcp.pop %v749
      %v751 = vmul.f32 1.0, %v750
      %v752 = vtanh.pop %v745
      %v753 = vmul.f32 %v751, %v656
      %755 = vrot.lane.b32.xlu0 %v752, 64
      %v756 = vpop.permute.xlu0 %755
      %v758 = vmul.f32 %v751, %v756
      %760 = vrot.lane.b32.xlu0 %v758, 32
      %v761 = vpop.permute.xlu0 %760
      %v763 = vadd.f32 %v753, %v761
      %v764 = vtanh.pop %v763
      %766 = vrot.lane.b32.xlu0 %v764, 64
      %v767 = vpop.permute.xlu0 %766
      %v769 = vmul.f32 %v751, %v767
      %771 = vrot.lane.b32.xlu0 %v769, 32
      %v772 = vpop.permute.xlu0 %771
      %s774 = scalar_lea.vmem %s312, %s670
      %775 = vst.msk [vmem:[%s774] sm:$0x3] %vm451, %v772
      %s776 = ssub.s32 4, %s20
      %s777 = smul.u32 %s776, 2
      %s778 = scalar_lea.vmem %s289, %s777
      %v779 = vld [vmem:[%s778] sm:$0x3]
      %v780 = vsel %vm343, %v772, 0
      %782 = vmatprep.subr.mxu0 0.0
      %783 = vmatpush1.msra.mxu0 0.0
      %784 = vmatprep.subr.mxu0 0.0
      %785 = vmatpush1.msra.mxu0 0.0
      %786 = vmatprep.subr.mxu0 0.0
      %787 = vmatpush1.msra.mxu0 0.0
      %788 = vmatprep.subr.mxu0 0.0
      %789 = vmatpush1.msra.mxu0 0.0
      %790 = vmatprep.subr.mxu0 0.0
      %791 = vmatpush1.msra.mxu0 0.0
      %792 = vmatprep.subr.mxu0 0.0
      %793 = vmatpush1.msra.mxu0 0.0
      %794 = vmatprep.subr.mxu0 0.0
      %795 = vmatpush1.msra.mxu0 0.0
      %796 = vmatprep.subr.mxu0 0.0
      %797 = vmatpush1.msra.mxu0 0.0
      %798 = vmatprep.subr.mxu0 0.0
      %799 = vmatpush1.msra.mxu0 0.0
      %800 = vmatprep.subr.mxu0 0.0
      %801 = vmatpush1.msra.mxu0 0.0
      %802 = vmatprep.subr.mxu0 0.0
      %803 = vmatpush1.msra.mxu0 0.0
      %804 = vmatprep.subr.mxu0 0.0
      %805 = vmatpush1.msra.mxu0 0.0
      %806 = vmatprep.subr.mxu0 0.0
      %807 = vmatpush1.msra.mxu0 %v336
      %808 = vmatprep.subr.mxu0 0.0
      %809 = vmatpush1.msra.mxu0 %v335
      %810 = vmatprep.subr.mxu0 0.0
      %811 = vmatpush1.msra.mxu0 %v334
      %812 = vmatprep.subr.mxu0 0.0
      %813 = vmatpush1.msra.mxu0 %v333
      %814 = vmatprep.subr.mxu0 0.0
      %815 = vmatpush2.msra.mxu0 0.0
      %816 = vmatprep.subr.mxu0 0.0
      %817 = vmatpush2.msra.mxu0 0.0
      %818 = vmatprep.subr.mxu0 0.0
      %819 = vmatpush2.msra.mxu0 0.0
      %820 = vmatprep.subr.mxu0 0.0
      %821 = vmatpush2.msra.mxu0 0.0
      %822 = vmatprep.subr.mxu0 0.0
      %823 = vmatpush2.msra.mxu0 0.0
      %824 = vmatprep.subr.mxu0 0.0
      %825 = vmatpush2.msra.mxu0 0.0
      %826 = vmatprep.subr.mxu0 0.0
      %827 = vmatpush2.msra.mxu0 0.0
      %828 = vmatprep.subr.mxu0 0.0
      %829 = vmatpush2.msra.mxu0 0.0
      %830 = vmatprep.subr.mxu0 0.0
      %831 = vmatpush2.msra.mxu0 0.0
      %832 = vmatprep.subr.mxu0 0.0
      %833 = vmatpush2.msra.mxu0 0.0
      %834 = vmatprep.subr.mxu0 0.0
      %835 = vmatpush2.msra.mxu0 0.0
      %836 = vmatprep.subr.mxu0 0.0
      %837 = vmatpush2.msra.mxu0 0.0
      %838 = vmatprep.subr.mxu0 0.0
      %839 = vmatpush2.msra.mxu0 0.0
      %840 = vmatprep.subr.mxu0 0.0
      %841 = vmatpush2.msra.mxu0 0.0
      %842 = vmatprep.subr.mxu0 0.0
      %843 = vmatpush2.msra.mxu0 0.0
      %844 = vmatprep.subr.mxu0 0.0
      %845 = vmatpush2.msra.mxu0 0.0
      %846 = vmatprep.mubr.f32.mxu0 0.0
      %847 = vmatmul.mubr.f32.gmra.mxu0 %v780
      %v848 = vpop.f32.mrf.mxu0
      %v849 = vadd.f32 0.0, %v848
      %v850 = vpop.f32.mrf.mxu0
      %851 = vdwg.mxu0
      %v852 = vadd.f32 %v779, %v849
      %v853 = vxor.u32 %v852, 2147483648
      %v854 = vmul.f32 %v853, 1.442695
      %v855 = vpow.pop %v854
      %v856 = vadd.f32 %v855, 1.0
      %v857 = vrcp.pop %v856
      %v858 = vmul.f32 1.0, %v857
      %v859 = vtanh.pop %v852
      %v860 = vmul.f32 %v858, %v763
      %862 = vrot.lane.b32.xlu0 %v859, 64
      %v863 = vpop.permute.xlu0 %862
      %v865 = vmul.f32 %v858, %v863
      %867 = vrot.lane.b32.xlu0 %v865, 32
      %v868 = vpop.permute.xlu0 %867
      %v870 = vadd.f32 %v860, %v868
      %v871 = vtanh.pop %v870
      %873 = vrot.lane.b32.xlu0 %v871, 64
      %v874 = vpop.permute.xlu0 %873
      %v876 = vmul.f32 %v858, %v874
      %878 = vrot.lane.b32.xlu0 %v876, 32
      %v879 = vpop.permute.xlu0 %878
      %s881 = scalar_lea.vmem %s312, %s777
      %882 = vst.msk [vmem:[%s881] sm:$0x3] %vm451, %v879
      %s883 = smul.u32 %s20, 4294967293
      %s884 = sadd.s32 %s883, 5
      %s885 = smul.u32 %s884, 2
      %s886 = scalar_lea.vmem %s289, %s885
      %v887 = vld [vmem:[%s886] sm:$0x3]
      %v888 = vsel %vm343, %v879, 0
      %890 = vmatprep.subr.mxu0 0.0
      %891 = vmatpush1.msra.mxu0 0.0
      %892 = vmatprep.subr.mxu0 0.0
      %893 = vmatpush1.msra.mxu0 0.0
      %894 = vmatprep.subr.mxu0 0.0
      %895 = vmatpush1.msra.mxu0 0.0
      %896 = vmatprep.subr.mxu0 0.0
      %897 = vmatpush1.msra.mxu0 0.0
      %898 = vmatprep.subr.mxu0 0.0
      %899 = vmatpush1.msra.mxu0 0.0
      %900 = vmatprep.subr.mxu0 0.0
      %901 = vmatpush1.msra.mxu0 0.0
      %902 = vmatprep.subr.mxu0 0.0
      %903 = vmatpush1.msra.mxu0 0.0
      %904 = vmatprep.subr.mxu0 0.0
      %905 = vmatpush1.msra.mxu0 0.0
      %906 = vmatprep.subr.mxu0 0.0
      %907 = vmatpush1.msra.mxu0 0.0
      %908 = vmatprep.subr.mxu0 0.0
      %909 = vmatpush1.msra.mxu0 0.0
      %910 = vmatprep.subr.mxu0 0.0
      %911 = vmatpush1.msra.mxu0 0.0
      %912 = vmatprep.subr.mxu0 0.0
      %913 = vmatpush1.msra.mxu0 0.0
      %914 = vmatprep.subr.mxu0 0.0
      %915 = vmatpush1.msra.mxu0 %v336
      %916 = vmatprep.subr.mxu0 0.0
      %917 = vmatpush1.msra.mxu0 %v335
      %918 = vmatprep.subr.mxu0 0.0
      %919 = vmatpush1.msra.mxu0 %v334
      %920 = vmatprep.subr.mxu0 0.0
      %921 = vmatpush1.msra.mxu0 %v333
      %922 = vmatprep.subr.mxu0 0.0
      %923 = vmatpush2.msra.mxu0 0.0
      %924 = vmatprep.subr.mxu0 0.0
      %925 = vmatpush2.msra.mxu0 0.0
      %926 = vmatprep.subr.mxu0 0.0
      %927 = vmatpush2.msra.mxu0 0.0
      %928 = vmatprep.subr.mxu0 0.0
      %929 = vmatpush2.msra.mxu0 0.0
      %930 = vmatprep.subr.mxu0 0.0
      %931 = vmatpush2.msra.mxu0 0.0
      %932 = vmatprep.subr.mxu0 0.0
      %933 = vmatpush2.msra.mxu0 0.0
      %934 = vmatprep.subr.mxu0 0.0
      %935 = vmatpush2.msra.mxu0 0.0
      %936 = vmatprep.subr.mxu0 0.0
      %937 = vmatpush2.msra.mxu0 0.0
      %938 = vmatprep.subr.mxu0 0.0
      %939 = vmatpush2.msra.mxu0 0.0
      %940 = vmatprep.subr.mxu0 0.0
      %941 = vmatpush2.msra.mxu0 0.0
      %942 = vmatprep.subr.mxu0 0.0
      %943 = vmatpush2.msra.mxu0 0.0
      %944 = vmatprep.subr.mxu0 0.0
      %945 = vmatpush2.msra.mxu0 0.0
      %946 = vmatprep.subr.mxu0 0.0
      %947 = vmatpush2.msra.mxu0 0.0
      %948 = vmatprep.subr.mxu0 0.0
      %949 = vmatpush2.msra.mxu0 0.0
      %950 = vmatprep.subr.mxu0 0.0
      %951 = vmatpush2.msra.mxu0 0.0
      %952 = vmatprep.subr.mxu0 0.0
      %953 = vmatpush2.msra.mxu0 0.0
      %954 = vmatprep.mubr.f32.mxu0 0.0
      %955 = vmatmul.mubr.f32.gmra.mxu0 %v888
      %v956 = vpop.f32.mrf.mxu0
      %v957 = vadd.f32 0.0, %v956
      %v958 = vpop.f32.mrf.mxu0
      %959 = vdwg.mxu0
      %v960 = vadd.f32 %v887, %v957
      %v961 = vxor.u32 %v960, 2147483648
      %v962 = vmul.f32 %v961, 1.442695
      %v963 = vpow.pop %v962
      %v964 = vadd.f32 %v963, 1.0
      %v965 = vrcp.pop %v964
      %v966 = vmul.f32 1.0, %v965
      %v967 = vtanh.pop %v960
      %v968 = vmul.f32 %v966, %v870
      %970 = vrot.lane.b32.xlu0 %v967, 64
      %v971 = vpop.permute.xlu0 %970
      %v973 = vmul.f32 %v966, %v971
      %975 = vrot.lane.b32.xlu0 %v973, 32
      %v976 = vpop.permute.xlu0 %975
      %v978 = vadd.f32 %v968, %v976
      %v979 = vtanh.pop %v978
      %981 = vrot.lane.b32.xlu0 %v979, 64
      %v982 = vpop.permute.xlu0 %981
      %v984 = vmul.f32 %v966, %v982
      %986 = vrot.lane.b32.xlu0 %v984, 32
      %v987 = vpop.permute.xlu0 %986
      %s989 = scalar_lea.vmem %s312, %s885
      %990 = vst.msk [vmem:[%s989] sm:$0x3] %vm451, %v987
      %s991 = smul.u32 %s20, 4294967291
      %s992 = sadd.s32 %s991, 6
      %s993 = smul.u32 %s992, 2
      %s994 = scalar_lea.vmem %s289, %s993
      %v995 = vld [vmem:[%s994] sm:$0x3]
      %v996 = vsel %vm343, %v987, 0
      %998 = vmatprep.subr.mxu0 0.0
      %999 = vmatpush1.msra.mxu0 0.0
      %1000 = vmatprep.subr.mxu0 0.0
      %1001 = vmatpush1.msra.mxu0 0.0
      %1002 = vmatprep.subr.mxu0 0.0
      %1003 = vmatpush1.msra.mxu0 0.0
      %1004 = vmatprep.subr.mxu0 0.0
      %1005 = vmatpush1.msra.mxu0 0.0
      %1006 = vmatprep.subr.mxu0 0.0
      %1007 = vmatpush1.msra.mxu0 0.0
      %1008 = vmatprep.subr.mxu0 0.0
      %1009 = vmatpush1.msra.mxu0 0.0
      %1010 = vmatprep.subr.mxu0 0.0
      %1011 = vmatpush1.msra.mxu0 0.0
      %1012 = vmatprep.subr.mxu0 0.0
      %1013 = vmatpush1.msra.mxu0 0.0
      %1014 = vmatprep.subr.mxu0 0.0
      %1015 = vmatpush1.msra.mxu0 0.0
      %1016 = vmatprep.subr.mxu0 0.0
      %1017 = vmatpush1.msra.mxu0 0.0
      %1018 = vmatprep.subr.mxu0 0.0
      %1019 = vmatpush1.msra.mxu0 0.0
      %1020 = vmatprep.subr.mxu0 0.0
      %1021 = vmatpush1.msra.mxu0 0.0
      %1022 = vmatprep.subr.mxu0 0.0
      %1023 = vmatpush1.msra.mxu0 %v336
      %1024 = vmatprep.subr.mxu0 0.0
      %1025 = vmatpush1.msra.mxu0 %v335
      %1026 = vmatprep.subr.mxu0 0.0
      %1027 = vmatpush1.msra.mxu0 %v334
      %1028 = vmatprep.subr.mxu0 0.0
      %1029 = vmatpush1.msra.mxu0 %v333
      %1030 = vmatprep.subr.mxu0 0.0
      %1031 = vmatpush2.msra.mxu0 0.0
      %1032 = vmatprep.subr.mxu0 0.0
      %1033 = vmatpush2.msra.mxu0 0.0
      %1034 = vmatprep.subr.mxu0 0.0
      %1035 = vmatpush2.msra.mxu0 0.0
      %1036 = vmatprep.subr.mxu0 0.0
      %1037 = vmatpush2.msra.mxu0 0.0
      %1038 = vmatprep.subr.mxu0 0.0
      %1039 = vmatpush2.msra.mxu0 0.0
      %1040 = vmatprep.subr.mxu0 0.0
      %1041 = vmatpush2.msra.mxu0 0.0
      %1042 = vmatprep.subr.mxu0 0.0
      %1043 = vmatpush2.msra.mxu0 0.0
      %1044 = vmatprep.subr.mxu0 0.0
      %1045 = vmatpush2.msra.mxu0 0.0
      %1046 = vmatprep.subr.mxu0 0.0
      %1047 = vmatpush2.msra.mxu0 0.0
      %1048 = vmatprep.subr.mxu0 0.0
      %1049 = vmatpush2.msra.mxu0 0.0
      %1050 = vmatprep.subr.mxu0 0.0
      %1051 = vmatpush2.msra.mxu0 0.0
      %1052 = vmatprep.subr.mxu0 0.0
      %1053 = vmatpush2.msra.mxu0 0.0
      %1054 = vmatprep.subr.mxu0 0.0
      %1055 = vmatpush2.msra.mxu0 0.0
      %1056 = vmatprep.subr.mxu0 0.0
      %1057 = vmatpush2.msra.mxu0 0.0
      %1058 = vmatprep.subr.mxu0 0.0
      %1059 = vmatpush2.msra.mxu0 0.0
      %1060 = vmatprep.subr.mxu0 0.0
      %1061 = vmatpush2.msra.mxu0 0.0
      %1062 = vmatprep.mubr.f32.mxu0 0.0
      %1063 = vmatmul.mubr.f32.gmra.mxu0 %v996
      %v1064 = vpop.f32.mrf.mxu0
      %v1065 = vadd.f32 0.0, %v1064
      %v1066 = vpop.f32.mrf.mxu0
      %1067 = vdwg.mxu0
      %v1068 = vadd.f32 %v995, %v1065
      %v1069 = vxor.u32 %v1068, 2147483648
      %v1070 = vmul.f32 %v1069, 1.442695
      %v1071 = vpow.pop %v1070
      %v1072 = vadd.f32 %v1071, 1.0
      %v1073 = vrcp.pop %v1072
      %v1074 = vmul.f32 1.0, %v1073
      %v1075 = vtanh.pop %v1068
      %v1076 = vmul.f32 %v1074, %v978
      %1078 = vrot.lane.b32.xlu0 %v1075, 64
      %v1079 = vpop.permute.xlu0 %1078
      %v1081 = vmul.f32 %v1074, %v1079
      %1083 = vrot.lane.b32.xlu0 %v1081, 32
      %v1084 = vpop.permute.xlu0 %1083
      %v1086 = vadd.f32 %v1076, %v1084
      %v1087 = vtanh.pop %v1086
      %1089 = vrot.lane.b32.xlu0 %v1087, 64
      %v1090 = vpop.permute.xlu0 %1089
      %v1092 = vmul.f32 %v1074, %v1090
      %1094 = vrot.lane.b32.xlu0 %v1092, 32
      %v1095 = vpop.permute.xlu0 %1094
      %s1097 = scalar_lea.vmem %s312, %s993
      %1098 = vst.msk [vmem:[%s1097] sm:$0x3] %vm451, %v1095
      %s1099 = smul.u32 %s20, 4294967289
      %s1100 = sadd.s32 %s1099, 7
      %s1101 = smul.u32 %s1100, 2
      %s1102 = scalar_lea.vmem %s289, %s1101
      %v1103 = vld [vmem:[%s1102] sm:$0x3]
      %v1104 = vsel %vm343, %v1095, 0
      %1106 = vmatprep.subr.mxu0 0.0
      %1107 = vmatpush1.msra.mxu0 0.0
      %1108 = vmatprep.subr.mxu0 0.0
      %1109 = vmatpush1.msra.mxu0 0.0
      %1110 = vmatprep.subr.mxu0 0.0
      %1111 = vmatpush1.msra.mxu0 0.0
      %1112 = vmatprep.subr.mxu0 0.0
      %1113 = vmatpush1.msra.mxu0 0.0
      %1114 = vmatprep.subr.mxu0 0.0
      %1115 = vmatpush1.msra.mxu0 0.0
      %1116 = vmatprep.subr.mxu0 0.0
      %1117 = vmatpush1.msra.mxu0 0.0
      %1118 = vmatprep.subr.mxu0 0.0
      %1119 = vmatpush1.msra.mxu0 0.0
      %1120 = vmatprep.subr.mxu0 0.0
      %1121 = vmatpush1.msra.mxu0 0.0
      %1122 = vmatprep.subr.mxu0 0.0
      %1123 = vmatpush1.msra.mxu0 0.0
      %1124 = vmatprep.subr.mxu0 0.0
      %1125 = vmatpush1.msra.mxu0 0.0
      %1126 = vmatprep.subr.mxu0 0.0
      %1127 = vmatpush1.msra.mxu0 0.0
      %1128 = vmatprep.subr.mxu0 0.0
      %1129 = vmatpush1.msra.mxu0 0.0
      %1130 = vmatprep.subr.mxu0 0.0
      %1131 = vmatpush1.msra.mxu0 %v336
      %1132 = vmatprep.subr.mxu0 0.0
      %1133 = vmatpush1.msra.mxu0 %v335
      %1134 = vmatprep.subr.mxu0 0.0
      %1135 = vmatpush1.msra.mxu0 %v334
      %1136 = vmatprep.subr.mxu0 0.0
      %1137 = vmatpush1.msra.mxu0 %v333
      %1138 = vmatprep.subr.mxu0 0.0
      %1139 = vmatpush2.msra.mxu0 0.0
      %1140 = vmatprep.subr.mxu0 0.0
      %1141 = vmatpush2.msra.mxu0 0.0
      %1142 = vmatprep.subr.mxu0 0.0
      %1143 = vmatpush2.msra.mxu0 0.0
      %1144 = vmatprep.subr.mxu0 0.0
      %1145 = vmatpush2.msra.mxu0 0.0
      %1146 = vmatprep.subr.mxu0 0.0
      %1147 = vmatpush2.msra.mxu0 0.0
      %1148 = vmatprep.subr.mxu0 0.0
      %1149 = vmatpush2.msra.mxu0 0.0
      %1150 = vmatprep.subr.mxu0 0.0
      %1151 = vmatpush2.msra.mxu0 0.0
      %1152 = vmatprep.subr.mxu0 0.0
      %1153 = vmatpush2.msra.mxu0 0.0
      %1154 = vmatprep.subr.mxu0 0.0
      %1155 = vmatpush2.msra.mxu0 0.0
      %1156 = vmatprep.subr.mxu0 0.0
      %1157 = vmatpush2.msra.mxu0 0.0
      %1158 = vmatprep.subr.mxu0 0.0
      %1159 = vmatpush2.msra.mxu0 0.0
      %1160 = vmatprep.subr.mxu0 0.0
      %1161 = vmatpush2.msra.mxu0 0.0
      %1162 = vmatprep.subr.mxu0 0.0
      %1163 = vmatpush2.msra.mxu0 0.0
      %1164 = vmatprep.subr.mxu0 0.0
      %1165 = vmatpush2.msra.mxu0 0.0
      %1166 = vmatprep.subr.mxu0 0.0
      %1167 = vmatpush2.msra.mxu0 0.0
      %1168 = vmatprep.subr.mxu0 0.0
      %1169 = vmatpush2.msra.mxu0 0.0
      %1170 = vmatprep.mubr.f32.mxu0 0.0
      %1171 = vmatmul.mubr.f32.gmra.mxu0 %v1104
      %v1172 = vpop.f32.mrf.mxu0
      %v1173 = vadd.f32 0.0, %v1172
      %v1174 = vpop.f32.mrf.mxu0
      %1175 = vdwg.mxu0
      %v1176 = vadd.f32 %v1103, %v1173
      %v1177 = vxor.u32 %v1176, 2147483648
      %v1178 = vmul.f32 %v1177, 1.442695
      %v1179 = vpow.pop %v1178
      %v1180 = vadd.f32 %v1179, 1.0
      %v1181 = vrcp.pop %v1180
      %v1182 = vmul.f32 1.0, %v1181
      %v1183 = vtanh.pop %v1176
      %v1184 = vmul.f32 %v1182, %v1086
      %1186 = vrot.lane.b32.xlu0 %v1183, 64
      %v1187 = vpop.permute.xlu0 %1186
      %v1189 = vmul.f32 %v1182, %v1187
      %1191 = vrot.lane.b32.xlu0 %v1189, 32
      %v1192 = vpop.permute.xlu0 %1191
      %v1194 = vadd.f32 %v1184, %v1192
      %v1195 = vtanh.pop %v1194
      %1197 = vrot.lane.b32.xlu0 %v1195, 64
      %v1198 = vpop.permute.xlu0 %1197
      %v1200 = vmul.f32 %v1182, %v1198
      %1202 = vrot.lane.b32.xlu0 %v1200, 32
      %v1203 = vpop.permute.xlu0 %1202
      %s1205 = scalar_lea.vmem %s312, %s1101
      %1206 = vst.msk [vmem:[%s1205] sm:$0x3] %vm451, %v1203
      %1207 = vst.msk [vmem:[#allocation2] sm:$0x3] %vm451, %v1203
      %1209 = vrot.lane.b32.xlu0 %v1194, 96
      %v1210 = vpop.permute.xlu0 %1209
      %1212 = vst.msk [vmem:[#allocation3] sm:$0x3] %vm451, %v1210
      // Predicated region
      $region33: #{_lambda_.2} parent=27 // pred_check
        %p1213 = pneg %p326
      $region34: #{_lambda_.2} parent=27 // pred_check_branch
        %1215 = sbr.rel (%p1213) target = $region36
      $region35: #{_lambda_.2} parent=27 // pred_region
        %1216 = vst.msk [vmem:[%s321] sm:$0x3] %vm451, %v1203
        %1217 = vst.msk [vmem:[%s325] sm:$0x3] %vm451, %v1210
      $region36: #{_lambda_.2} parent=27 // pred_fallthru
        _
      %s1218 = smul.u32 %s21, 2
      %s1219 = ssub.s32 0, %s1218
      %s1220 = smul.u32 %s20, %s1219
      %s1221 = sadd.s32 %s21, %s1220
      %s1222 = smul.u32 8, %s1221
      %p1223 = scmp.lt.s32.totalorder %s20, 1
      %s1224 = scalar_select %p1223, %s20, 1
      %p1225 = scmp.lt.s32.totalorder %s1222, 7
      %s1226 = scalar_select %p1225, %s1222, 7
      %s1227 = smul.addr %s1224, 8
      %s1228 = sadd.s32 %s1226, %s1227
      %s1229 = smul.addr %s1228, 2
      %s1230 = scalar_lea.vmem %s2, %s1229
      %p1231 = scmp.lt.s32.totalorder %s20, 1
      %s1232 = scalar_select %p1231, %s20, 1
      %s1233 = smul.addr %s1232, 2
      %s1234 = scalar_lea.vmem %s3, %s1233
      %p1235 = scmp.lt.s32.totalorder %s20, 1
      %s1236 = scalar_select %p1235, %s20, 1
      %s1237 = smul.addr %s1236, 2
      %s1238 = scalar_lea.vmem %s4, %s1237
      // Predicated region
      $region37: #{_lambda_.2} parent=27 // pred_check
        %p1239 = pneg %p118
      $region38: #{_lambda_.2} parent=27 // pred_check_branch
        %1241 = sbr.rel (%p1239) target = $region40
      $region39: #{_lambda_.2} parent=27 // pred_region
        %s1242 = smul.u32 %s21, 2
        %s1243 = ssub.s32 0, %s1242
        %s1244 = smul.u32 %s20, %s1243
        %s1245 = sadd.s32 %s21, %s1244
        %s1246 = smul.u32 8, %s1245
      $region40: #{_lambda_.2} parent=27 // pred_fallthru
        _
      // Predicated region
      $region41: #{_lambda_.2} parent=27 // pred_check
        %p1247 = pneg %p144
      $region42: #{_lambda_.2} parent=27 // pred_check_branch
        %1249 = sbr.rel (%p1247) target = $region44
      $region43: #{_lambda_.2} parent=27 // pred_region
        _
      $region44: #{_lambda_.2} parent=27 // pred_fallthru
        _
      // Predicated region
      $region45: #{_lambda_.2} parent=27 // pred_check
        %p1250 = pneg %p170
      $region46: #{_lambda_.2} parent=27 // pred_check_branch
        %1252 = sbr.rel (%p1250) target = $region48
      $region47: #{_lambda_.2} parent=27 // pred_region
        _
      $region48: #{_lambda_.2} parent=27 // pred_fallthru
        _
    $region28: #{_lambda_.2} parent=5 // pred_fallthru
      _
    %p1253 = scmp.le.s32.totalorder 2, %s11
    // Predicated region
    $region49: #{_lambda_.2} parent=5 // pred_check
      %p1254 = pneg %p1253
    $region50: #{_lambda_.2} parent=5 // pred_check_branch
      %1256 = sbr.rel (%p1254) target = $region52
    $region51: #{_lambda_.2} parent=5 // pred_region
      %s1257 = ssub.s32 %s11, 2
      // Predicated region
      $region53: #{_lambda_.2} parent=51 // pred_check
        %p1258 = pneg %p124
      $region54: #{_lambda_.2} parent=51 // pred_check_branch
        %1260 = sbr.rel (%p1258) target = $region56
      $region55: #{_lambda_.2} parent=51 // pred_region
        %s1261 = smul.u32 %s23, 2
        %s1262 = ssub.s32 0, %s1261
        %s1263 = smul.u32 %s22, %s1262
        %s1264 = sadd.s32 %s23, %s1263
        %s1265 = smul.u32 8, %s1264
        %p1266 = scmp.lt.s32.totalorder %s22, 1
        %s1267 = scalar_select %p1266, %s22, 1
        %p1268 = scmp.lt.s32.totalorder %s1265, 7
        %s1269 = scalar_select %p1268, %s1265, 7
        %s1270 = smul.addr %s1267, 8
        %s1271 = sadd.s32 %s1269, %s1270
        %s1272 = smul.addr %s1271, 2
        %s1273 = scalar_lea.vmem %s2, %s1272
      $region56: #{_lambda_.2} parent=51 // pred_fallthru
        _
      // Predicated region
      $region57: #{_lambda_.2} parent=51 // pred_check
        %p1274 = pneg %p150
      $region58: #{_lambda_.2} parent=51 // pred_check_branch
        %1276 = sbr.rel (%p1274) target = $region60
      $region59: #{_lambda_.2} parent=51 // pred_region
        %p1277 = scmp.lt.s32.totalorder %s22, 1
        %s1278 = scalar_select %p1277, %s22, 1
        %s1279 = smul.addr %s1278, 2
        %s1280 = scalar_lea.vmem %s3, %s1279
      $region60: #{_lambda_.2} parent=51 // pred_fallthru
        _
      // Predicated region
      $region61: #{_lambda_.2} parent=51 // pred_check
        %p1281 = pneg %p176
      $region62: #{_lambda_.2} parent=51 // pred_check_branch
        %1283 = sbr.rel (%p1281) target = $region64
      $region63: #{_lambda_.2} parent=51 // pred_region
        %p1284 = scmp.lt.s32.totalorder %s22, 1
        %s1285 = scalar_select %p1284, %s22, 1
        %s1286 = smul.addr %s1285, 2
        %s1287 = scalar_lea.vmem %s4, %s1286
      $region64: #{_lambda_.2} parent=51 // pred_fallthru
        _
    $region52: #{_lambda_.2} parent=5 // pred_fallthru
      _
  $region6: #{_lambda_.2} parent=0 // loop_footer
    %s15 = sadd.s32 1, %s11
  $region7: #{_lambda_.2} parent=0 // loop_footer_branch
    %10 = sbr.rel target = $region3
  $region8: #{_lambda_.2} parent=0 // loop_exit
    _

// kernel: _lambda_.3
$region0: #{_lambda_.3}
  #allocation0 [shape = 'u32[]', space=smem, size = 0x4, offset = 0x4, fixed_abs, tag = 'smem constant byte address 0x4 - core index']
  #allocation1 [shape = 'u32[144,128]{1,0:T(1,128)}', space=vmem, size = 0x12000, scoped, tag = 'internal scratch']
  #allocation2 [shape = 'f32[2,32]{1,0:T(2,128)}', space=vmem, size = 0x400, scoped, tag = 'scratch operand']
  #allocation3 [shape = 'f32[2,32]{1,0:T(2,128)}', space=vmem, size = 0x400, scoped, tag = 'scratch operand']
  #allocation4 [shape = 'f32[2,32]{1,0:T(2,128)}', space=vmem, size = 0x400, scoped, tag = 'scratch operand']
  #allocation5 [shape = 'f32[2,32]{1,0:T(2,128)}', space=vmem, size = 0x400, scoped, tag = 'scratch operand']
  #allocation6 [shape = 's32[2,1]{1,0:T(2,128)}', space=vmem, size = 0x400, scoped, tag = 'scratch operand']
  #allocation7 [shape = 's32[1]{0}', space=sflag, size = 0x4, scoped, tag = 'scoped memory for _lambda_.3']
  #allocation8 [shape = 'u8[4096]{0}', space=smem, size = 0x1000, scoped, tag = 'prefetched SMEM operand 0']
  #allocation9 [shape = 'u8[512]{0}', space=smem, size = 0x200, scoped, tag = 'prefetched SMEM operand 1']
  %s0 = inlined_call_operand.vmem [shape: s32[5,2], index: 0, kind: input, shape index: {}]
  %s1 = inlined_call_operand.vmem [shape: s32[5], index: 1, kind: input, shape index: {}]
  %s2 = inlined_call_operand.vmem [shape: f32[32,16], index: 2, kind: input, shape index: {}]
  %s3 = inlined_call_operand.vmem [shape: f32[2,8,32], index: 3, kind: input, shape index: {}]
  %s4 = inlined_call_operand.vmem [shape: f32[2,8,32], index: 4, kind: input, shape index: {}]
  %s5 = inlined_call_operand.vmem [shape: f32[32,32], index: 5, kind: input, shape index: {}]
  %s6 = inlined_call_operand.vmem [shape: f32[1,32], index: 6, kind: input, shape index: {}]
  %s7 = inlined_call_operand.vmem [shape: f32[2,2,32], index: 7, kind: input, shape index: {}]
  %s8 = inlined_call_operand.vmem [shape: f32[2,2,32], index: 8, kind: input, shape index: {}]
  %s9 = inlined_call_operand.vmem [shape: f32[16,128], index: 9, kind: input, shape index: {}]
  %s10 = inlined_call_operand.vmem [shape: f32[32,128], index: 10, kind: input, shape index: {}]
  %s11 = inlined_call_operand.vmem [shape: f32[32,128], index: 11, kind: input, shape index: {}]
  %s12 = inlined_call_operand.vmem [shape: f32[1,128], index: 12, kind: input, shape index: {}]
  %s13 = inlined_call_operand.vmem [shape: f32[32,128], index: 13, kind: input, shape index: {}]
  %s14 = inlined_call_operand.vmem [shape: f32[32,128], index: 14, kind: input, shape index: {}]
  %s15 = inlined_call_operand.vmem [shape: f32[1,128], index: 15, kind: input, shape index: {}]
  %s16 = inlined_call_operand.vmem [shape: f32[32,32], index: 16, kind: input, shape index: {}]
  %s17 = inlined_call_operand.vmem [shape: f32[32,32], index: 17, kind: input, shape index: {}]
  %s18 = inlined_call_operand.vmem [shape: f32[1,32], index: 18, kind: input, shape index: {}]
  %s19 = inlined_call_operand.vmem [shape: f32[4,2,32], index: 19, kind: output, shape index: {}]
  %s20 = sld [smem:[#allocation0]]
  $region113: #{_lambda_.3} parent=0
    _
  %s22 = ssub.s32 1, %s20
  %s23 = scalar_select 0, %s22, %s20
  %s24 = sshll.u32 %s0, 4
  %s25 = int_to_ptr.vmem [resolvable:$true] %s24
  %27 = dma.vmem_to_smem %s25, 128, [#allocation8], [#allocation7]
  %s28 = sshll.u32 %s1, 4
  %s29 = int_to_ptr.vmem [resolvable:$true] %s28
  %31 = dma.vmem_to_smem %s29, 16, [#allocation9], [#allocation7]
  %32 = dma.done [#allocation7], 144
  %33 = sfence
  loop: start=0, step=1, limit=6
  $region2: #{_lambda_.3} parent=0 // loop_pre_header
    _
  $region3: #{_lambda_.3} parent=0 // loop_header
    %s35 = sphi 0, %s39
    %p36 = scmp.ge.s32.totalorder %s35, 6
    %s43 = sphi 0, %s43
    %s45 = sphi 0, %s43
    %s46 = sphi 0, %s45
    %s60 = sphi 0, %s46
    %s64 = sphi 0, %s64
    %s66 = sphi 0, %s64
    %s67 = sphi 0, %s66
    %s81 = sphi 0, %s67
    %s85 = sphi 0, %s85
    %s87 = sphi 0, %s85
    %s88 = sphi 0, %s87
    %s102 = sphi 0, %s88
    %s106 = sphi 0, %s106
    %s108 = sphi 0, %s106
    %s109 = sphi 0, %s108
    %s123 = sphi 0, %s109
    %s127 = sphi 0, %s127
    %s129 = sphi 0, %s127
    %s130 = sphi 0, %s129
    %s144 = sphi 0, %s130
    %s148 = sphi 0, %s148
    %s150 = sphi 0, %s148
    %s151 = sphi 0, %s150
    %s165 = sphi 0, %s151
    %s169 = sphi 0, %s169
    %s171 = sphi 0, %s169
    %s172 = sphi 0, %s171
    %s186 = sphi 0, %s172
    %s190 = sphi 0, %s190
    %s192 = sphi 0, %s190
    %s193 = sphi 0, %s192
    %s207 = sphi 0, %s193
    %s211 = sphi 0, %s211
    %s213 = sphi 0, %s211
    %s214 = sphi 0, %s213
    %s228 = sphi 0, %s214
    %s232 = sphi 0, %s232
    %s234 = sphi 0, %s232
    %s235 = sphi 0, %s234
    %s249 = sphi 0, %s235
    %s253 = sphi 0, %s253
    %s255 = sphi 0, %s253
    %s256 = sphi 0, %s255
    %s270 = sphi 0, %s256
    %s274 = sphi 0, %s274
    %s276 = sphi 0, %s274
    %s277 = sphi 0, %s276
    %s291 = sphi 0, %s277
    %s295 = sphi 0, %s295
    %s297 = sphi 0, %s295
    %s298 = sphi 0, %s297
    %s312 = sphi 0, %s298
    %s316 = sphi 0, %s316
    %s318 = sphi 0, %s316
    %s319 = sphi 0, %s318
    %s333 = sphi 0, %s319
    %s337 = sphi 0, %s337
    %s339 = sphi 0, %s337
    %s340 = sphi 0, %s339
    %s354 = sphi 0, %s340
    %s358 = sphi 0, %s358
    %s360 = sphi 0, %s358
    %s361 = sphi 0, %s360
    %s375 = sphi 0, %s361
    %s379 = sphi 0, %s379
    %s381 = sphi 0, %s379
    %s382 = sphi 0, %s381
    %s396 = sphi 0, %s382
    %s402 = sphi 0, %s404
    %s405 = sphi 0, %s402
    %s406 = sphi 0, %s405
    %s422 = sphi 0, %s406
  $region4: #{_lambda_.3} parent=0 // loop_header_branch
    %38 = sbr.rel (%p36) target = $region8
  $region5: #{_lambda_.3} parent=0 // loop_body
    %s40 = ssub.s32 %s35, 1
    %s41 = ssub.s32 %s35, 2
    %s42 = sadd.s32 %s35, 1
    %s44 = sadd.s32 %s43, 1
    %p47 = scmp.eq.s32.totalorder %s35, 3
    %p48 = scmp.ne.s32.totalorder %s43, %s45
    %p49 = scmp.eq.s32.totalorder %s35, 0
    %p50 = por %p48, %p49
    %p51 = scmp.ne.s32.totalorder %s43, %s45
    %p52 = scmp.eq.s32.totalorder %s40, 3
    %p53 = por %p51, %p52
    %p54 = scmp.ne.s32.totalorder %s45, %s46
    %p55 = scmp.eq.s32.totalorder %s40, 0
    %p56 = por %p54, %p55
    %p57 = scmp.ne.s32.totalorder %s45, %s46
    %p58 = scmp.eq.s32.totalorder %s41, 3
    %p59 = por %p57, %p58
    %p61 = scmp.ne.s32.totalorder %s46, %s60
    %p62 = scmp.eq.s32.totalorder %s41, 0
    %p63 = por %p61, %p62
    %s65 = sadd.s32 %s64, 1
    %p68 = scmp.eq.s32.totalorder %s35, 3
    %p69 = scmp.ne.s32.totalorder %s64, %s66
    %p70 = scmp.eq.s32.totalorder %s35, 0
    %p71 = por %p69, %p70
    %p72 = scmp.ne.s32.totalorder %s64, %s66
    %p73 = scmp.eq.s32.totalorder %s40, 3
    %p74 = por %p72, %p73
    %p75 = scmp.ne.s32.totalorder %s66, %s67
    %p76 = scmp.eq.s32.totalorder %s40, 0
    %p77 = por %p75, %p76
    %p78 = scmp.ne.s32.totalorder %s66, %s67
    %p79 = scmp.eq.s32.totalorder %s41, 3
    %p80 = por %p78, %p79
    %p82 = scmp.ne.s32.totalorder %s67, %s81
    %p83 = scmp.eq.s32.totalorder %s41, 0
    %p84 = por %p82, %p83
    %s86 = sadd.s32 %s85, 1
    %p89 = scmp.eq.s32.totalorder %s35, 3
    %p90 = scmp.ne.s32.totalorder %s85, %s87
    %p91 = scmp.eq.s32.totalorder %s35, 0
    %p92 = por %p90, %p91
    %p93 = scmp.ne.s32.totalorder %s85, %s87
    %p94 = scmp.eq.s32.totalorder %s40, 3
    %p95 = por %p93, %p94
    %p96 = scmp.ne.s32.totalorder %s87, %s88
    %p97 = scmp.eq.s32.totalorder %s40, 0
    %p98 = por %p96, %p97
    %p99 = scmp.ne.s32.totalorder %s87, %s88
    %p100 = scmp.eq.s32.totalorder %s41, 3
    %p101 = por %p99, %p100
    %p103 = scmp.ne.s32.totalorder %s88, %s102
    %p104 = scmp.eq.s32.totalorder %s41, 0
    %p105 = por %p103, %p104
    %s107 = sadd.s32 %s106, 1
    %p110 = scmp.eq.s32.totalorder %s35, 3
    %p111 = scmp.ne.s32.totalorder %s106, %s108
    %p112 = scmp.eq.s32.totalorder %s35, 0
    %p113 = por %p111, %p112
    %p114 = scmp.ne.s32.totalorder %s106, %s108
    %p115 = scmp.eq.s32.totalorder %s40, 3
    %p116 = por %p114, %p115
    %p117 = scmp.ne.s32.totalorder %s108, %s109
    %p118 = scmp.eq.s32.totalorder %s40, 0
    %p119 = por %p117, %p118
    %p120 = scmp.ne.s32.totalorder %s108, %s109
    %p121 = scmp.eq.s32.totalorder %s41, 3
    %p122 = por %p120, %p121
    %p124 = scmp.ne.s32.totalorder %s109, %s123
    %p125 = scmp.eq.s32.totalorder %s41, 0
    %p126 = por %p124, %p125
    %s128 = sadd.s32 %s127, 1
    %p131 = scmp.eq.s32.totalorder %s35, 3
    %p132 = scmp.ne.s32.totalorder %s127, %s129
    %p133 = scmp.eq.s32.totalorder %s35, 0
    %p134 = por %p132, %p133
    %p135 = scmp.ne.s32.totalorder %s127, %s129
    %p136 = scmp.eq.s32.totalorder %s40, 3
    %p137 = por %p135, %p136
    %p138 = scmp.ne.s32.totalorder %s129, %s130
    %p139 = scmp.eq.s32.totalorder %s40, 0
    %p140 = por %p138, %p139
    %p141 = scmp.ne.s32.totalorder %s129, %s130
    %p142 = scmp.eq.s32.totalorder %s41, 3
    %p143 = por %p141, %p142
    %p145 = scmp.ne.s32.totalorder %s130, %s144
    %p146 = scmp.eq.s32.totalorder %s41, 0
    %p147 = por %p145, %p146
    %s149 = sadd.s32 %s148, 1
    %p152 = scmp.eq.s32.totalorder %s35, 3
    %p153 = scmp.ne.s32.totalorder %s148, %s150
    %p154 = scmp.eq.s32.totalorder %s35, 0
    %p155 = por %p153, %p154
    %p156 = scmp.ne.s32.totalorder %s148, %s150
    %p157 = scmp.eq.s32.totalorder %s40, 3
    %p158 = por %p156, %p157
    %p159 = scmp.ne.s32.totalorder %s150, %s151
    %p160 = scmp.eq.s32.totalorder %s40, 0
    %p161 = por %p159, %p160
    %p162 = scmp.ne.s32.totalorder %s150, %s151
    %p163 = scmp.eq.s32.totalorder %s41, 3
    %p164 = por %p162, %p163
    %p166 = scmp.ne.s32.totalorder %s151, %s165
    %p167 = scmp.eq.s32.totalorder %s41, 0
    %p168 = por %p166, %p167
    %s170 = sadd.s32 %s169, 1
    %p173 = scmp.eq.s32.totalorder %s35, 3
    %p174 = scmp.ne.s32.totalorder %s169, %s171
    %p175 = scmp.eq.s32.totalorder %s35, 0
    %p176 = por %p174, %p175
    %p177 = scmp.ne.s32.totalorder %s169, %s171
    %p178 = scmp.eq.s32.totalorder %s40, 3
    %p179 = por %p177, %p178
    %p180 = scmp.ne.s32.totalorder %s171, %s172
    %p181 = scmp.eq.s32.totalorder %s40, 0
    %p182 = por %p180, %p181
    %p183 = scmp.ne.s32.totalorder %s171, %s172
    %p184 = scmp.eq.s32.totalorder %s41, 3
    %p185 = por %p183, %p184
    %p187 = scmp.ne.s32.totalorder %s172, %s186
    %p188 = scmp.eq.s32.totalorder %s41, 0
    %p189 = por %p187, %p188
    %s191 = sadd.s32 %s190, 1
    %p194 = scmp.eq.s32.totalorder %s35, 3
    %p195 = scmp.ne.s32.totalorder %s190, %s192
    %p196 = scmp.eq.s32.totalorder %s35, 0
    %p197 = por %p195, %p196
    %p198 = scmp.ne.s32.totalorder %s190, %s192
    %p199 = scmp.eq.s32.totalorder %s40, 3
    %p200 = por %p198, %p199
    %p201 = scmp.ne.s32.totalorder %s192, %s193
    %p202 = scmp.eq.s32.totalorder %s40, 0
    %p203 = por %p201, %p202
    %p204 = scmp.ne.s32.totalorder %s192, %s193
    %p205 = scmp.eq.s32.totalorder %s41, 3
    %p206 = por %p204, %p205
    %p208 = scmp.ne.s32.totalorder %s193, %s207
    %p209 = scmp.eq.s32.totalorder %s41, 0
    %p210 = por %p208, %p209
    %s212 = sadd.s32 %s211, 1
    %p215 = scmp.eq.s32.totalorder %s35, 3
    %p216 = scmp.ne.s32.totalorder %s211, %s213
    %p217 = scmp.eq.s32.totalorder %s35, 0
    %p218 = por %p216, %p217
    %p219 = scmp.ne.s32.totalorder %s211, %s213
    %p220 = scmp.eq.s32.totalorder %s40, 3
    %p221 = por %p219, %p220
    %p222 = scmp.ne.s32.totalorder %s213, %s214
    %p223 = scmp.eq.s32.totalorder %s40, 0
    %p224 = por %p222, %p223
    %p225 = scmp.ne.s32.totalorder %s213, %s214
    %p226 = scmp.eq.s32.totalorder %s41, 3
    %p227 = por %p225, %p226
    %p229 = scmp.ne.s32.totalorder %s214, %s228
    %p230 = scmp.eq.s32.totalorder %s41, 0
    %p231 = por %p229, %p230
    %s233 = sadd.s32 %s232, 1
    %p236 = scmp.eq.s32.totalorder %s35, 3
    %p237 = scmp.ne.s32.totalorder %s232, %s234
    %p238 = scmp.eq.s32.totalorder %s35, 0
    %p239 = por %p237, %p238
    %p240 = scmp.ne.s32.totalorder %s232, %s234
    %p241 = scmp.eq.s32.totalorder %s40, 3
    %p242 = por %p240, %p241
    %p243 = scmp.ne.s32.totalorder %s234, %s235
    %p244 = scmp.eq.s32.totalorder %s40, 0
    %p245 = por %p243, %p244
    %p246 = scmp.ne.s32.totalorder %s234, %s235
    %p247 = scmp.eq.s32.totalorder %s41, 3
    %p248 = por %p246, %p247
    %p250 = scmp.ne.s32.totalorder %s235, %s249
    %p251 = scmp.eq.s32.totalorder %s41, 0
    %p252 = por %p250, %p251
    %s254 = sadd.s32 %s253, 1
    %p257 = scmp.eq.s32.totalorder %s35, 3
    %p258 = scmp.ne.s32.totalorder %s253, %s255
    %p259 = scmp.eq.s32.totalorder %s35, 0
    %p260 = por %p258, %p259
    %p261 = scmp.ne.s32.totalorder %s253, %s255
    %p262 = scmp.eq.s32.totalorder %s40, 3
    %p263 = por %p261, %p262
    %p264 = scmp.ne.s32.totalorder %s255, %s256
    %p265 = scmp.eq.s32.totalorder %s40, 0
    %p266 = por %p264, %p265
    %p267 = scmp.ne.s32.totalorder %s255, %s256
    %p268 = scmp.eq.s32.totalorder %s41, 3
    %p269 = por %p267, %p268
    %p271 = scmp.ne.s32.totalorder %s256, %s270
    %p272 = scmp.eq.s32.totalorder %s41, 0
    %p273 = por %p271, %p272
    %s275 = sadd.s32 %s274, 1
    %p278 = scmp.eq.s32.totalorder %s35, 3
    %p279 = scmp.ne.s32.totalorder %s274, %s276
    %p280 = scmp.eq.s32.totalorder %s35, 0
    %p281 = por %p279, %p280
    %p282 = scmp.ne.s32.totalorder %s274, %s276
    %p283 = scmp.eq.s32.totalorder %s40, 3
    %p284 = por %p282, %p283
    %p285 = scmp.ne.s32.totalorder %s276, %s277
    %p286 = scmp.eq.s32.totalorder %s40, 0
    %p287 = por %p285, %p286
    %p288 = scmp.ne.s32.totalorder %s276, %s277
    %p289 = scmp.eq.s32.totalorder %s41, 3
    %p290 = por %p288, %p289
    %p292 = scmp.ne.s32.totalorder %s277, %s291
    %p293 = scmp.eq.s32.totalorder %s41, 0
    %p294 = por %p292, %p293
    %s296 = sadd.s32 %s295, 1
    %p299 = scmp.eq.s32.totalorder %s35, 3
    %p300 = scmp.ne.s32.totalorder %s295, %s297
    %p301 = scmp.eq.s32.totalorder %s35, 0
    %p302 = por %p300, %p301
    %p303 = scmp.ne.s32.totalorder %s295, %s297
    %p304 = scmp.eq.s32.totalorder %s40, 3
    %p305 = por %p303, %p304
    %p306 = scmp.ne.s32.totalorder %s297, %s298
    %p307 = scmp.eq.s32.totalorder %s40, 0
    %p308 = por %p306, %p307
    %p309 = scmp.ne.s32.totalorder %s297, %s298
    %p310 = scmp.eq.s32.totalorder %s41, 3
    %p311 = por %p309, %p310
    %p313 = scmp.ne.s32.totalorder %s298, %s312
    %p314 = scmp.eq.s32.totalorder %s41, 0
    %p315 = por %p313, %p314
    %s317 = sadd.s32 %s316, 1
    %p320 = scmp.eq.s32.totalorder %s35, 3
    %p321 = scmp.ne.s32.totalorder %s316, %s318
    %p322 = scmp.eq.s32.totalorder %s35, 0
    %p323 = por %p321, %p322
    %p324 = scmp.ne.s32.totalorder %s316, %s318
    %p325 = scmp.eq.s32.totalorder %s40, 3
    %p326 = por %p324, %p325
    %p327 = scmp.ne.s32.totalorder %s318, %s319
    %p328 = scmp.eq.s32.totalorder %s40, 0
    %p329 = por %p327, %p328
    %p330 = scmp.ne.s32.totalorder %s318, %s319
    %p331 = scmp.eq.s32.totalorder %s41, 3
    %p332 = por %p330, %p331
    %p334 = scmp.ne.s32.totalorder %s319, %s333
    %p335 = scmp.eq.s32.totalorder %s41, 0
    %p336 = por %p334, %p335
    %s338 = sadd.s32 %s337, 1
    %p341 = scmp.eq.s32.totalorder %s35, 3
    %p342 = scmp.ne.s32.totalorder %s337, %s339
    %p343 = scmp.eq.s32.totalorder %s35, 0
    %p344 = por %p342, %p343
    %p345 = scmp.ne.s32.totalorder %s337, %s339
    %p346 = scmp.eq.s32.totalorder %s40, 3
    %p347 = por %p345, %p346
    %p348 = scmp.ne.s32.totalorder %s339, %s340
    %p349 = scmp.eq.s32.totalorder %s40, 0
    %p350 = por %p348, %p349
    %p351 = scmp.ne.s32.totalorder %s339, %s340
    %p352 = scmp.eq.s32.totalorder %s41, 3
    %p353 = por %p351, %p352
    %p355 = scmp.ne.s32.totalorder %s340, %s354
    %p356 = scmp.eq.s32.totalorder %s41, 0
    %p357 = por %p355, %p356
    %s359 = sadd.s32 %s358, 1
    %p362 = scmp.eq.s32.totalorder %s35, 3
    %p363 = scmp.ne.s32.totalorder %s358, %s360
    %p364 = scmp.eq.s32.totalorder %s35, 0
    %p365 = por %p363, %p364
    %p366 = scmp.ne.s32.totalorder %s358, %s360
    %p367 = scmp.eq.s32.totalorder %s40, 3
    %p368 = por %p366, %p367
    %p369 = scmp.ne.s32.totalorder %s360, %s361
    %p370 = scmp.eq.s32.totalorder %s40, 0
    %p371 = por %p369, %p370
    %p372 = scmp.ne.s32.totalorder %s360, %s361
    %p373 = scmp.eq.s32.totalorder %s41, 3
    %p374 = por %p372, %p373
    %p376 = scmp.ne.s32.totalorder %s361, %s375
    %p377 = scmp.eq.s32.totalorder %s41, 0
    %p378 = por %p376, %p377
    %s380 = sadd.s32 %s379, 1
    %p383 = scmp.eq.s32.totalorder %s35, 3
    %p384 = scmp.ne.s32.totalorder %s379, %s381
    %p385 = scmp.eq.s32.totalorder %s35, 0
    %p386 = por %p384, %p385
    %p387 = scmp.ne.s32.totalorder %s379, %s381
    %p388 = scmp.eq.s32.totalorder %s40, 3
    %p389 = por %p387, %p388
    %p390 = scmp.ne.s32.totalorder %s381, %s382
    %p391 = scmp.eq.s32.totalorder %s40, 0
    %p392 = por %p390, %p391
    %p393 = scmp.ne.s32.totalorder %s381, %s382
    %p394 = scmp.eq.s32.totalorder %s41, 3
    %p395 = por %p393, %p394
    %p397 = scmp.ne.s32.totalorder %s382, %s396
    %p398 = scmp.eq.s32.totalorder %s41, 0
    %p399 = por %p397, %p398
    %s400 = ssub.s32 %s35, %s42
    %p401 = scmp.eq.s32.totalorder %s400, 0
    %s403 = sadd.s32 %s402, 1
    %s404 = scalar_select %p401, %s402, %s403
    %p407 = pneg %p401
    %p408 = scmp.eq.s32.totalorder %s35, 3
    %p409 = por %p407, %p408
    %p410 = scmp.ne.s32.totalorder %s402, %s405
    %p411 = scmp.eq.s32.totalorder %s35, 0
    %p412 = por %p410, %p411
    %p413 = scmp.ne.s32.totalorder %s402, %s405
    %p414 = scmp.eq.s32.totalorder %s40, 3
    %p415 = por %p413, %p414
    %p416 = scmp.ne.s32.totalorder %s405, %s406
    %p417 = scmp.eq.s32.totalorder %s40, 0
    %p418 = por %p416, %p417
    %p419 = scmp.ne.s32.totalorder %s405, %s406
    %p420 = scmp.eq.s32.totalorder %s41, 3
    %p421 = por %p419, %p420
    %p423 = scmp.ne.s32.totalorder %s406, %s422
    %p424 = scmp.eq.s32.totalorder %s41, 0
    %p425 = por %p423, %p424
    %p426 = scmp.le.s32.totalorder 1, %s35
    %p427 = scmp.lt.s32.totalorder %s35, 5
    %p428 = pnand %p426, %p427
    %p429 = pneg %p428
    // Predicated region
    $region9: #{_lambda_.3} parent=5 // pred_check
      _
    $region10: #{_lambda_.3} parent=5 // pred_check_branch
      %431 = sbr.rel (%p428) target = $region12
    $region11: #{_lambda_.3} parent=5 // pred_region
      %s432 = ssub.s32 %s35, 1
      // Predicated region
      $region13: #{_lambda_.3} parent=11 // pred_check
        %p433 = pneg %p56
      $region14: #{_lambda_.3} parent=11 // pred_check_branch
        %435 = sbr.rel (%p433) target = $region16
      $region15: #{_lambda_.3} parent=11 // pred_region
        _
      $region16: #{_lambda_.3} parent=11 // pred_fallthru
        _
      // Predicated region
      $region17: #{_lambda_.3} parent=11 // pred_check
        %p436 = pneg %p77
      $region18: #{_lambda_.3} parent=11 // pred_check_branch
        %438 = sbr.rel (%p436) target = $region20
      $region19: #{_lambda_.3} parent=11 // pred_region
        _
      $region20: #{_lambda_.3} parent=11 // pred_fallthru
        _
      // Predicated region
      $region21: #{_lambda_.3} parent=11 // pred_check
        %p439 = pneg %p98
      $region22: #{_lambda_.3} parent=11 // pred_check_branch
        %441 = sbr.rel (%p439) target = $region24
      $region23: #{_lambda_.3} parent=11 // pred_region
        _
      $region24: #{_lambda_.3} parent=11 // pred_fallthru
        _
      // Predicated region
      $region25: #{_lambda_.3} parent=11 // pred_check
        %p442 = pneg %p119
      $region26: #{_lambda_.3} parent=11 // pred_check_branch
        %444 = sbr.rel (%p442) target = $region28
      $region27: #{_lambda_.3} parent=11 // pred_region
        _
      $region28: #{_lambda_.3} parent=11 // pred_fallthru
        _
      // Predicated region
      $region29: #{_lambda_.3} parent=11 // pred_check
        %p445 = pneg %p140
      $region30: #{_lambda_.3} parent=11 // pred_check_branch
        %447 = sbr.rel (%p445) target = $region32
      $region31: #{_lambda_.3} parent=11 // pred_region
        _
      $region32: #{_lambda_.3} parent=11 // pred_fallthru
        _
      // Predicated region
      $region33: #{_lambda_.3} parent=11 // pred_check
        %p448 = pneg %p161
      $region34: #{_lambda_.3} parent=11 // pred_check_branch
        %450 = sbr.rel (%p448) target = $region36
      $region35: #{_lambda_.3} parent=11 // pred_region
        _
      $region36: #{_lambda_.3} parent=11 // pred_fallthru
        _
      // Predicated region
      $region37: #{_lambda_.3} parent=11 // pred_check
        %p451 = pneg %p182
      $region38: #{_lambda_.3} parent=11 // pred_check_branch
        %453 = sbr.rel (%p451) target = $region40
      $region39: #{_lambda_.3} parent=11 // pred_region
        _
      $region40: #{_lambda_.3} parent=11 // pred_fallthru
        _
      // Predicated region
      $region41: #{_lambda_.3} parent=11 // pred_check
        %p454 = pneg %p203
      $region42: #{_lambda_.3} parent=11 // pred_check_branch
        %456 = sbr.rel (%p454) target = $region44
      $region43: #{_lambda_.3} parent=11 // pred_region
        _
      $region44: #{_lambda_.3} parent=11 // pred_fallthru
        _
      // Predicated region
      $region45: #{_lambda_.3} parent=11 // pred_check
        %p457 = pneg %p224
      $region46: #{_lambda_.3} parent=11 // pred_check_branch
        %459 = sbr.rel (%p457) target = $region48
      $region47: #{_lambda_.3} parent=11 // pred_region
        _
      $region48: #{_lambda_.3} parent=11 // pred_fallthru
        _
      // Predicated region
      $region49: #{_lambda_.3} parent=11 // pred_check
        %p460 = pneg %p245
      $region50: #{_lambda_.3} parent=11 // pred_check_branch
        %462 = sbr.rel (%p460) target = $region52
      $region51: #{_lambda_.3} parent=11 // pred_region
        _
      $region52: #{_lambda_.3} parent=11 // pred_fallthru
        _
      // Predicated region
      $region53: #{_lambda_.3} parent=11 // pred_check
        %p463 = pneg %p266
      $region54: #{_lambda_.3} parent=11 // pred_check_branch
        %465 = sbr.rel (%p463) target = $region56
      $region55: #{_lambda_.3} parent=11 // pred_region
        _
      $region56: #{_lambda_.3} parent=11 // pred_fallthru
        _
      // Predicated region
      $region57: #{_lambda_.3} parent=11 // pred_check
        %p466 = pneg %p287
      $region58: #{_lambda_.3} parent=11 // pred_check_branch
        %468 = sbr.rel (%p466) target = $region60
      $region59: #{_lambda_.3} parent=11 // pred_region
        _
      $region60: #{_lambda_.3} parent=11 // pred_fallthru
        _
      // Predicated region
      $region61: #{_lambda_.3} parent=11 // pred_check
        %p469 = pneg %p308
      $region62: #{_lambda_.3} parent=11 // pred_check_branch
        %471 = sbr.rel (%p469) target = $region64
      $region63: #{_lambda_.3} parent=11 // pred_region
        _
      $region64: #{_lambda_.3} parent=11 // pred_fallthru
        _
      // Predicated region
      $region65: #{_lambda_.3} parent=11 // pred_check
        %p472 = pneg %p329
      $region66: #{_lambda_.3} parent=11 // pred_check_branch
        %474 = sbr.rel (%p472) target = $region68
      $region67: #{_lambda_.3} parent=11 // pred_region
        _
      $region68: #{_lambda_.3} parent=11 // pred_fallthru
        _
      // Predicated region
      $region69: #{_lambda_.3} parent=11 // pred_check
        %p475 = pneg %p350
      $region70: #{_lambda_.3} parent=11 // pred_check_branch
        %477 = sbr.rel (%p475) target = $region72
      $region71: #{_lambda_.3} parent=11 // pred_region
        _
      $region72: #{_lambda_.3} parent=11 // pred_fallthru
        _
      // Predicated region
      $region73: #{_lambda_.3} parent=11 // pred_check
        %p478 = pneg %p371
      $region74: #{_lambda_.3} parent=11 // pred_check_branch
        %480 = sbr.rel (%p478) target = $region76
      $region75: #{_lambda_.3} parent=11 // pred_region
        _
      $region76: #{_lambda_.3} parent=11 // pred_fallthru
        _
      // Predicated region
      $region77: #{_lambda_.3} parent=11 // pred_check
        %p481 = pneg %p392
      $region78: #{_lambda_.3} parent=11 // pred_check_branch
        %483 = sbr.rel (%p481) target = $region80
      $region79: #{_lambda_.3} parent=11 // pred_region
        _
      $region80: #{_lambda_.3} parent=11 // pred_fallthru
        _
    $region12: #{_lambda_.3} parent=5 // pred_fallthru
      _
    %p484 = scmp.lt.s32.totalorder %s35, 4
    // Predicated region
    $region81: #{_lambda_.3} parent=5 // pred_check
      %p485 = pneg %p484
    $region82: #{_lambda_.3} parent=5 // pred_check_branch
      %487 = sbr.rel (%p485) target = $region84
    $region83: #{_lambda_.3} parent=5 // pred_region
      _
    $region84: #{_lambda_.3} parent=5 // pred_fallthru
      _
    %p488 = scmp.le.s32.totalorder 1, %s35
    %p489 = scmp.lt.s32.totalorder %s35, 5
    %p490 = pnand %p488, %p489
    %p491 = pneg %p490
    // Predicated region
    $region85: #{_lambda_.3} parent=5 // pred_check
      _
    $region86: #{_lambda_.3} parent=5 // pred_check_branch
      %493 = sbr.rel (%p490) target = $region88
    $region87: #{_lambda_.3} parent=5 // pred_region
      %s494 = ssub.s32 %s35, 1
      %p495 = pneg %p56
      %p496 = pneg %p53
      %p497 = pneg %p77
      %p498 = pneg %p74
      %p499 = pneg %p98
      %p500 = pneg %p95
      %p501 = pneg %p119
      %p502 = pneg %p116
      %p503 = pneg %p140
      %p504 = pneg %p137
      %p505 = pneg %p161
      %p506 = pneg %p158
      %p507 = pneg %p182
      %p508 = pneg %p179
      %p509 = pneg %p203
      %p510 = pneg %p200
      %p511 = pneg %p224
      %p512 = pneg %p221
      %p513 = pneg %p245
      %p514 = pneg %p242
      %p515 = pneg %p266
      %p516 = pneg %p263
      %p517 = pneg %p287
      %p518 = pneg %p284
      %p519 = pneg %p308
      %p520 = pneg %p305
      %p521 = pneg %p329
      %p522 = pneg %p326
      %p523 = pneg %p350
      %p524 = pneg %p347
      %p525 = pneg %p371
      %p526 = pneg %p368
      %p527 = pneg %p392
      %p528 = pneg %p389
      %p529 = pneg %p418
      %p530 = pneg %p415
      %p531 = scmp.lt.s32.totalorder %s40, 3
      %s532 = scalar_select %p531, %s40, 3
      %s533 = smul.addr %s532, 2
      %s534 = scalar_lea.vmem %s19, %s533
      %p535 = scmp.lt.s32.totalorder %s40, 3
      %s536 = scalar_select %p535, %s40, 3
      %s537 = smul.addr %s536, 2
      %s538 = scalar_lea.vmem %s19, %s537
      %p539 = scmp.eq.s32.totalorder %s40, 0
      // Predicated region
      $region89: #{_lambda_.3} parent=87 // pred_check
        %p540 = pneg %p539
      $region90: #{_lambda_.3} parent=87 // pred_check_branch
        %542 = sbr.rel (%p540) target = $region92
      $region91: #{_lambda_.3} parent=87 // pred_region
        %v543 = vld [vmem:[%s7] sm:$0x3]
        %vm544 = vcmask 254976
        %545 = vst.msk [vmem:[#allocation2] sm:$0x3] %vm544, %v543
        %v546 = vld [vmem:[%s8] sm:$0x3]
        %547 = vst.msk [vmem:[#allocation3] sm:$0x3] %vm544, %v546
        %s548 = scalar_lea.vmem %s7, 2
        %v549 = vld [vmem:[%s548] sm:$0x3]
        %550 = vst.msk [vmem:[#allocation4] sm:$0x3] %vm544, %v549
        %s551 = scalar_lea.vmem %s8, 2
        %v552 = vld [vmem:[%s551] sm:$0x3]
        %553 = vst.msk [vmem:[#allocation5] sm:$0x3] %vm544, %v552
        %v554 = vlaneseq
        %v555 = vshrl.u32 %v554, 7
        %vm556 = vcmp.eq.s32.totalorder %v555, 0
        %s557 = sld [smem:[#allocation8]]
        %v558 = vstv %s557
        %v559 = vsel %vm556, %v558, 0
        %vm560 = vcmp.eq.s32.totalorder %v555, 1
        %s561 = sld [smem:[#allocation8 + $0x1]]
        %v562 = vstv %s561
        %v563 = vsel %vm560, %v562, %v559
        %vm564 = vcmask 1024
        %565 = vst.msk [vmem:[#allocation6] sm:$0x3] %vm564, %v563
      $region92: #{_lambda_.3} parent=87 // pred_fallthru
        _
      %v566 = vld [vmem:[#allocation6] sm:$0x3]
      %v567 = vlaneseq
      %v568 = vand.u32 %v567, 127
      %569 = vset.pattern.permute.xlu0 0
      %570 = vperm.xlu0 %569, %v566
      %v571 = vpop.permute.xlu0 %570
      %vm572 = vcmp.eq.s32.totalorder %v568, %v571
      %v573 = vsel %vm572, 1, 0
      %v574 = vcvt.s32.f32 %v573
      %v575 = vld [vmem:[%s2] sm:$0xff]
      %v576 = vld [vmem:[%s2 + $0x8] sm:$0xff]
      %v577 = vld [vmem:[%s2 + $0x10] sm:$0xff]
      %v578 = vld [vmem:[%s2 + $0x18] sm:$0xff]
      %vm579 = vcmask 261120
      %v581 = vsel %vm579, %v574, 0
      %583 = vmatprep.subr.mxu0 0.0
      %584 = vmatpush1.msra.mxu0 0.0
      %585 = vmatprep.subr.mxu0 0.0
      %586 = vmatpush1.msra.mxu0 0.0
      %587 = vmatprep.subr.mxu0 0.0
      %588 = vmatpush1.msra.mxu0 0.0
      %589 = vmatprep.subr.mxu0 0.0
      %590 = vmatpush1.msra.mxu0 0.0
      %591 = vmatprep.subr.mxu0 0.0
      %592 = vmatpush1.msra.mxu0 0.0
      %593 = vmatprep.subr.mxu0 0.0
      %594 = vmatpush1.msra.mxu0 0.0
      %595 = vmatprep.subr.mxu0 0.0
      %596 = vmatpush1.msra.mxu0 0.0
      %597 = vmatprep.subr.mxu0 0.0
      %598 = vmatpush1.msra.mxu0 0.0
      %599 = vmatprep.subr.mxu0 0.0
      %600 = vmatpush1.msra.mxu0 0.0
      %601 = vmatprep.subr.mxu0 0.0
      %602 = vmatpush1.msra.mxu0 0.0
      %603 = vmatprep.subr.mxu0 0.0
      %604 = vmatpush1.msra.mxu0 0.0
      %605 = vmatprep.subr.mxu0 0.0
      %606 = vmatpush1.msra.mxu0 0.0
      %607 = vmatprep.subr.mxu0 0.0
      %608 = vmatpush1.msra.mxu0 %v578
      %609 = vmatprep.subr.mxu0 0.0
      %610 = vmatpush1.msra.mxu0 %v577
      %611 = vmatprep.subr.mxu0 0.0
      %612 = vmatpush1.msra.mxu0 %v576
      %613 = vmatprep.subr.mxu0 0.0
      %614 = vmatpush1.msra.mxu0 %v575
      %615 = vmatprep.subr.mxu0 0.0
      %616 = vmatpush2.msra.mxu0 0.0
      %617 = vmatprep.subr.mxu0 0.0
      %618 = vmatpush2.msra.mxu0 0.0
      %619 = vmatprep.subr.mxu0 0.0
      %620 = vmatpush2.msra.mxu0 0.0
      %621 = vmatprep.subr.mxu0 0.0
      %622 = vmatpush2.msra.mxu0 0.0
      %623 = vmatprep.subr.mxu0 0.0
      %624 = vmatpush2.msra.mxu0 0.0
      %625 = vmatprep.subr.mxu0 0.0
      %626 = vmatpush2.msra.mxu0 0.0
      %627 = vmatprep.subr.mxu0 0.0
      %628 = vmatpush2.msra.mxu0 0.0
      %629 = vmatprep.subr.mxu0 0.0
      %630 = vmatpush2.msra.mxu0 0.0
      %631 = vmatprep.subr.mxu0 0.0
      %632 = vmatpush2.msra.mxu0 0.0
      %633 = vmatprep.subr.mxu0 0.0
      %634 = vmatpush2.msra.mxu0 0.0
      %635 = vmatprep.subr.mxu0 0.0
      %636 = vmatpush2.msra.mxu0 0.0
      %637 = vmatprep.subr.mxu0 0.0
      %638 = vmatpush2.msra.mxu0 0.0
      %639 = vmatprep.subr.mxu0 0.0
      %640 = vmatpush2.msra.mxu0 0.0
      %641 = vmatprep.subr.mxu0 0.0
      %642 = vmatpush2.msra.mxu0 0.0
      %643 = vmatprep.subr.mxu0 0.0
      %644 = vmatpush2.msra.mxu0 0.0
      %645 = vmatprep.subr.mxu0 0.0
      %646 = vmatpush2.msra.mxu0 0.0
      %647 = vmatprep.mubr.f32.mxu0 0.0
      %648 = vmatmul.mubr.f32.gmra.mxu0 %v581
      %v649 = vpop.f32.mrf.mxu0
      %v650 = vadd.f32 0.0, %v649
      %v651 = vpop.f32.mrf.mxu0
      %652 = vdwg.mxu0
      %v653 = vld [vmem:[#allocation4] sm:$0x3]
      %v654 = vld [vmem:[%s5] sm:$0xff]
      %v655 = vld [vmem:[%s5 + $0x8] sm:$0xff]
      %v656 = vld [vmem:[%s5 + $0x10] sm:$0xff]
      %v657 = vld [vmem:[%s5 + $0x18] sm:$0xff]
      %v659 = vsel %vm579, %v653, 0
      %661 = vmatprep.subr.mxu0 0.0
      %662 = vmatpush1.msra.mxu0 0.0
      %663 = vmatprep.subr.mxu0 0.0
      %664 = vmatpush1.msra.mxu0 0.0
      %665 = vmatprep.subr.mxu0 0.0
      %666 = vmatpush1.msra.mxu0 0.0
      %667 = vmatprep.subr.mxu0 0.0
      %668 = vmatpush1.msra.mxu0 0.0
      %669 = vmatprep.subr.mxu0 0.0
      %670 = vmatpush1.msra.mxu0 0.0
      %671 = vmatprep.subr.mxu0 0.0
      %672 = vmatpush1.msra.mxu0 0.0
      %673 = vmatprep.subr.mxu0 0.0
      %674 = vmatpush1.msra.mxu0 0.0
      %675 = vmatprep.subr.mxu0 0.0
      %676 = vmatpush1.msra.mxu0 0.0
      %677 = vmatprep.subr.mxu0 0.0
      %678 = vmatpush1.msra.mxu0 0.0
      %679 = vmatprep.subr.mxu0 0.0
      %680 = vmatpush1.msra.mxu0 0.0
      %681 = vmatprep.subr.mxu0 0.0
      %682 = vmatpush1.msra.mxu0 0.0
      %683 = vmatprep.subr.mxu0 0.0
      %684 = vmatpush1.msra.mxu0 0.0
      %685 = vmatprep.subr.mxu0 0.0
      %686 = vmatpush1.msra.mxu0 %v657
      %687 = vmatprep.subr.mxu0 0.0
      %688 = vmatpush1.msra.mxu0 %v656
      %689 = vmatprep.subr.mxu0 0.0
      %690 = vmatpush1.msra.mxu0 %v655
      %691 = vmatprep.subr.mxu0 0.0
      %692 = vmatpush1.msra.mxu0 %v654
      %693 = vmatprep.subr.mxu0 0.0
      %694 = vmatpush2.msra.mxu0 0.0
      %695 = vmatprep.subr.mxu0 0.0
      %696 = vmatpush2.msra.mxu0 0.0
      %697 = vmatprep.subr.mxu0 0.0
      %698 = vmatpush2.msra.mxu0 0.0
      %699 = vmatprep.subr.mxu0 0.0
      %700 = vmatpush2.msra.mxu0 0.0
      %701 = vmatprep.subr.mxu0 0.0
      %702 = vmatpush2.msra.mxu0 0.0
      %703 = vmatprep.subr.mxu0 0.0
      %704 = vmatpush2.msra.mxu0 0.0
      %705 = vmatprep.subr.mxu0 0.0
      %706 = vmatpush2.msra.mxu0 0.0
      %707 = vmatprep.subr.mxu0 0.0
      %708 = vmatpush2.msra.mxu0 0.0
      %709 = vmatprep.subr.mxu0 0.0
      %710 = vmatpush2.msra.mxu0 0.0
      %711 = vmatprep.subr.mxu0 0.0
      %712 = vmatpush2.msra.mxu0 0.0
      %713 = vmatprep.subr.mxu0 0.0
      %714 = vmatpush2.msra.mxu0 0.0
      %715 = vmatprep.subr.mxu0 0.0
      %716 = vmatpush2.msra.mxu0 0.0
      %717 = vmatprep.subr.mxu0 0.0
      %718 = vmatpush2.msra.mxu0 0.0
      %719 = vmatprep.subr.mxu0 0.0
      %720 = vmatpush2.msra.mxu0 0.0
      %721 = vmatprep.subr.mxu0 0.0
      %722 = vmatpush2.msra.mxu0 0.0
      %723 = vmatprep.subr.mxu0 0.0
      %724 = vmatpush2.msra.mxu0 0.0
      %725 = vmatprep.mubr.f32.mxu0 0.0
      %726 = vmatmul.mubr.f32.gmra.mxu0 %v659
      %v727 = vpop.f32.mrf.mxu0
      %v728 = vadd.f32 0.0, %v727
      %v729 = vpop.f32.mrf.mxu0
      %730 = vdwg.mxu0
      %v733 = vunpack.c.l.s4 1966171168
      %v734 = vunpack.c.0.s8 %v733
      %v735 = vlaneseq
      %v736 = vshrl.u32 %v735, 7
      %v737 = vsub.s32 %v734, %v736
      %v738 = vrot.slane %v728, %v737
      %v739 = vcombine.high %v738, %v738
      %v741 = vunpack.c.l.s4 1966171168
      %v742 = vunpack.c.0.s8 %v741
      %v743 = vlaneseq
      %v744 = vshrl.u32 %v743, 7
      %v745 = vsub.s32 %v742, %v744
      %v746 = vrot.slane %v738, %v745
      %v748 = vunpack.c.l.s4 1966171168
      %v749 = vunpack.c.0.s8 %v748
      %v750 = vlaneseq
      %v751 = vshrl.u32 %v750, 7
      %v752 = vsub.s32 %v749, %v751
      %v753 = vrot.slane %v739, %v752
      %v754 = vld [vmem:[%s4] sm:$0xff]
      %v755 = vld [vmem:[%s4 + $0x8] sm:$0xff]
      %v756 = vlaneseq
      %v757 = vshrl.u32 %v756, 7
      %v758 = vsub.s32 0, %v757
      %v759 = vrot.slane %v746, %v758
      %v760 = vlaneseq
      %v761 = vshrl.u32 %v760, 7
      %v762 = vsub.s32 0, %v761
      %v763 = vrot.slane %v753, %v762
      %v766 = vadd.f32 %v759, %v754
      %v767 = vadd.f32 %v763, %v755
      %v768 = vtanh.pop %v766
      %v769 = vtanh.pop %v767
      %v770 = vld [vmem:[%s6] sm:$0x1]
      %v772 = vsel %vm579, %v770, 0
      %v775 = vsel %vm579, %v768, 0
      %777 = vmatprep.subr.mxu0 0.0
      %778 = vmatpush1.xpose.msra.mxu0 0.0
      %779 = vmatprep.subr.mxu0 0.0
      %780 = vmatpush1.xpose.msra.mxu0 0.0
      %781 = vmatprep.subr.mxu0 0.0
      %782 = vmatpush1.xpose.msra.mxu0 0.0
      %783 = vmatprep.subr.mxu0 0.0
      %784 = vmatpush1.xpose.msra.mxu0 0.0
      %785 = vmatprep.subr.mxu0 0.0
      %786 = vmatpush1.xpose.msra.mxu0 0.0
      %787 = vmatprep.subr.mxu0 0.0
      %788 = vmatpush1.xpose.msra.mxu0 0.0
      %789 = vmatprep.subr.mxu0 0.0
      %790 = vmatpush1.xpose.msra.mxu0 0.0
      %791 = vmatprep.subr.mxu0 0.0
      %792 = vmatpush1.xpose.msra.mxu0 0.0
      %793 = vmatprep.subr.mxu0 0.0
      %794 = vmatpush1.xpose.msra.mxu0 0.0
      %795 = vmatprep.subr.mxu0 0.0
      %796 = vmatpush1.xpose.msra.mxu0 0.0
      %797 = vmatprep.subr.mxu0 0.0
      %798 = vmatpush1.xpose.msra.mxu0 0.0
      %799 = vmatprep.subr.mxu0 0.0
      %800 = vmatpush1.xpose.msra.mxu0 0.0
      %801 = vmatprep.subr.mxu0 0.0
      %802 = vmatpush1.xpose.msra.mxu0 0.0
      %803 = vmatprep.subr.mxu0 0.0
      %804 = vmatpush1.xpose.msra.mxu0 0.0
      %805 = vmatprep.subr.mxu0 0.0
      %806 = vmatpush1.xpose.msra.mxu0 0.0
      %807 = vmatprep.subr.mxu0 0.0
      %808 = vmatpush1.xpose.msra.mxu0 %v775
      %809 = vmatprep.subr.mxu0 0.0
      %810 = vmatpush2.xpose.msra.mxu0 0.0
      %811 = vmatprep.subr.mxu0 0.0
      %812 = vmatpush2.xpose.msra.mxu0 0.0
      %813 = vmatprep.subr.mxu0 0.0
      %814 = vmatpush2.xpose.msra.mxu0 0.0
      %815 = vmatprep.subr.mxu0 0.0
      %816 = vmatpush2.xpose.msra.mxu0 0.0
      %817 = vmatprep.subr.mxu0 0.0
      %818 = vmatpush2.xpose.msra.mxu0 0.0
      %819 = vmatprep.subr.mxu0 0.0
      %820 = vmatpush2.xpose.msra.mxu0 0.0
      %821 = vmatprep.subr.mxu0 0.0
      %822 = vmatpush2.xpose.msra.mxu0 0.0
      %823 = vmatprep.subr.mxu0 0.0
      %824 = vmatpush2.xpose.msra.mxu0 0.0
      %825 = vmatprep.subr.mxu0 0.0
      %826 = vmatpush2.xpose.msra.mxu0 0.0
      %827 = vmatprep.subr.mxu0 0.0
      %828 = vmatpush2.xpose.msra.mxu0 0.0
      %829 = vmatprep.subr.mxu0 0.0
      %830 = vmatpush2.xpose.msra.mxu0 0.0
      %831 = vmatprep.subr.mxu0 0.0
      %832 = vmatpush2.xpose.msra.mxu0 0.0
      %833 = vmatprep.subr.mxu0 0.0
      %834 = vmatpush2.xpose.msra.mxu0 0.0
      %835 = vmatprep.subr.mxu0 0.0
      %836 = vmatpush2.xpose.msra.mxu0 0.0
      %837 = vmatprep.subr.mxu0 0.0
      %838 = vmatpush2.xpose.msra.mxu0 0.0
      %839 = vmatprep.subr.mxu0 0.0
      %840 = vmatpush2.xpose.msra.mxu0 0.0
      %841 = vmatprep.mubr.f32.mxu0 0.0
      %842 = vmatmul.mubr.f32.gmra.mxu0 %v772
      %v843 = vpop.f32.mrf.mxu0
      %v844 = vadd.f32 0.0, %v843
      %v845 = vpop.f32.mrf.mxu0
      %846 = vdwg.mxu0
      %v848 = vsel %vm579, %v769, 0
      %850 = vmatprep.subr.mxu0 0.0
      %851 = vmatpush1.xpose.msra.mxu0 0.0
      %852 = vmatprep.subr.mxu0 0.0
      %853 = vmatpush1.xpose.msra.mxu0 0.0
      %854 = vmatprep.subr.mxu0 0.0
      %855 = vmatpush1.xpose.msra.mxu0 0.0
      %856 = vmatprep.subr.mxu0 0.0
      %857 = vmatpush1.xpose.msra.mxu0 0.0
      %858 = vmatprep.subr.mxu0 0.0
      %859 = vmatpush1.xpose.msra.mxu0 0.0
      %860 = vmatprep.subr.mxu0 0.0
      %861 = vmatpush1.xpose.msra.mxu0 0.0
      %862 = vmatprep.subr.mxu0 0.0
      %863 = vmatpush1.xpose.msra.mxu0 0.0
      %864 = vmatprep.subr.mxu0 0.0
      %865 = vmatpush1.xpose.msra.mxu0 0.0
      %866 = vmatprep.subr.mxu0 0.0
      %867 = vmatpush1.xpose.msra.mxu0 0.0
      %868 = vmatprep.subr.mxu0 0.0
      %869 = vmatpush1.xpose.msra.mxu0 0.0
      %870 = vmatprep.subr.mxu0 0.0
      %871 = vmatpush1.xpose.msra.mxu0 0.0
      %872 = vmatprep.subr.mxu0 0.0
      %873 = vmatpush1.xpose.msra.mxu0 0.0
      %874 = vmatprep.subr.mxu0 0.0
      %875 = vmatpush1.xpose.msra.mxu0 0.0
      %876 = vmatprep.subr.mxu0 0.0
      %877 = vmatpush1.xpose.msra.mxu0 0.0
      %878 = vmatprep.subr.mxu0 0.0
      %879 = vmatpush1.xpose.msra.mxu0 0.0
      %880 = vmatprep.subr.mxu0 0.0
      %881 = vmatpush1.xpose.msra.mxu0 %v848
      %882 = vmatprep.subr.mxu0 0.0
      %883 = vmatpush2.xpose.msra.mxu0 0.0
      %884 = vmatprep.subr.mxu0 0.0
      %885 = vmatpush2.xpose.msra.mxu0 0.0
      %886 = vmatprep.subr.mxu0 0.0
      %887 = vmatpush2.xpose.msra.mxu0 0.0
      %888 = vmatprep.subr.mxu0 0.0
      %889 = vmatpush2.xpose.msra.mxu0 0.0
      %890 = vmatprep.subr.mxu0 0.0
      %891 = vmatpush2.xpose.msra.mxu0 0.0
      %892 = vmatprep.subr.mxu0 0.0
      %893 = vmatpush2.xpose.msra.mxu0 0.0
      %894 = vmatprep.subr.mxu0 0.0
      %895 = vmatpush2.xpose.msra.mxu0 0.0
      %896 = vmatprep.subr.mxu0 0.0
      %897 = vmatpush2.xpose.msra.mxu0 0.0
      %898 = vmatprep.subr.mxu0 0.0
      %899 = vmatpush2.xpose.msra.mxu0 0.0
      %900 = vmatprep.subr.mxu0 0.0
      %901 = vmatpush2.xpose.msra.mxu0 0.0
      %902 = vmatprep.subr.mxu0 0.0
      %903 = vmatpush2.xpose.msra.mxu0 0.0
      %904 = vmatprep.subr.mxu0 0.0
      %905 = vmatpush2.xpose.msra.mxu0 0.0
      %906 = vmatprep.subr.mxu0 0.0
      %907 = vmatpush2.xpose.msra.mxu0 0.0
      %908 = vmatprep.subr.mxu0 0.0
      %909 = vmatpush2.xpose.msra.mxu0 0.0
      %910 = vmatprep.subr.mxu0 0.0
      %911 = vmatpush2.xpose.msra.mxu0 0.0
      %912 = vmatprep.subr.mxu0 0.0
      %913 = vmatpush2.xpose.msra.mxu0 0.0
      %914 = vmatprep.mubr.f32.mxu0 0.0
      %915 = vmatmul.mubr.f32.gmra.mxu0 %v772
      %v916 = vpop.f32.mrf.mxu0
      %v917 = vadd.f32 0.0, %v916
      %v918 = vpop.f32.mrf.mxu0
      %919 = vdwg.mxu0
      %vm920 = vcmask 57344
      %v921 = vsel %vm920, %v844, -inf
      %922 = vmax.xlane.f32.xlu0 %v921
      %v923 = vpop.xlane.xlu0 %922
      %v924 = vsel %vm920, %v917, -inf
      %925 = vmax.xlane.f32.xlu0 %v924
      %v926 = vpop.xlane.xlu0 %925
      %v927 = vsub.f32 %v844, %v923
      %v928 = vsub.f32 %v917, %v926
      %v929 = vmul.f32 %v927, 1.442695
      %v930 = vpow.pop %v929
      %v931 = vmul.f32 %v928, 1.442695
      %v932 = vpow.pop %v931
      %v933 = vsel %vm920, %v930, 0.0
      %934 = vadd.xlane.f32.xlu0 %v933
      %v935 = vpop.xlane.xlu0 %934
      %v936 = vsel %vm920, %v932, 0.0
      %937 = vadd.xlane.f32.xlu0 %v936
      %v938 = vpop.xlane.xlu0 %937
      %v939 = vrcp.pop %v935
      %v940 = vrcp.pop %v938
      %v941 = vmul.f32 %v930, %v939
      %v942 = vmul.f32 %v932, %v940
      %v943 = vld [vmem:[%s3] sm:$0xff]
      %v944 = vld [vmem:[%s3 + $0x8] sm:$0xff]
      %vm945 = vcmask 64512
      %v947 = vsel %vm945, %v941, 0
      %949 = vmatprep.subr.mxu0 0.0
      %950 = vmatpush1.msra.mxu0 0.0
      %951 = vmatprep.subr.mxu0 0.0
      %952 = vmatpush1.msra.mxu0 0.0
      %953 = vmatprep.subr.mxu0 0.0
      %954 = vmatpush1.msra.mxu0 0.0
      %955 = vmatprep.subr.mxu0 0.0
      %956 = vmatpush1.msra.mxu0 0.0
      %957 = vmatprep.subr.mxu0 0.0
      %958 = vmatpush1.msra.mxu0 0.0
      %959 = vmatprep.subr.mxu0 0.0
      %960 = vmatpush1.msra.mxu0 0.0
      %961 = vmatprep.subr.mxu0 0.0
      %962 = vmatpush1.msra.mxu0 0.0
      %963 = vmatprep.subr.mxu0 0.0
      %964 = vmatpush1.msra.mxu0 0.0
      %965 = vmatprep.subr.mxu0 0.0
      %966 = vmatpush1.msra.mxu0 0.0
      %967 = vmatprep.subr.mxu0 0.0
      %968 = vmatpush1.msra.mxu0 0.0
      %969 = vmatprep.subr.mxu0 0.0
      %970 = vmatpush1.msra.mxu0 0.0
      %971 = vmatprep.subr.mxu0 0.0
      %972 = vmatpush1.msra.mxu0 0.0
      %973 = vmatprep.subr.mxu0 0.0
      %974 = vmatpush1.msra.mxu0 0.0
      %975 = vmatprep.subr.mxu0 0.0
      %976 = vmatpush1.msra.mxu0 0.0
      %977 = vmatprep.subr.mxu0 0.0
      %978 = vmatpush1.msra.mxu0 0.0
      %979 = vmatprep.subr.mxu0 0.0
      %980 = vmatpush1.msra.mxu0 %v943
      %981 = vmatprep.subr.mxu0 0.0
      %982 = vmatpush2.msra.mxu0 0.0
      %983 = vmatprep.subr.mxu0 0.0
      %984 = vmatpush2.msra.mxu0 0.0
      %985 = vmatprep.subr.mxu0 0.0
      %986 = vmatpush2.msra.mxu0 0.0
      %987 = vmatprep.subr.mxu0 0.0
      %988 = vmatpush2.msra.mxu0 0.0
      %989 = vmatprep.subr.mxu0 0.0
      %990 = vmatpush2.msra.mxu0 0.0
      %991 = vmatprep.subr.mxu0 0.0
      %992 = vmatpush2.msra.mxu0 0.0
      %993 = vmatprep.subr.mxu0 0.0
      %994 = vmatpush2.msra.mxu0 0.0
      %995 = vmatprep.subr.mxu0 0.0
      %996 = vmatpush2.msra.mxu0 0.0
      %997 = vmatprep.subr.mxu0 0.0
      %998 = vmatpush2.msra.mxu0 0.0
      %999 = vmatprep.subr.mxu0 0.0
      %1000 = vmatpush2.msra.mxu0 0.0
      %1001 = vmatprep.subr.mxu0 0.0
      %1002 = vmatpush2.msra.mxu0 0.0
      %1003 = vmatprep.subr.mxu0 0.0
      %1004 = vmatpush2.msra.mxu0 0.0
      %1005 = vmatprep.subr.mxu0 0.0
      %1006 = vmatpush2.msra.mxu0 0.0
      %1007 = vmatprep.subr.mxu0 0.0
      %1008 = vmatpush2.msra.mxu0 0.0
      %1009 = vmatprep.subr.mxu0 0.0
      %1010 = vmatpush2.msra.mxu0 0.0
      %1011 = vmatprep.subr.mxu0 0.0
      %1012 = vmatpush2.msra.mxu0 0.0
      %1013 = vmatprep.mubr.f32.mxu0 0.0
      %1014 = vmatmul.mubr.f32.gmra.mxu0 %v947
      %v1015 = vpop.f32.mrf.mxu0
      %v1016 = vadd.f32 0.0, %v1015
      %v1017 = vpop.f32.mrf.mxu0
      %1018 = vdwg.mxu0
      %v1020 = vsel %vm945, %v942, 0
      %1022 = vmatprep.subr.mxu0 0.0
      %1023 = vmatpush1.msra.mxu0 0.0
      %1024 = vmatprep.subr.mxu0 0.0
      %1025 = vmatpush1.msra.mxu0 0.0
      %1026 = vmatprep.subr.mxu0 0.0
      %1027 = vmatpush1.msra.mxu0 0.0
      %1028 = vmatprep.subr.mxu0 0.0
      %1029 = vmatpush1.msra.mxu0 0.0
      %1030 = vmatprep.subr.mxu0 0.0
      %1031 = vmatpush1.msra.mxu0 0.0
      %1032 = vmatprep.subr.mxu0 0.0
      %1033 = vmatpush1.msra.mxu0 0.0
      %1034 = vmatprep.subr.mxu0 0.0
      %1035 = vmatpush1.msra.mxu0 0.0
      %1036 = vmatprep.subr.mxu0 0.0
      %1037 = vmatpush1.msra.mxu0 0.0
      %1038 = vmatprep.subr.mxu0 0.0
      %1039 = vmatpush1.msra.mxu0 0.0
      %1040 = vmatprep.subr.mxu0 0.0
      %1041 = vmatpush1.msra.mxu0 0.0
      %1042 = vmatprep.subr.mxu0 0.0
      %1043 = vmatpush1.msra.mxu0 0.0
      %1044 = vmatprep.subr.mxu0 0.0
      %1045 = vmatpush1.msra.mxu0 0.0
      %1046 = vmatprep.subr.mxu0 0.0
      %1047 = vmatpush1.msra.mxu0 0.0
      %1048 = vmatprep.subr.mxu0 0.0
      %1049 = vmatpush1.msra.mxu0 0.0
      %1050 = vmatprep.subr.mxu0 0.0
      %1051 = vmatpush1.msra.mxu0 0.0
      %1052 = vmatprep.subr.mxu0 0.0
      %1053 = vmatpush1.msra.mxu0 %v944
      %1054 = vmatprep.subr.mxu0 0.0
      %1055 = vmatpush2.msra.mxu0 0.0
      %1056 = vmatprep.subr.mxu0 0.0
      %1057 = vmatpush2.msra.mxu0 0.0
      %1058 = vmatprep.subr.mxu0 0.0
      %1059 = vmatpush2.msra.mxu0 0.0
      %1060 = vmatprep.subr.mxu0 0.0
      %1061 = vmatpush2.msra.mxu0 0.0
      %1062 = vmatprep.subr.mxu0 0.0
      %1063 = vmatpush2.msra.mxu0 0.0
      %1064 = vmatprep.subr.mxu0 0.0
      %1065 = vmatpush2.msra.mxu0 0.0
      %1066 = vmatprep.subr.mxu0 0.0
      %1067 = vmatpush2.msra.mxu0 0.0
      %1068 = vmatprep.subr.mxu0 0.0
      %1069 = vmatpush2.msra.mxu0 0.0
      %1070 = vmatprep.subr.mxu0 0.0
      %1071 = vmatpush2.msra.mxu0 0.0
      %1072 = vmatprep.subr.mxu0 0.0
      %1073 = vmatpush2.msra.mxu0 0.0
      %1074 = vmatprep.subr.mxu0 0.0
      %1075 = vmatpush2.msra.mxu0 0.0
      %1076 = vmatprep.subr.mxu0 0.0
      %1077 = vmatpush2.msra.mxu0 0.0
      %1078 = vmatprep.subr.mxu0 0.0
      %1079 = vmatpush2.msra.mxu0 0.0
      %1080 = vmatprep.subr.mxu0 0.0
      %1081 = vmatpush2.msra.mxu0 0.0
      %1082 = vmatprep.subr.mxu0 0.0
      %1083 = vmatpush2.msra.mxu0 0.0
      %1084 = vmatprep.subr.mxu0 0.0
      %1085 = vmatpush2.msra.mxu0 0.0
      %1086 = vmatprep.mubr.f32.mxu0 0.0
      %1087 = vmatmul.mubr.f32.gmra.mxu0 %v1020
      %v1088 = vpop.f32.mrf.mxu0
      %v1089 = vadd.f32 0.0, %v1088
      %v1090 = vpop.f32.mrf.mxu0
      %1091 = vdwg.mxu0
      %v1092 = vld [vmem:[#allocation2] sm:$0x3]
      %v1093 = vld [vmem:[#allocation3] sm:$0x3]
      %v1094 = vld [vmem:[%s9] sm:$0xff]
      %v1095 = vld [vmem:[%s9 + $0x8] sm:$0xff]
      %v1096 = vld [vmem:[%s10] sm:$0xff]
      %v1097 = vld [vmem:[%s10 + $0x8] sm:$0xff]
      %v1098 = vld [vmem:[%s10 + $0x10] sm:$0xff]
      %v1099 = vld [vmem:[%s10 + $0x18] sm:$0xff]
      %v1102 = vrot.slane %v1089, 7
      %vm1103 = vcmask 1041409
      %v1104 = vsel %vm1103, %v1102, %v1016
      %v1105 = vsel %vm579, %v1104, 0
      %1107 = vmatprep.subr.mxu0 0.0
      %1108 = vmatpush1.msra.mxu0 0.0
      %1109 = vmatprep.subr.mxu0 0.0
      %1110 = vmatpush1.msra.mxu0 0.0
      %1111 = vmatprep.subr.mxu0 0.0
      %1112 = vmatpush1.msra.mxu0 0.0
      %1113 = vmatprep.subr.mxu0 0.0
      %1114 = vmatpush1.msra.mxu0 0.0
      %1115 = vmatprep.subr.mxu0 0.0
      %1116 = vmatpush1.msra.mxu0 0.0
      %1117 = vmatprep.subr.mxu0 0.0
      %1118 = vmatpush1.msra.mxu0 0.0
      %1119 = vmatprep.subr.mxu0 0.0
      %1120 = vmatpush1.msra.mxu0 0.0
      %1121 = vmatprep.subr.mxu0 0.0
      %1122 = vmatpush1.msra.mxu0 0.0
      %1123 = vmatprep.subr.mxu0 0.0
      %1124 = vmatpush1.msra.mxu0 0.0
      %1125 = vmatprep.subr.mxu0 0.0
      %1126 = vmatpush1.msra.mxu0 0.0
      %1127 = vmatprep.subr.mxu0 0.0
      %1128 = vmatpush1.msra.mxu0 0.0
      %1129 = vmatprep.subr.mxu0 0.0
      %1130 = vmatpush1.msra.mxu0 0.0
      %1131 = vmatprep.subr.mxu0 0.0
      %1132 = vmatpush1.msra.mxu0 %v1099
      %1133 = vmatprep.subr.mxu0 0.0
      %1134 = vmatpush1.msra.mxu0 %v1098
      %1135 = vmatprep.subr.mxu0 0.0
      %1136 = vmatpush1.msra.mxu0 %v1097
      %1137 = vmatprep.subr.mxu0 0.0
      %1138 = vmatpush1.msra.mxu0 %v1096
      %1139 = vmatprep.subr.mxu0 0.0
      %1140 = vmatpush2.msra.mxu0 0.0
      %1141 = vmatprep.subr.mxu0 0.0
      %1142 = vmatpush2.msra.mxu0 0.0
      %1143 = vmatprep.subr.mxu0 0.0
      %1144 = vmatpush2.msra.mxu0 0.0
      %1145 = vmatprep.subr.mxu0 0.0
      %1146 = vmatpush2.msra.mxu0 0.0
      %1147 = vmatprep.subr.mxu0 0.0
      %1148 = vmatpush2.msra.mxu0 0.0
      %1149 = vmatprep.subr.mxu0 0.0
      %1150 = vmatpush2.msra.mxu0 0.0
      %1151 = vmatprep.subr.mxu0 0.0
      %1152 = vmatpush2.msra.mxu0 0.0
      %1153 = vmatprep.subr.mxu0 0.0
      %1154 = vmatpush2.msra.mxu0 0.0
      %1155 = vmatprep.subr.mxu0 0.0
      %1156 = vmatpush2.msra.mxu0 0.0
      %1157 = vmatprep.subr.mxu0 0.0
      %1158 = vmatpush2.msra.mxu0 0.0
      %1159 = vmatprep.subr.mxu0 0.0
      %1160 = vmatpush2.msra.mxu0 0.0
      %1161 = vmatprep.subr.mxu0 0.0
      %1162 = vmatpush2.msra.mxu0 0.0
      %1163 = vmatprep.subr.mxu0 0.0
      %1164 = vmatpush2.msra.mxu0 0.0
      %1165 = vmatprep.subr.mxu0 0.0
      %1166 = vmatpush2.msra.mxu0 0.0
      %1167 = vmatprep.subr.mxu0 0.0
      %1168 = vmatpush2.msra.mxu0 0.0
      %1169 = vmatprep.subr.mxu0 0.0
      %1170 = vmatpush2.msra.mxu0 0.0
      %1171 = vmatprep.mubr.f32.mxu0 0.0
      %1172 = vmatmul.mubr.f32.gmra.mxu0 %v1105
      %v1173 = vpop.f32.mrf.mxu0
      %v1174 = vadd.f32 0.0, %v1173
      %v1175 = vpop.f32.mrf.mxu0
      %1176 = vdwg.mxu0
      %vm1177 = vcmask 130048
      %v1179 = vsel %vm1177, %v650, 0
      %1181 = vmatprep.subr.mxu0 0.0
      %1182 = vmatpush1.msra.mxu0 0.0
      %1183 = vmatprep.subr.mxu0 0.0
      %1184 = vmatpush1.msra.mxu0 0.0
      %1185 = vmatprep.subr.mxu0 0.0
      %1186 = vmatpush1.msra.mxu0 0.0
      %1187 = vmatprep.subr.mxu0 0.0
      %1188 = vmatpush1.msra.mxu0 0.0
      %1189 = vmatprep.subr.mxu0 0.0
      %1190 = vmatpush1.msra.mxu0 0.0
      %1191 = vmatprep.subr.mxu0 0.0
      %1192 = vmatpush1.msra.mxu0 0.0
      %1193 = vmatprep.subr.mxu0 0.0
      %1194 = vmatpush1.msra.mxu0 0.0
      %1195 = vmatprep.subr.mxu0 0.0
      %1196 = vmatpush1.msra.mxu0 0.0
      %1197 = vmatprep.subr.mxu0 0.0
      %1198 = vmatpush1.msra.mxu0 0.0
      %1199 = vmatprep.subr.mxu0 0.0
      %1200 = vmatpush1.msra.mxu0 0.0
      %1201 = vmatprep.subr.mxu0 0.0
      %1202 = vmatpush1.msra.mxu0 0.0
      %1203 = vmatprep.subr.mxu0 0.0
      %1204 = vmatpush1.msra.mxu0 0.0
      %1205 = vmatprep.subr.mxu0 0.0
      %1206 = vmatpush1.msra.mxu0 0.0
      %1207 = vmatprep.subr.mxu0 0.0
      %1208 = vmatpush1.msra.mxu0 0.0
      %1209 = vmatprep.subr.mxu0 0.0
      %1210 = vmatpush1.msra.mxu0 %v1095
      %1211 = vmatprep.subr.mxu0 0.0
      %1212 = vmatpush1.msra.mxu0 %v1094
      %1213 = vmatprep.subr.mxu0 0.0
      %1214 = vmatpush2.msra.mxu0 0.0
      %1215 = vmatprep.subr.mxu0 0.0
      %1216 = vmatpush2.msra.mxu0 0.0
      %1217 = vmatprep.subr.mxu0 0.0
      %1218 = vmatpush2.msra.mxu0 0.0
      %1219 = vmatprep.subr.mxu0 0.0
      %1220 = vmatpush2.msra.mxu0 0.0
      %1221 = vmatprep.subr.mxu0 0.0
      %1222 = vmatpush2.msra.mxu0 0.0
      %1223 = vmatprep.subr.mxu0 0.0
      %1224 = vmatpush2.msra.mxu0 0.0
      %1225 = vmatprep.subr.mxu0 0.0
      %1226 = vmatpush2.msra.mxu0 0.0
      %1227 = vmatprep.subr.mxu0 0.0
      %1228 = vmatpush2.msra.mxu0 0.0
      %1229 = vmatprep.subr.mxu0 0.0
      %1230 = vmatpush2.msra.mxu0 0.0
      %1231 = vmatprep.subr.mxu0 0.0
      %1232 = vmatpush2.msra.mxu0 0.0
      %1233 = vmatprep.subr.mxu0 0.0
      %1234 = vmatpush2.msra.mxu0 0.0
      %1235 = vmatprep.subr.mxu0 0.0
      %1236 = vmatpush2.msra.mxu0 0.0
      %1237 = vmatprep.subr.mxu0 0.0
      %1238 = vmatpush2.msra.mxu0 0.0
      %1239 = vmatprep.subr.mxu0 0.0
      %1240 = vmatpush2.msra.mxu0 0.0
      %1241 = vmatprep.subr.mxu0 0.0
      %1242 = vmatpush2.msra.mxu0 0.0
      %1243 = vmatprep.subr.mxu0 0.0
      %1244 = vmatpush2.msra.mxu0 0.0
      %1245 = vmatprep.mubr.f32.mxu0 0.0
      %1246 = vmatmul.mubr.f32.gmra.mxu0 %v1179
      %v1247 = vpop.f32.mrf.mxu0
      %v1248 = vadd.f32 %v1174, %v1247
      %v1249 = vpop.f32.mrf.mxu0
      %1250 = vdwg.mxu0
      %v1251 = vld [vmem:[%s11] sm:$0xff]
      %v1252 = vld [vmem:[%s11 + $0x8] sm:$0xff]
      %v1253 = vld [vmem:[%s11 + $0x10] sm:$0xff]
      %v1254 = vld [vmem:[%s11 + $0x18] sm:$0xff]
      %v1256 = vsel %vm579, %v1092, 0
      %1258 = vmatprep.subr.mxu0 0.0
      %1259 = vmatpush1.msra.mxu0 0.0
      %1260 = vmatprep.subr.mxu0 0.0
      %1261 = vmatpush1.msra.mxu0 0.0
      %1262 = vmatprep.subr.mxu0 0.0
      %1263 = vmatpush1.msra.mxu0 0.0
      %1264 = vmatprep.subr.mxu0 0.0
      %1265 = vmatpush1.msra.mxu0 0.0
      %1266 = vmatprep.subr.mxu0 0.0
      %1267 = vmatpush1.msra.mxu0 0.0
      %1268 = vmatprep.subr.mxu0 0.0
      %1269 = vmatpush1.msra.mxu0 0.0
      %1270 = vmatprep.subr.mxu0 0.0
      %1271 = vmatpush1.msra.mxu0 0.0
      %1272 = vmatprep.subr.mxu0 0.0
      %1273 = vmatpush1.msra.mxu0 0.0
      %1274 = vmatprep.subr.mxu0 0.0
      %1275 = vmatpush1.msra.mxu0 0.0
      %1276 = vmatprep.subr.mxu0 0.0
      %1277 = vmatpush1.msra.mxu0 0.0
      %1278 = vmatprep.subr.mxu0 0.0
      %1279 = vmatpush1.msra.mxu0 0.0
      %1280 = vmatprep.subr.mxu0 0.0
      %1281 = vmatpush1.msra.mxu0 0.0
      %1282 = vmatprep.subr.mxu0 0.0
      %1283 = vmatpush1.msra.mxu0 %v1254
      %1284 = vmatprep.subr.mxu0 0.0
      %1285 = vmatpush1.msra.mxu0 %v1253
      %1286 = vmatprep.subr.mxu0 0.0
      %1287 = vmatpush1.msra.mxu0 %v1252
      %1288 = vmatprep.subr.mxu0 0.0
      %1289 = vmatpush1.msra.mxu0 %v1251
      %1290 = vmatprep.subr.mxu0 0.0
      %1291 = vmatpush2.msra.mxu0 0.0
      %1292 = vmatprep.subr.mxu0 0.0
      %1293 = vmatpush2.msra.mxu0 0.0
      %1294 = vmatprep.subr.mxu0 0.0
      %1295 = vmatpush2.msra.mxu0 0.0
      %1296 = vmatprep.subr.mxu0 0.0
      %1297 = vmatpush2.msra.mxu0 0.0
      %1298 = vmatprep.subr.mxu0 0.0
      %1299 = vmatpush2.msra.mxu0 0.0
      %1300 = vmatprep.subr.mxu0 0.0
      %1301 = vmatpush2.msra.mxu0 0.0
      %1302 = vmatprep.subr.mxu0 0.0
      %1303 = vmatpush2.msra.mxu0 0.0
      %1304 = vmatprep.subr.mxu0 0.0
      %1305 = vmatpush2.msra.mxu0 0.0
      %1306 = vmatprep.subr.mxu0 0.0
      %1307 = vmatpush2.msra.mxu0 0.0
      %1308 = vmatprep.subr.mxu0 0.0
      %1309 = vmatpush2.msra.mxu0 0.0
      %1310 = vmatprep.subr.mxu0 0.0
      %1311 = vmatpush2.msra.mxu0 0.0
      %1312 = vmatprep.subr.mxu0 0.0
      %1313 = vmatpush2.msra.mxu0 0.0
      %1314 = vmatprep.subr.mxu0 0.0
      %1315 = vmatpush2.msra.mxu0 0.0
      %1316 = vmatprep.subr.mxu0 0.0
      %1317 = vmatpush2.msra.mxu0 0.0
      %1318 = vmatprep.subr.mxu0 0.0
      %1319 = vmatpush2.msra.mxu0 0.0
      %1320 = vmatprep.subr.mxu0 0.0
      %1321 = vmatpush2.msra.mxu0 0.0
      %1322 = vmatprep.mubr.f32.mxu0 0.0
      %1323 = vmatmul.mubr.f32.gmra.mxu0 %v1256
      %v1324 = vpop.f32.mrf.mxu0
      %v1325 = vadd.f32 0.0, %v1324
      %v1326 = vpop.f32.mrf.mxu0
      %1327 = vdwg.mxu0
      %v1328 = vadd.f32 %v1248, %v1325
      %v1329 = vld [vmem:[%s12] sm:$0x1]
      %v1331 = vlaneseq
      %v1332 = vshrl.u32 %v1331, 7
      %v1333 = vsub.s32 0, %v1332
      %v1334 = vrot.slane %v1329, %v1333
      %v1336 = vadd.f32 %v1328, %v1334
      %v1337 = vxor.u32 %v1336, 2147483648
      %v1338 = vmul.f32 %v1337, 1.442695
      %v1339 = vpow.pop %v1338
      %v1340 = vadd.f32 %v1339, 1.0
      %v1341 = vrcp.pop %v1340
      %v1342 = vmul.f32 1.0, %v1341
      %v1343 = vtanh.pop %v1336
      %1345 = vrot.lane.b32.xlu0 %v1093, 32
      %v1346 = vpop.permute.xlu0 %1345
      %v1348 = vmul.f32 %v1342, %v1346
      %1350 = vrot.lane.b32.xlu0 %v1343, 64
      %v1351 = vpop.permute.xlu0 %1350
      %v1353 = vmul.f32 %v1342, %v1351
      %1355 = vrot.lane.b32.xlu0 %v1353, 32
      %v1356 = vpop.permute.xlu0 %1355
      %v1358 = vadd.f32 %v1348, %v1356
      %v1359 = vtanh.pop %v1358
      %1361 = vrot.lane.b32.xlu0 %v1359, 64
      %v1362 = vpop.permute.xlu0 %1361
      %v1364 = vmul.f32 %v1342, %v1362
      %v1365 = vld [vmem:[#allocation5] sm:$0x3]
      %v1366 = vld [vmem:[%s13] sm:$0xff]
      %v1367 = vld [vmem:[%s13 + $0x8] sm:$0xff]
      %v1368 = vld [vmem:[%s13 + $0x10] sm:$0xff]
      %v1369 = vld [vmem:[%s13 + $0x18] sm:$0xff]
      %v1370 = vld [vmem:[%s14] sm:$0xff]
      %v1371 = vld [vmem:[%s14 + $0x8] sm:$0xff]
      %v1372 = vld [vmem:[%s14 + $0x10] sm:$0xff]
      %v1373 = vld [vmem:[%s14 + $0x18] sm:$0xff]
      %1374 = vmatprep.subr.mxu0 0.0
      %1375 = vmatpush1.msra.mxu0 0.0
      %1376 = vmatprep.subr.mxu0 0.0
      %1377 = vmatpush1.msra.mxu0 0.0
      %1378 = vmatprep.subr.mxu0 0.0
      %1379 = vmatpush1.msra.mxu0 0.0
      %1380 = vmatprep.subr.mxu0 0.0
      %1381 = vmatpush1.msra.mxu0 0.0
      %1382 = vmatprep.subr.mxu0 0.0
      %1383 = vmatpush1.msra.mxu0 0.0
      %1384 = vmatprep.subr.mxu0 0.0
      %1385 = vmatpush1.msra.mxu0 0.0
      %1386 = vmatprep.subr.mxu0 0.0
      %1387 = vmatpush1.msra.mxu0 0.0
      %1388 = vmatprep.subr.mxu0 0.0
      %1389 = vmatpush1.msra.mxu0 0.0
      %1390 = vmatprep.subr.mxu0 0.0
      %1391 = vmatpush1.msra.mxu0 0.0
      %1392 = vmatprep.subr.mxu0 0.0
      %1393 = vmatpush1.msra.mxu0 0.0
      %1394 = vmatprep.subr.mxu0 0.0
      %1395 = vmatpush1.msra.mxu0 0.0
      %1396 = vmatprep.subr.mxu0 0.0
      %1397 = vmatpush1.msra.mxu0 0.0
      %1398 = vmatprep.subr.mxu0 0.0
      %1399 = vmatpush1.msra.mxu0 %v1373
      %1400 = vmatprep.subr.mxu0 0.0
      %1401 = vmatpush1.msra.mxu0 %v1372
      %1402 = vmatprep.subr.mxu0 0.0
      %1403 = vmatpush1.msra.mxu0 %v1371
      %1404 = vmatprep.subr.mxu0 0.0
      %1405 = vmatpush1.msra.mxu0 %v1370
      %1406 = vmatprep.subr.mxu0 0.0
      %1407 = vmatpush2.msra.mxu0 0.0
      %1408 = vmatprep.subr.mxu0 0.0
      %1409 = vmatpush2.msra.mxu0 0.0
      %1410 = vmatprep.subr.mxu0 0.0
      %1411 = vmatpush2.msra.mxu0 0.0
      %1412 = vmatprep.subr.mxu0 0.0
      %1413 = vmatpush2.msra.mxu0 0.0
      %1414 = vmatprep.subr.mxu0 0.0
      %1415 = vmatpush2.msra.mxu0 0.0
      %1416 = vmatprep.subr.mxu0 0.0
      %1417 = vmatpush2.msra.mxu0 0.0
      %1418 = vmatprep.subr.mxu0 0.0
      %1419 = vmatpush2.msra.mxu0 0.0
      %1420 = vmatprep.subr.mxu0 0.0
      %1421 = vmatpush2.msra.mxu0 0.0
      %1422 = vmatprep.subr.mxu0 0.0
      %1423 = vmatpush2.msra.mxu0 0.0
      %1424 = vmatprep.subr.mxu0 0.0
      %1425 = vmatpush2.msra.mxu0 0.0
      %1426 = vmatprep.subr.mxu0 0.0
      %1427 = vmatpush2.msra.mxu0 0.0
      %1428 = vmatprep.subr.mxu0 0.0
      %1429 = vmatpush2.msra.mxu0 0.0
      %1430 = vmatprep.subr.mxu0 0.0
      %1431 = vmatpush2.msra.mxu0 0.0
      %1432 = vmatprep.subr.mxu0 0.0
      %1433 = vmatpush2.msra.mxu0 0.0
      %1434 = vmatprep.subr.mxu0 0.0
      %1435 = vmatpush2.msra.mxu0 0.0
      %1436 = vmatprep.subr.mxu0 0.0
      %1437 = vmatpush2.msra.mxu0 0.0
      %1438 = vmatprep.mubr.f32.mxu0 0.0
      %1439 = vmatmul.mubr.f32.gmra.mxu0 %v659
      %v1440 = vpop.f32.mrf.mxu0
      %v1441 = vadd.f32 0.0, %v1440
      %v1442 = vpop.f32.mrf.mxu0
      %1443 = vdwg.mxu0
      %1445 = vrot.lane.b32.xlu0 %v1364, 32
      %v1446 = vpop.permute.xlu0 %1445
      %v1447 = vsel %vm579, %v1446, 0
      %1449 = vmatprep.subr.mxu0 0.0
      %1450 = vmatpush1.msra.mxu0 0.0
      %1451 = vmatprep.subr.mxu0 0.0
      %1452 = vmatpush1.msra.mxu0 0.0
      %1453 = vmatprep.subr.mxu0 0.0
      %1454 = vmatpush1.msra.mxu0 0.0
      %1455 = vmatprep.subr.mxu0 0.0
      %1456 = vmatpush1.msra.mxu0 0.0
      %1457 = vmatprep.subr.mxu0 0.0
      %1458 = vmatpush1.msra.mxu0 0.0
      %1459 = vmatprep.subr.mxu0 0.0
      %1460 = vmatpush1.msra.mxu0 0.0
      %1461 = vmatprep.subr.mxu0 0.0
      %1462 = vmatpush1.msra.mxu0 0.0
      %1463 = vmatprep.subr.mxu0 0.0
      %1464 = vmatpush1.msra.mxu0 0.0
      %1465 = vmatprep.subr.mxu0 0.0
      %1466 = vmatpush1.msra.mxu0 0.0
      %1467 = vmatprep.subr.mxu0 0.0
      %1468 = vmatpush1.msra.mxu0 0.0
      %1469 = vmatprep.subr.mxu0 0.0
      %1470 = vmatpush1.msra.mxu0 0.0
      %1471 = vmatprep.subr.mxu0 0.0
      %1472 = vmatpush1.msra.mxu0 0.0
      %1473 = vmatprep.subr.mxu0 0.0
      %1474 = vmatpush1.msra.mxu0 %v1369
      %1475 = vmatprep.subr.mxu0 0.0
      %1476 = vmatpush1.msra.mxu0 %v1368
      %1477 = vmatprep.subr.mxu0 0.0
      %1478 = vmatpush1.msra.mxu0 %v1367
      %1479 = vmatprep.subr.mxu0 0.0
      %1480 = vmatpush1.msra.mxu0 %v1366
      %1481 = vmatprep.subr.mxu0 0.0
      %1482 = vmatpush2.msra.mxu0 0.0
      %1483 = vmatprep.subr.mxu0 0.0
      %1484 = vmatpush2.msra.mxu0 0.0
      %1485 = vmatprep.subr.mxu0 0.0
      %1486 = vmatpush2.msra.mxu0 0.0
      %1487 = vmatprep.subr.mxu0 0.0
      %1488 = vmatpush2.msra.mxu0 0.0
      %1489 = vmatprep.subr.mxu0 0.0
      %1490 = vmatpush2.msra.mxu0 0.0
      %1491 = vmatprep.subr.mxu0 0.0
      %1492 = vmatpush2.msra.mxu0 0.0
      %1493 = vmatprep.subr.mxu0 0.0
      %1494 = vmatpush2.msra.mxu0 0.0
      %1495 = vmatprep.subr.mxu0 0.0
      %1496 = vmatpush2.msra.mxu0 0.0
      %1497 = vmatprep.subr.mxu0 0.0
      %1498 = vmatpush2.msra.mxu0 0.0
      %1499 = vmatprep.subr.mxu0 0.0
      %1500 = vmatpush2.msra.mxu0 0.0
      %1501 = vmatprep.subr.mxu0 0.0
      %1502 = vmatpush2.msra.mxu0 0.0
      %1503 = vmatprep.subr.mxu0 0.0
      %1504 = vmatpush2.msra.mxu0 0.0
      %1505 = vmatprep.subr.mxu0 0.0
      %1506 = vmatpush2.msra.mxu0 0.0
      %1507 = vmatprep.subr.mxu0 0.0
      %1508 = vmatpush2.msra.mxu0 0.0
      %1509 = vmatprep.subr.mxu0 0.0
      %1510 = vmatpush2.msra.mxu0 0.0
      %1511 = vmatprep.subr.mxu0 0.0
      %1512 = vmatpush2.msra.mxu0 0.0
      %1513 = vmatprep.mubr.f32.mxu0 0.0
      %1514 = vmatmul.mubr.f32.gmra.mxu0 %v1447
      %v1515 = vpop.f32.mrf.mxu0
      %v1516 = vadd.f32 %v1441, %v1515
      %v1517 = vpop.f32.mrf.mxu0
      %1518 = vdwg.mxu0
      %v1519 = vld [vmem:[%s15] sm:$0x1]
      %v1521 = vlaneseq
      %v1522 = vshrl.u32 %v1521, 7
      %v1523 = vsub.s32 0, %v1522
      %v1524 = vrot.slane %v1519, %v1523
      %v1526 = vadd.f32 %v1516, %v1524
      %v1527 = vxor.u32 %v1526, 2147483648
      %v1528 = vmul.f32 %v1527, 1.442695
      %v1529 = vpow.pop %v1528
      %v1530 = vadd.f32 %v1529, 1.0
      %v1531 = vrcp.pop %v1530
      %v1532 = vmul.f32 1.0, %v1531
      %v1533 = vtanh.pop %v1526
      %1535 = vrot.lane.b32.xlu0 %v1365, 32
      %v1536 = vpop.permute.xlu0 %1535
      %v1538 = vmul.f32 %v1532, %v1536
      %1540 = vrot.lane.b32.xlu0 %v1533, 64
      %v1541 = vpop.permute.xlu0 %1540
      %v1543 = vmul.f32 %v1532, %v1541
      %1545 = vrot.lane.b32.xlu0 %v1543, 32
      %v1546 = vpop.permute.xlu0 %1545
      %v1548 = vadd.f32 %v1538, %v1546
      %v1549 = vtanh.pop %v1548
      %1551 = vrot.lane.b32.xlu0 %v1549, 64
      %v1552 = vpop.permute.xlu0 %1551
      %v1554 = vmul.f32 %v1532, %v1552
      %v1555 = vld [vmem:[%s16] sm:$0xff]
      %v1556 = vld [vmem:[%s16 + $0x8] sm:$0xff]
      %v1557 = vld [vmem:[%s16 + $0x10] sm:$0xff]
      %v1558 = vld [vmem:[%s16 + $0x18] sm:$0xff]
      %v1559 = vld [vmem:[%s17] sm:$0xff]
      %v1560 = vld [vmem:[%s17 + $0x8] sm:$0xff]
      %v1561 = vld [vmem:[%s17 + $0x10] sm:$0xff]
      %v1562 = vld [vmem:[%s17 + $0x18] sm:$0xff]
      %1563 = vmatprep.subr.mxu0 0.0
      %1564 = vmatpush1.msra.mxu0 0.0
      %1565 = vmatprep.subr.mxu0 0.0
      %1566 = vmatpush1.msra.mxu0 0.0
      %1567 = vmatprep.subr.mxu0 0.0
      %1568 = vmatpush1.msra.mxu0 0.0
      %1569 = vmatprep.subr.mxu0 0.0
      %1570 = vmatpush1.msra.mxu0 0.0
      %1571 = vmatprep.subr.mxu0 0.0
      %1572 = vmatpush1.msra.mxu0 0.0
      %1573 = vmatprep.subr.mxu0 0.0
      %1574 = vmatpush1.msra.mxu0 0.0
      %1575 = vmatprep.subr.mxu0 0.0
      %1576 = vmatpush1.msra.mxu0 0.0
      %1577 = vmatprep.subr.mxu0 0.0
      %1578 = vmatpush1.msra.mxu0 0.0
      %1579 = vmatprep.subr.mxu0 0.0
      %1580 = vmatpush1.msra.mxu0 0.0
      %1581 = vmatprep.subr.mxu0 0.0
      %1582 = vmatpush1.msra.mxu0 0.0
      %1583 = vmatprep.subr.mxu0 0.0
      %1584 = vmatpush1.msra.mxu0 0.0
      %1585 = vmatprep.subr.mxu0 0.0
      %1586 = vmatpush1.msra.mxu0 0.0
      %1587 = vmatprep.subr.mxu0 0.0
      %1588 = vmatpush1.msra.mxu0 %v1562
      %1589 = vmatprep.subr.mxu0 0.0
      %1590 = vmatpush1.msra.mxu0 %v1561
      %1591 = vmatprep.subr.mxu0 0.0
      %1592 = vmatpush1.msra.mxu0 %v1560
      %1593 = vmatprep.subr.mxu0 0.0
      %1594 = vmatpush1.msra.mxu0 %v1559
      %1595 = vmatprep.subr.mxu0 0.0
      %1596 = vmatpush2.msra.mxu0 0.0
      %1597 = vmatprep.subr.mxu0 0.0
      %1598 = vmatpush2.msra.mxu0 0.0
      %1599 = vmatprep.subr.mxu0 0.0
      %1600 = vmatpush2.msra.mxu0 0.0
      %1601 = vmatprep.subr.mxu0 0.0
      %1602 = vmatpush2.msra.mxu0 0.0
      %1603 = vmatprep.subr.mxu0 0.0
      %1604 = vmatpush2.msra.mxu0 0.0
      %1605 = vmatprep.subr.mxu0 0.0
      %1606 = vmatpush2.msra.mxu0 0.0
      %1607 = vmatprep.subr.mxu0 0.0
      %1608 = vmatpush2.msra.mxu0 0.0
      %1609 = vmatprep.subr.mxu0 0.0
      %1610 = vmatpush2.msra.mxu0 0.0
      %1611 = vmatprep.subr.mxu0 0.0
      %1612 = vmatpush2.msra.mxu0 0.0
      %1613 = vmatprep.subr.mxu0 0.0
      %1614 = vmatpush2.msra.mxu0 0.0
      %1615 = vmatprep.subr.mxu0 0.0
      %1616 = vmatpush2.msra.mxu0 0.0
      %1617 = vmatprep.subr.mxu0 0.0
      %1618 = vmatpush2.msra.mxu0 0.0
      %1619 = vmatprep.subr.mxu0 0.0
      %1620 = vmatpush2.msra.mxu0 0.0
      %1621 = vmatprep.subr.mxu0 0.0
      %1622 = vmatpush2.msra.mxu0 0.0
      %1623 = vmatprep.subr.mxu0 0.0
      %1624 = vmatpush2.msra.mxu0 0.0
      %1625 = vmatprep.subr.mxu0 0.0
      %1626 = vmatpush2.msra.mxu0 0.0
      %1627 = vmatprep.mubr.f32.mxu0 0.0
      %1628 = vmatmul.mubr.f32.gmra.mxu0 %v1105
      %v1629 = vpop.f32.mrf.mxu0
      %v1630 = vadd.f32 0.0, %v1629
      %v1631 = vpop.f32.mrf.mxu0
      %1632 = vdwg.mxu0
      %1634 = vrot.lane.b32.xlu0 %v1554, 32
      %v1635 = vpop.permute.xlu0 %1634
      %v1636 = vsel %vm579, %v1635, 0
      %1638 = vmatprep.subr.mxu0 0.0
      %1639 = vmatpush1.msra.mxu0 0.0
      %1640 = vmatprep.subr.mxu0 0.0
      %1641 = vmatpush1.msra.mxu0 0.0
      %1642 = vmatprep.subr.mxu0 0.0
      %1643 = vmatpush1.msra.mxu0 0.0
      %1644 = vmatprep.subr.mxu0 0.0
      %1645 = vmatpush1.msra.mxu0 0.0
      %1646 = vmatprep.subr.mxu0 0.0
      %1647 = vmatpush1.msra.mxu0 0.0
      %1648 = vmatprep.subr.mxu0 0.0
      %1649 = vmatpush1.msra.mxu0 0.0
      %1650 = vmatprep.subr.mxu0 0.0
      %1651 = vmatpush1.msra.mxu0 0.0
      %1652 = vmatprep.subr.mxu0 0.0
      %1653 = vmatpush1.msra.mxu0 0.0
      %1654 = vmatprep.subr.mxu0 0.0
      %1655 = vmatpush1.msra.mxu0 0.0
      %1656 = vmatprep.subr.mxu0 0.0
      %1657 = vmatpush1.msra.mxu0 0.0
      %1658 = vmatprep.subr.mxu0 0.0
      %1659 = vmatpush1.msra.mxu0 0.0
      %1660 = vmatprep.subr.mxu0 0.0
      %1661 = vmatpush1.msra.mxu0 0.0
      %1662 = vmatprep.subr.mxu0 0.0
      %1663 = vmatpush1.msra.mxu0 %v1558
      %1664 = vmatprep.subr.mxu0 0.0
      %1665 = vmatpush1.msra.mxu0 %v1557
      %1666 = vmatprep.subr.mxu0 0.0
      %1667 = vmatpush1.msra.mxu0 %v1556
      %1668 = vmatprep.subr.mxu0 0.0
      %1669 = vmatpush1.msra.mxu0 %v1555
      %1670 = vmatprep.subr.mxu0 0.0
      %1671 = vmatpush2.msra.mxu0 0.0
      %1672 = vmatprep.subr.mxu0 0.0
      %1673 = vmatpush2.msra.mxu0 0.0
      %1674 = vmatprep.subr.mxu0 0.0
      %1675 = vmatpush2.msra.mxu0 0.0
      %1676 = vmatprep.subr.mxu0 0.0
      %1677 = vmatpush2.msra.mxu0 0.0
      %1678 = vmatprep.subr.mxu0 0.0
      %1679 = vmatpush2.msra.mxu0 0.0
      %1680 = vmatprep.subr.mxu0 0.0
      %1681 = vmatpush2.msra.mxu0 0.0
      %1682 = vmatprep.subr.mxu0 0.0
      %1683 = vmatpush2.msra.mxu0 0.0
      %1684 = vmatprep.subr.mxu0 0.0
      %1685 = vmatpush2.msra.mxu0 0.0
      %1686 = vmatprep.subr.mxu0 0.0
      %1687 = vmatpush2.msra.mxu0 0.0
      %1688 = vmatprep.subr.mxu0 0.0
      %1689 = vmatpush2.msra.mxu0 0.0
      %1690 = vmatprep.subr.mxu0 0.0
      %1691 = vmatpush2.msra.mxu0 0.0
      %1692 = vmatprep.subr.mxu0 0.0
      %1693 = vmatpush2.msra.mxu0 0.0
      %1694 = vmatprep.subr.mxu0 0.0
      %1695 = vmatpush2.msra.mxu0 0.0
      %1696 = vmatprep.subr.mxu0 0.0
      %1697 = vmatpush2.msra.mxu0 0.0
      %1698 = vmatprep.subr.mxu0 0.0
      %1699 = vmatpush2.msra.mxu0 0.0
      %1700 = vmatprep.subr.mxu0 0.0
      %1701 = vmatpush2.msra.mxu0 0.0
      %1702 = vmatprep.mubr.f32.mxu0 0.0
      %1703 = vmatmul.mubr.f32.gmra.mxu0 %v1636
      %v1704 = vpop.f32.mrf.mxu0
      %v1705 = vadd.f32 %v1630, %v1704
      %v1706 = vpop.f32.mrf.mxu0
      %1707 = vdwg.mxu0
      %v1708 = vld [vmem:[%s18] sm:$0x1]
      %v1710 = vlaneseq
      %v1711 = vshrl.u32 %v1710, 7
      %v1712 = vsub.s32 0, %v1711
      %v1713 = vrot.slane %v1708, %v1712
      %v1715 = vadd.f32 %v1705, %v1713
      %vm1716 = vcmask 254976
      %v1717 = vsel %vm1716, %v1715, -inf
      %1718 = vmax.xlane.f32.xlu0 %v1717
      %v1719 = vpop.xlane.xlu0 %1718
      %v1720 = vsub.f32 %v1715, %v1719
      %v1721 = vmul.f32 %v1720, 1.442695
      %v1722 = vpow.pop %v1721
      %v1723 = vsel %vm1716, %v1722, 0.0
      %1724 = vadd.xlane.f32.xlu0 %v1723
      %v1725 = vpop.xlane.xlu0 %1724
      %v1726 = vlog2.pop %v1725
      %v1727 = vmul.f32 %v1726, 0.6931472
      %v1728 = vadd.f32 %v1727, %v1719
      %v1729 = vsub.f32 %v1715, %v1728
      %1730 = vst.msk [vmem:[%s538] sm:$0x3] %vm1716, %v1729
      %1732 = vst.msk [vmem:[#allocation2] sm:$0x3] %vm1716, %v1446
      %1734 = vrot.lane.b32.xlu0 %v1358, 96
      %v1735 = vpop.permute.xlu0 %1734
      %1737 = vst.msk [vmem:[#allocation3] sm:$0x3] %vm1716, %v1735
      %1739 = vst.msk [vmem:[#allocation4] sm:$0x3] %vm1716, %v1635
      %1741 = vrot.lane.b32.xlu0 %v1548, 96
      %v1742 = vpop.permute.xlu0 %1741
      %1744 = vst.msk [vmem:[#allocation5] sm:$0x3] %vm1716, %v1742
      %s1745 = sadd.s32 %s40, 1
      %s1746 = sld [smem:[#allocation9 + %s1745]]
      %p1747 = scmp.ne.s32.totalorder %s1746, 0
      // Predicated region
      $region93: #{_lambda_.3} parent=87 // pred_check
        %p1748 = pneg %p1747
      $region94: #{_lambda_.3} parent=87 // pred_check_branch
        %1750 = sbr.rel (%p1748) target = $region96
      $region95: #{_lambda_.3} parent=87 // pred_region
        %v1751 = vlaneseq
        %v1752 = vshrl.u32 %v1751, 7
        %vm1753 = vcmp.eq.s32.totalorder %v1752, 0
        %s1754 = smul.u32 %s1745, 128
        %s1755 = sld [smem:[#allocation8 + %s1754]]
        %v1756 = vstv %s1755
        %v1757 = vsel %vm1753, %v1756, 0
        %vm1758 = vcmp.eq.s32.totalorder %v1752, 1
        %s1759 = sadd.s32 %s1754, 1
        %s1760 = sld [smem:[#allocation8 + %s1759]]
        %v1761 = vstv %s1760
        %v1762 = vsel %vm1758, %v1761, %v1757
        %vm1763 = vcmask 1024
        %1764 = vst.msk [vmem:[#allocation6] sm:$0x3] %vm1763, %v1762
      $region96: #{_lambda_.3} parent=87 // pred_fallthru
        _
      %p1765 = scmp.eq.s32.totalorder %s1746, 0
      // Predicated region
      $region97: #{_lambda_.3} parent=87 // pred_check
        %p1766 = pneg %p1765
      $region98: #{_lambda_.3} parent=87 // pred_check_branch
        %1768 = sbr.rel (%p1766) target = $region100
      $region99: #{_lambda_.3} parent=87 // pred_region
        %vm1769 = vcmp.ge.f32.partialorder %v1715, %v1719
        %v1770 = vsel %vm1769, %v568, 32
        %v1771 = vsel %vm1716, %v1770, 2147483647
        %v1772 = vand.u32 %v1771, 65535
        %v1773 = vshra.s32 %v1771, 16
        %v1774 = vcvt.s32.f32 %v1772
        %v1775 = vcvt.s32.f32 %v1773
        %1776 = vmin.xlane.f32.xlu0 %v1775
        %v1777 = vpop.xlane.xlu0 %1776
        %vm1778 = vcmp.eq.f32.partialorder %v1775, %v1777
        %v1779 = vsel %vm1778, %v1774, inf
        %1780 = vmin.xlane.f32.xlu0 %v1779
        %v1781 = vpop.xlane.xlu0 %1780
        %v1782 = vcvt.f32.s32 %v1781
        %v1783 = vcvt.f32.s32 %v1777
        %v1784 = vshll.u32 %v1783, 16
        %v1785 = vadd.s32 %v1784, %v1782
        %vm1786 = vcmask 1024
        %1787 = vst.msk [vmem:[#allocation6] sm:$0x3] %vm1786, %v1785
      $region100: #{_lambda_.3} parent=87 // pred_fallthru
        _
      %p1788 = scmp.lt.s32.totalorder %s40, 3
      %s1789 = scalar_select %p1788, %s40, 3
      %s1790 = smul.addr %s1789, 2
      %s1791 = scalar_lea.vmem %s19, %s1790
      // Predicated region
      $region101: #{_lambda_.3} parent=87 // pred_check
        %p1792 = pneg %p415
      $region102: #{_lambda_.3} parent=87 // pred_check_branch
        %1794 = sbr.rel (%p1792) target = $region104
      $region103: #{_lambda_.3} parent=87 // pred_region
        _
      $region104: #{_lambda_.3} parent=87 // pred_fallthru
        _
    $region88: #{_lambda_.3} parent=5 // pred_fallthru
      _
    %p1795 = scmp.le.s32.totalorder 2, %s35
    // Predicated region
    $region105: #{_lambda_.3} parent=5 // pred_check
      %p1796 = pneg %p1795
    $region106: #{_lambda_.3} parent=5 // pred_check_branch
      %1798 = sbr.rel (%p1796) target = $region108
    $region107: #{_lambda_.3} parent=5 // pred_region
      %s1799 = ssub.s32 %s35, 2
      // Predicated region
      $region109: #{_lambda_.3} parent=107 // pred_check
        %p1800 = pneg %p421
      $region110: #{_lambda_.3} parent=107 // pred_check_branch
        %1802 = sbr.rel (%p1800) target = $region112
      $region111: #{_lambda_.3} parent=107 // pred_region
        %p1803 = scmp.lt.s32.totalorder %s41, 3
        %s1804 = scalar_select %p1803, %s41, 3
        %s1805 = smul.addr %s1804, 2
        %s1806 = scalar_lea.vmem %s19, %s1805
      $region112: #{_lambda_.3} parent=107 // pred_fallthru
        _
    $region108: #{_lambda_.3} parent=5 // pred_fallthru
      _
  $region6: #{_lambda_.3} parent=0 // loop_footer
    %s39 = sadd.s32 1, %s35
  $region7: #{_lambda_.3} parent=0 // loop_footer_branch
    %34 = sbr.rel target = $region3
  $region8: #{_lambda_.3} parent=0 // loop_exit
    _

</llo_original>
